<compile_context>
chip_gen: v7x
topology: tpu7x:2x2x1
jax: 0.10.0
libtpu: 0.0.40
codegen_flags: <defaults>
</compile_context>

<pallas_src>
import jax
import jax.numpy as jnp
import numpy as np
from jax.experimental import pallas as pl
from jax.experimental.pallas import tpu as pltpu

KSIZE = 7
PAD = KSIZE // 2
NFEAT = 4  # cat([avg1, max1, avg2, max2])


def _make_kernel(H, W, c_chunk, P):
    """Builds the kernel for static (H, W, channel-chunk, partial-depth P)."""
    HW = H * W
    LPAD = PAD * W + PAD                    # flat halo on each side of the plane
    n_groups = c_chunk // 8 if P == 8 else 1

    def kernel(w_ref, x1_ref, x2_ref, o_ref, feat_ref, fpad_ref, acc_ref):
        # w_ref:    (NFEAT*KSIZE*KSIZE,) f32 SMEM, resident conv weights
        #           (1/C folded into channels 0 and 2).
        # x*_ref:   (1, c_chunk, HW) native-dtype VMEM chunk (lane-dense).
        # o_ref:    (1, 1, HW) output block, resident across the chunk axis.
        # feat_ref: (NFEAT*P, HW) f32 running [sum1, max1, sum2, max2] partials.
        # fpad_ref: (1, HW + 2*LPAD) f32 flat zero-padded plane (conv stage).
        # acc_ref:  (1, HW) f32 conv accumulator (bounded live range).
        c_idx = pl.program_id(1)
        n_c = pl.num_programs(1)

        # ---- init running reductions (first channel chunk of each batch) ----
        @pl.when(c_idx == 0)
        def _init():
            feat_ref[0 * P:1 * P, :] = jnp.zeros((P, HW), jnp.float32)
            feat_ref[1 * P:2 * P, :] = jnp.full((P, HW), -jnp.inf, jnp.float32)
            feat_ref[2 * P:3 * P, :] = jnp.zeros((P, HW), jnp.float32)
            feat_ref[3 * P:4 * P, :] = jnp.full((P, HW), -jnp.inf, jnp.float32)

        # ---- running channel reduction (native-dtype load, f32 accumulate) ----
        if P == 8:
            def accum_group(row0):
                b1 = x1_ref[0, pl.ds(row0, 8), :].astype(jnp.float32)
                b2 = x2_ref[0, pl.ds(row0, 8), :].astype(jnp.float32)
                # Full-vreg VPU adds/maxes; no per-step sublane collapse.
                feat_ref[0:8, :] = feat_ref[0:8, :] + b1
                feat_ref[8:16, :] = jnp.maximum(feat_ref[8:16, :], b1)
                feat_ref[16:24, :] = feat_ref[16:24, :] + b2
                feat_ref[24:32, :] = jnp.maximum(feat_ref[24:32, :], b2)

            if n_groups <= 16:
                for g in range(n_groups):
                    accum_group(g * 8)
            else:
                def body(g, carry):
                    accum_group(pl.multiple_of(g * 8, 8))
                    return carry
                jax.lax.fori_loop(0, n_groups, body, 0)
        else:
            # Fallback when the chunk is not a multiple of 8 (e.g. tiny C).
            b1 = x1_ref[0].astype(jnp.float32)
            b2 = x2_ref[0].astype(jnp.float32)
            feat_ref[0:1, :] = feat_ref[0:1, :] + jnp.sum(b1, axis=0, keepdims=True)
            feat_ref[1:2, :] = jnp.maximum(feat_ref[1:2, :],
                                           jnp.max(b1, axis=0, keepdims=True))
            feat_ref[2:3, :] = feat_ref[2:3, :] + jnp.sum(b2, axis=0, keepdims=True)
            feat_ref[3:4, :] = jnp.maximum(feat_ref[3:4, :],
                                           jnp.max(b2, axis=0, keepdims=True))

        # ---- 7x7 conv + sigmoid epilogue (last chunk of each batch) ----
        @pl.when(c_idx == n_c - 1)
        def _conv_and_store():
            # Collapse the sublane partials -> four (1, HW) feature planes.
            if P == 8:
                feats = (
                    jnp.sum(feat_ref[0:8, :], axis=0, keepdims=True),
                    jnp.max(feat_ref[8:16, :], axis=0, keepdims=True),
                    jnp.sum(feat_ref[16:24, :], axis=0, keepdims=True),
                    jnp.max(feat_ref[24:32, :], axis=0, keepdims=True),
                )
            else:
                feats = (feat_ref[0:1, :], feat_ref[1:2, :],
                         feat_ref[2:3, :], feat_ref[3:4, :])

            # Column index of every flat pixel.  Exact without vector integer
            # division: f32 quotient plus one correction step.
            idx = jax.lax.broadcasted_iota(jnp.int32, (1, HW), 1)
            q = jnp.floor(idx.astype(jnp.float32) * (1.0 / W)).astype(jnp.int32)
            col = idx - q * W
            col = jnp.where(col < 0, col + W, col)
            col = jnp.where(col >= W, col - W, col)
            # Per-kw column validity masks.  Row validity is handled for free by
            # the zero halo rows of the flat padded plane.
            wmasks = [(col >= PAD - kw) & (col < W + PAD - kw)
                      for kw in range(KSIZE)]

            # Zero the flat halos once; interiors are overwritten per channel.
            fpad_ref[0:1, 0:LPAD] = jnp.zeros((1, LPAD), jnp.float32)
            fpad_ref[0:1, LPAD + HW:] = jnp.zeros((1, LPAD), jnp.float32)

            acc_ref[...] = jnp.zeros_like(acc_ref)
            for c in range(NFEAT):
                # One lane-dense store of the whole plane (no per-row loops).
                fpad_ref[0:1, pl.ds(LPAD, HW)] = feats[c]
                for kw in range(KSIZE):
                    # Tap (kh, kw) of output pixel i reads flat position
                    # i + kh*W + kw of the padded plane.
                    t = w_ref[c * KSIZE * KSIZE + kw] * fpad_ref[0:1, pl.ds(kw, HW)]
                    for kh in range(1, KSIZE):
                        wgt = w_ref[c * KSIZE * KSIZE + kh * KSIZE + kw]
                        t = t + wgt * fpad_ref[0:1, pl.ds(kh * W + kw, HW)]
                    acc_ref[...] = acc_ref[...] + jnp.where(wmasks[kw], t, 0.0)

            # Single lane-dense output store.
            o_ref[0] = jax.nn.sigmoid(acc_ref[...]).astype(o_ref.dtype)

    return kernel


def _vmem_capacity_bytes():
    try:
        info = pltpu.get_tpu_info()
        cap = getattr(info, "vmem_capacity_bytes", None)
        if cap:
            return int(cap)
    except Exception:
        pass
    return 64 * 1024 * 1024  # conservative default (v7x per-TensorCore VMEM)


def _batch_dim_semantics(batch):
    """CORE_PARALLEL only where it actually shards (v7x's 2 TCs)."""
    try:
        kind = jax.devices()[0].device_kind.lower()
    except Exception:
        kind = ""
    if ("v7" in kind or "7x" in kind) and batch % 2 == 0:
        return pltpu.CORE_PARALLEL
    return pltpu.PARALLEL


def _choose_c_chunk(C, HW, itemsize, budget_bytes):
    """Largest divisor of C whose (chunk, HW) block fits the per-input budget,
    preferring multiples of 8 (clean sublane tiling / partial reductions)."""
    if C * HW * itemsize <= budget_bytes:
        return C
    fallback = 1
    for d in range(C - 1, 0, -1):
        if C % d != 0 or d * HW * itemsize > budget_bytes:
            continue
        if d % 8 == 0:
            return d
        fallback = max(fallback, d)
    return fallback


def cross_modal_spatial_attention(x1, x2, conv_w, weight_msi=None, weight_sar=None,
                                  *, force_c_chunk=None):
    """x1, x2: (B, C, H, W); conv_w: (1, 4, 7, 7) OIHW.  Returns (B, 1, H, W).

    weight_msi / weight_sar are dead code in the reference forward (their
    softmax-weighted concat is immediately overwritten), so they are unused.
    """
    del weight_msi, weight_sar
    B, C, H, W = x1.shape
    HW = H * W
    out_dtype = x1.dtype
    itemsize = jnp.dtype(x1.dtype).itemsize

    cap = _vmem_capacity_bytes()
    budget = min(8 * 1024 * 1024, cap // 16)        # per-input-chunk VMEM budget
    if force_c_chunk is not None:
        assert C % force_c_chunk == 0
        c_chunk = int(force_c_chunk)
    else:
        c_chunk = _choose_c_chunk(C, HW, itemsize, budget)
    n_c = C // c_chunk

    # Sublane-partial depth for the running reductions (epilogue collapses 8->1).
    P = 8 if (c_chunk % 8 == 0 and NFEAT * 8 * HW * 4 <= cap // 8) else 1

    # Fold 1/C into the conv weights of the avg channels (0 and 2): the kernel
    # keeps running sums instead of means.
    scale = jnp.array([1.0 / C, 1.0, 1.0 / C, 1.0], dtype=jnp.float32)
    w_flat = (conv_w.astype(jnp.float32).reshape(NFEAT, KSIZE, KSIZE)
              * scale[:, None, None]).reshape(-1)

    # Lane-dense flat views in the native dtype (no extra HBM up-cast pass).
    x1f = x1.reshape(B, C, HW)
    x2f = x2.reshape(B, C, HW)

    # Deeper input pipelining when there are enough chunk steps to hide the
    # per-batch conv tail behind the next chunks' / next batch's DMAs.
    n_buf = 3 if n_c >= 3 else 2
    if n_buf == 3:
        x_spec = pl.BlockSpec((1, c_chunk, HW), lambda b, c: (b, c, 0),
                              pipeline_mode=pl.Buffered(3))
    else:
        x_spec = pl.BlockSpec((1, c_chunk, HW), lambda b, c: (b, c, 0))

    LPAD = PAD * W + PAD
    scratch_shapes = [
        pltpu.VMEM((NFEAT * P, HW), jnp.float32),       # running sum/max partials
        pltpu.VMEM((1, HW + 2 * LPAD), jnp.float32),    # flat zero-padded plane
        pltpu.VMEM((1, HW), jnp.float32),               # conv accumulator
    ]

    # Explicit VMEM budget: inputs (multi-buffered) + output + scratch + margin.
    needed = (2 * n_buf * c_chunk * HW * itemsize
              + 2 * HW * jnp.dtype(out_dtype).itemsize
              + (NFEAT * P + 2) * HW * 4 + (HW + 2 * LPAD) * 4)
    vmem_limit = int(min(int(0.9 * cap),
                         max(needed + needed // 2, 32 * 1024 * 1024)))

    grid_spec = pltpu.PrefetchScalarGridSpec(
        num_scalar_prefetch=0,
        grid=(B, n_c),
        in_specs=[
            # Conv weights: resident SMEM (constant block index -> no re-DMA).
            pl.BlockSpec(memory_space=pltpu.MemorySpace.SMEM),
            x_spec,                                      # x1 chunk
            x_spec,                                      # x2 chunk
        ],
        out_specs=pl.BlockSpec((1, 1, HW), lambda b, c: (b, 0, 0)),
        scratch_shapes=scratch_shapes,
    )

    kernel = _make_kernel(H, W, c_chunk, P)

    out_flat = pl.pallas_call(
        kernel,
        out_shape=jax.ShapeDtypeStruct((B, 1, HW), out_dtype),
        grid_spec=grid_spec,
        compiler_params=pltpu.CompilerParams(
            dimension_semantics=(_batch_dim_semantics(B), pltpu.ARBITRARY),
            vmem_limit_bytes=vmem_limit),
        cost_estimate=pl.CostEstimate(
            flops=int(B * HW * (4 * C + 2 * NFEAT * KSIZE * KSIZE)),
            transcendentals=int(B * HW),
            bytes_accessed=int(2 * B * C * HW * itemsize
                               + B * HW * jnp.dtype(out_dtype).itemsize
                               + NFEAT * KSIZE * KSIZE * 4)),
    )(w_flat, x1f, x2f)

    return out_flat.reshape(B, 1, H, W)


def _reference(x1, x2, conv_w):
    x1 = x1.astype(jnp.float32)
    x2 = x2.astype(jnp.float32)
    avg1 = jnp.mean(x1, axis=1, keepdims=True)
    max1 = jnp.max(x1, axis=1, keepdims=True)
    avg2 = jnp.mean(x2, axis=1, keepdims=True)
    max2 = jnp.max(x2, axis=1, keepdims=True)
    x = jnp.concatenate([avg1, max1, avg2, max2], axis=1)
    y = jax.lax.conv_general_dilated(
        x, conv_w.astype(jnp.float32), window_strides=(1, 1),
        padding=[(PAD, PAD), (PAD, PAD)],
        dimension_numbers=("NCHW", "OIHW", "NCHW"))
    return jax.nn.sigmoid(y)


if __name__ == "__main__":
    key = jax.random.PRNGKey(0)
    k1, k2, k3 = jax.random.split(key, 3)

    B, C, H, W = 2, 32, 16, 16
    x1 = jax.random.normal(k1, (B, C, H, W), dtype=jnp.float32)
    x2 = jax.random.normal(k2, (B, C, H, W), dtype=jnp.float32)

    # Deterministic synthetic parameters (shapes from __init__):
    conv_w = 0.05 * jax.random.normal(k3, (1, NFEAT, KSIZE, KSIZE), dtype=jnp.float32)
    weight_msi = jnp.ones((1,), dtype=jnp.float32)   # dead code in the forward
    weight_sar = jnp.ones((1,), dtype=jnp.float32)

    ref = jax.block_until_ready(_reference(x1, x2, conv_w))

    # 1) Default chunking (single chunk, 8-row sublane partials).
    out = jax.block_until_ready(
        cross_modal_spatial_attention(x1, x2, conv_w, weight_msi, weight_sar))
    np.testing.assert_allclose(np.asarray(out), np.asarray(ref), atol=1e-4, rtol=1e-4)

    # 2) Multi-chunk running reduction + Buffered(3) input pipeline.
    out2 = jax.block_until_ready(
        cross_modal_spatial_attention(x1, x2, conv_w, force_c_chunk=8))
    np.testing.assert_allclose(np.asarray(out2), np.asarray(ref), atol=1e-4, rtol=1e-4)

    # 3) Native-dtype (bf16) DMA path; f32 accumulation inside the kernel.
    out_bf = jax.block_until_ready(
        cross_modal_spatial_attention(x1.astype(jnp.bfloat16),
                                      x2.astype(jnp.bfloat16), conv_w))
    ref_bf = jax.block_until_ready(
        _reference(x1.astype(jnp.bfloat16), x2.astype(jnp.bfloat16), conv_w))
    np.testing.assert_allclose(np.asarray(out_bf.astype(jnp.float32)),
                               np.asarray(ref_bf), atol=1e-2, rtol=1e-2)

    # 4) C not a multiple of 8 (single-row running-reduction fallback).
    out4 = jax.block_until_ready(
        cross_modal_spatial_attention(x1[:, :4], x2[:, :4], conv_w))
    ref4 = jax.block_until_ready(_reference(x1[:, :4], x2[:, :4], conv_w))
    np.testing.assert_allclose(np.asarray(out4), np.asarray(ref4), atol=1e-4, rtol=1e-4)

    print("KERNEL_OK")
</pallas_src>

<mosaic_0001>
module attributes {stable_mosaic.version = 11 : i64} {
  func.func @kernel(%arg0: i32, %arg1: i32, %arg2: memref<196xf32, #tpu.memory_space<smem>>, %arg3: memref<1x32x256xf32, #tpu.memory_space<vmem>>, %arg4: memref<1x32x256xf32, #tpu.memory_space<vmem>>, %arg5: memref<1x1x256xf32, #tpu.memory_space<vmem>>, %arg6: memref<32x256xf32, #tpu.memory_space<vmem>>, %arg7: memref<1x358xf32, #tpu.memory_space<vmem>>, %arg8: memref<1x256xf32, #tpu.memory_space<vmem>>) attributes {dimension_semantics = [#tpu.dimension_semantics<parallel>, #tpu.dimension_semantics<arbitrary>], iteration_bounds = array<i64: 2, 1>, scalar_prefetch = 0 : i64, scratch_operands = 3 : i64, tpu.core_type = #tpu.core_type<tc>, window_params = [{transform_indices = @transform_0, window_bounds = array<i64: 196>}, {transform_indices = @transform_1, window_bounds = array<i64: 1, 32, 256>}, {transform_indices = @transform_2, window_bounds = array<i64: 1, 32, 256>}, {transform_indices = @transform_3, window_bounds = array<i64: 1, 1, 256>}]} {
    %c0_i32 = arith.constant 0 : i32
    %0 = arith.cmpi eq, %arg1, %c0_i32 : i32
    %1 = arith.extui %0 : i1 to i32
    %c0_i32_0 = arith.constant 0 : i32
    %2 = arith.cmpi ne, %1, %c0_i32_0 : i32
    scf.if %2 {
      %cst = arith.constant 0.000000e+00 : f32
      %70 = vector.broadcast %cst : f32 to vector<8x256xf32>
      %c0_87 = arith.constant 0 : index
      %c0_88 = arith.constant 0 : index
      %71 = vector.load %arg6[%c0_87, %c0_88] : memref<32x256xf32, #tpu.memory_space<vmem>>, vector<8x256xf32>
      tpu.vector_store %arg6[%c0_87, %c0_88], %70 {strides = array<i32>} : memref<32x256xf32, #tpu.memory_space<vmem>>, vector<8x256xf32>,
      %cst_89 = arith.constant 0xFF800000 : f32
      %72 = vector.broadcast %cst_89 : f32 to vector<8x256xf32>
      %c8_90 = arith.constant 8 : index
      %c0_91 = arith.constant 0 : index
      %73 = vector.load %arg6[%c8_90, %c0_91] : memref<32x256xf32, #tpu.memory_space<vmem>>, vector<8x256xf32>
      tpu.vector_store %arg6[%c8_90, %c0_91], %72 {strides = array<i32>} : memref<32x256xf32, #tpu.memory_space<vmem>>, vector<8x256xf32>,
      %cst_92 = arith.constant 0.000000e+00 : f32
      %74 = vector.broadcast %cst_92 : f32 to vector<8x256xf32>
      %c16_93 = arith.constant 16 : index
      %c0_94 = arith.constant 0 : index
      %75 = vector.load %arg6[%c16_93, %c0_94] : memref<32x256xf32, #tpu.memory_space<vmem>>, vector<8x256xf32>
      tpu.vector_store %arg6[%c16_93, %c0_94], %74 {strides = array<i32>} : memref<32x256xf32, #tpu.memory_space<vmem>>, vector<8x256xf32>,
      %cst_95 = arith.constant 0xFF800000 : f32
      %76 = vector.broadcast %cst_95 : f32 to vector<8x256xf32>
      %c24_96 = arith.constant 24 : index
      %c0_97 = arith.constant 0 : index
      %77 = vector.load %arg6[%c24_96, %c0_97] : memref<32x256xf32, #tpu.memory_space<vmem>>, vector<8x256xf32>
      tpu.vector_store %arg6[%c24_96, %c0_97], %76 {strides = array<i32>} : memref<32x256xf32, #tpu.memory_space<vmem>>, vector<8x256xf32>,
    } else {
    }
    %c0 = arith.constant 0 : index
    %c0_1 = arith.constant 0 : index
    %c0_2 = arith.constant 0 : index
    %3 = vector.load %arg3[%c0, %c0_1, %c0_2] : memref<1x32x256xf32, #tpu.memory_space<vmem>>, vector<1x8x256xf32>
    %4 = vector.shape_cast %3 : vector<1x8x256xf32> to vector<8x256xf32>
    %c0_3 = arith.constant 0 : index
    %c0_4 = arith.constant 0 : index
    %c0_5 = arith.constant 0 : index
    %5 = vector.load %arg4[%c0_3, %c0_4, %c0_5] : memref<1x32x256xf32, #tpu.memory_space<vmem>>, vector<1x8x256xf32>
    %6 = vector.shape_cast %5 : vector<1x8x256xf32> to vector<8x256xf32>
    %c0_6 = arith.constant 0 : index
    %c0_7 = arith.constant 0 : index
    %7 = vector.load %arg6[%c0_6, %c0_7] : memref<32x256xf32, #tpu.memory_space<vmem>>, vector<8x256xf32>
    %8 = arith.addf %7, %4 : vector<8x256xf32>
    %c0_8 = arith.constant 0 : index
    %c0_9 = arith.constant 0 : index
    %9 = vector.load %arg6[%c0_8, %c0_9] : memref<32x256xf32, #tpu.memory_space<vmem>>, vector<8x256xf32>
    tpu.vector_store %arg6[%c0_8, %c0_9], %8 {strides = array<i32>} : memref<32x256xf32, #tpu.memory_space<vmem>>, vector<8x256xf32>,
    %c8 = arith.constant 8 : index
    %c0_10 = arith.constant 0 : index
    %10 = vector.load %arg6[%c8, %c0_10] : memref<32x256xf32, #tpu.memory_space<vmem>>, vector<8x256xf32>
    %11 = arith.maximumf %10, %4 : vector<8x256xf32>
    %c8_11 = arith.constant 8 : index
    %c0_12 = arith.constant 0 : index
    %12 = vector.load %arg6[%c8_11, %c0_12] : memref<32x256xf32, #tpu.memory_space<vmem>>, vector<8x256xf32>
    tpu.vector_store %arg6[%c8_11, %c0_12], %11 {strides = array<i32>} : memref<32x256xf32, #tpu.memory_space<vmem>>, vector<8x256xf32>,
    %c16 = arith.constant 16 : index
    %c0_13 = arith.constant 0 : index
    %13 = vector.load %arg6[%c16, %c0_13] : memref<32x256xf32, #tpu.memory_space<vmem>>, vector<8x256xf32>
    %14 = arith.addf %13, %6 : vector<8x256xf32>
    %c16_14 = arith.constant 16 : index
    %c0_15 = arith.constant 0 : index
    %15 = vector.load %arg6[%c16_14, %c0_15] : memref<32x256xf32, #tpu.memory_space<vmem>>, vector<8x256xf32>
    tpu.vector_store %arg6[%c16_14, %c0_15], %14 {strides = array<i32>} : memref<32x256xf32, #tpu.memory_space<vmem>>, vector<8x256xf32>,
    %c24 = arith.constant 24 : index
    %c0_16 = arith.constant 0 : index
    %16 = vector.load %arg6[%c24, %c0_16] : memref<32x256xf32, #tpu.memory_space<vmem>>, vector<8x256xf32>
    %17 = arith.maximumf %16, %6 : vector<8x256xf32>
    %c24_17 = arith.constant 24 : index
    %c0_18 = arith.constant 0 : index
    %18 = vector.load %arg6[%c24_17, %c0_18] : memref<32x256xf32, #tpu.memory_space<vmem>>, vector<8x256xf32>
    tpu.vector_store %arg6[%c24_17, %c0_18], %17 {strides = array<i32>} : memref<32x256xf32, #tpu.memory_space<vmem>>, vector<8x256xf32>,
    %c0_19 = arith.constant 0 : index
    %c8_20 = arith.constant 8 : index
    %c0_21 = arith.constant 0 : index
    %19 = vector.load %arg3[%c0_19, %c8_20, %c0_21] : memref<1x32x256xf32, #tpu.memory_space<vmem>>, vector<1x8x256xf32>
    %20 = vector.shape_cast %19 : vector<1x8x256xf32> to vector<8x256xf32>
    %c0_22 = arith.constant 0 : index
    %c8_23 = arith.constant 8 : index
    %c0_24 = arith.constant 0 : index
    %21 = vector.load %arg4[%c0_22, %c8_23, %c0_24] : memref<1x32x256xf32, #tpu.memory_space<vmem>>, vector<1x8x256xf32>
    %22 = vector.shape_cast %21 : vector<1x8x256xf32> to vector<8x256xf32>
    %c0_25 = arith.constant 0 : index
    %c0_26 = arith.constant 0 : index
    %23 = vector.load %arg6[%c0_25, %c0_26] : memref<32x256xf32, #tpu.memory_space<vmem>>, vector<8x256xf32>
    %24 = arith.addf %23, %20 : vector<8x256xf32>
    %c0_27 = arith.constant 0 : index
    %c0_28 = arith.constant 0 : index
    %25 = vector.load %arg6[%c0_27, %c0_28] : memref<32x256xf32, #tpu.memory_space<vmem>>, vector<8x256xf32>
    tpu.vector_store %arg6[%c0_27, %c0_28], %24 {strides = array<i32>} : memref<32x256xf32, #tpu.memory_space<vmem>>, vector<8x256xf32>,
    %c8_29 = arith.constant 8 : index
    %c0_30 = arith.constant 0 : index
    %26 = vector.load %arg6[%c8_29, %c0_30] : memref<32x256xf32, #tpu.memory_space<vmem>>, vector<8x256xf32>
    %27 = arith.maximumf %26, %20 : vector<8x256xf32>
    %c8_31 = arith.constant 8 : index
    %c0_32 = arith.constant 0 : index
    %28 = vector.load %arg6[%c8_31, %c0_32] : memref<32x256xf32, #tpu.memory_space<vmem>>, vector<8x256xf32>
    tpu.vector_store %arg6[%c8_31, %c0_32], %27 {strides = array<i32>} : memref<32x256xf32, #tpu.memory_space<vmem>>, vector<8x256xf32>,
    %c16_33 = arith.constant 16 : index
    %c0_34 = arith.constant 0 : index
    %29 = vector.load %arg6[%c16_33, %c0_34] : memref<32x256xf32, #tpu.memory_space<vmem>>, vector<8x256xf32>
    %30 = arith.addf %29, %22 : vector<8x256xf32>
    %c16_35 = arith.constant 16 : index
    %c0_36 = arith.constant 0 : index
    %31 = vector.load %arg6[%c16_35, %c0_36] : memref<32x256xf32, #tpu.memory_space<vmem>>, vector<8x256xf32>
    tpu.vector_store %arg6[%c16_35, %c0_36], %30 {strides = array<i32>} : memref<32x256xf32, #tpu.memory_space<vmem>>, vector<8x256xf32>,
    %c24_37 = arith.constant 24 : index
    %c0_38 = arith.constant 0 : index
    %32 = vector.load %arg6[%c24_37, %c0_38] : memref<32x256xf32, #tpu.memory_space<vmem>>, vector<8x256xf32>
    %33 = arith.maximumf %32, %22 : vector<8x256xf32>
    %c24_39 = arith.constant 24 : index
    %c0_40 = arith.constant 0 : index
    %34 = vector.load %arg6[%c24_39, %c0_40] : memref<32x256xf32, #tpu.memory_space<vmem>>, vector<8x256xf32>
    tpu.vector_store %arg6[%c24_39, %c0_40], %33 {strides = array<i32>} : memref<32x256xf32, #tpu.memory_space<vmem>>, vector<8x256xf32>,
    %c0_41 = arith.constant 0 : index
    %c16_42 = arith.constant 16 : index
    %c0_43 = arith.constant 0 : index
    %35 = vector.load %arg3[%c0_41, %c16_42, %c0_43] : memref<1x32x256xf32, #tpu.memory_space<vmem>>, vector<1x8x256xf32>
    %36 = vector.shape_cast %35 : vector<1x8x256xf32> to vector<8x256xf32>
    %c0_44 = arith.constant 0 : index
    %c16_45 = arith.constant 16 : index
    %c0_46 = arith.constant 0 : index
    %37 = vector.load %arg4[%c0_44, %c16_45, %c0_46] : memref<1x32x256xf32, #tpu.memory_space<vmem>>, vector<1x8x256xf32>
    %38 = vector.shape_cast %37 : vector<1x8x256xf32> to vector<8x256xf32>
    %c0_47 = arith.constant 0 : index
    %c0_48 = arith.constant 0 : index
    %39 = vector.load %arg6[%c0_47, %c0_48] : memref<32x256xf32, #tpu.memory_space<vmem>>, vector<8x256xf32>
    %40 = arith.addf %39, %36 : vector<8x256xf32>
    %c0_49 = arith.constant 0 : index
    %c0_50 = arith.constant 0 : index
    %41 = vector.load %arg6[%c0_49, %c0_50] : memref<32x256xf32, #tpu.memory_space<vmem>>, vector<8x256xf32>
    tpu.vector_store %arg6[%c0_49, %c0_50], %40 {strides = array<i32>} : memref<32x256xf32, #tpu.memory_space<vmem>>, vector<8x256xf32>,
    %c8_51 = arith.constant 8 : index
    %c0_52 = arith.constant 0 : index
    %42 = vector.load %arg6[%c8_51, %c0_52] : memref<32x256xf32, #tpu.memory_space<vmem>>, vector<8x256xf32>
    %43 = arith.maximumf %42, %36 : vector<8x256xf32>
    %c8_53 = arith.constant 8 : index
    %c0_54 = arith.constant 0 : index
    %44 = vector.load %arg6[%c8_53, %c0_54] : memref<32x256xf32, #tpu.memory_space<vmem>>, vector<8x256xf32>
    tpu.vector_store %arg6[%c8_53, %c0_54], %43 {strides = array<i32>} : memref<32x256xf32, #tpu.memory_space<vmem>>, vector<8x256xf32>,
    %c16_55 = arith.constant 16 : index
    %c0_56 = arith.constant 0 : index
    %45 = vector.load %arg6[%c16_55, %c0_56] : memref<32x256xf32, #tpu.memory_space<vmem>>, vector<8x256xf32>
    %46 = arith.addf %45, %38 : vector<8x256xf32>
    %c16_57 = arith.constant 16 : index
    %c0_58 = arith.constant 0 : index
    %47 = vector.load %arg6[%c16_57, %c0_58] : memref<32x256xf32, #tpu.memory_space<vmem>>, vector<8x256xf32>
    tpu.vector_store %arg6[%c16_57, %c0_58], %46 {strides = array<i32>} : memref<32x256xf32, #tpu.memory_space<vmem>>, vector<8x256xf32>,
    %c24_59 = arith.constant 24 : index
    %c0_60 = arith.constant 0 : index
    %48 = vector.load %arg6[%c24_59, %c0_60] : memref<32x256xf32, #tpu.memory_space<vmem>>, vector<8x256xf32>
    %49 = arith.maximumf %48, %38 : vector<8x256xf32>
    %c24_61 = arith.constant 24 : index
    %c0_62 = arith.constant 0 : index
    %50 = vector.load %arg6[%c24_61, %c0_62] : memref<32x256xf32, #tpu.memory_space<vmem>>, vector<8x256xf32>
    tpu.vector_store %arg6[%c24_61, %c0_62], %49 {strides = array<i32>} : memref<32x256xf32, #tpu.memory_space<vmem>>, vector<8x256xf32>,
    %c0_63 = arith.constant 0 : index
    %c24_64 = arith.constant 24 : index
    %c0_65 = arith.constant 0 : index
    %51 = vector.load %arg3[%c0_63, %c24_64, %c0_65] : memref<1x32x256xf32, #tpu.memory_space<vmem>>, vector<1x8x256xf32>
    %52 = vector.shape_cast %51 : vector<1x8x256xf32> to vector<8x256xf32>
    %c0_66 = arith.constant 0 : index
    %c24_67 = arith.constant 24 : index
    %c0_68 = arith.constant 0 : index
    %53 = vector.load %arg4[%c0_66, %c24_67, %c0_68] : memref<1x32x256xf32, #tpu.memory_space<vmem>>, vector<1x8x256xf32>
    %54 = vector.shape_cast %53 : vector<1x8x256xf32> to vector<8x256xf32>
    %c0_69 = arith.constant 0 : index
    %c0_70 = arith.constant 0 : index
    %55 = vector.load %arg6[%c0_69, %c0_70] : memref<32x256xf32, #tpu.memory_space<vmem>>, vector<8x256xf32>
    %56 = arith.addf %55, %52 : vector<8x256xf32>
    %c0_71 = arith.constant 0 : index
    %c0_72 = arith.constant 0 : index
    %57 = vector.load %arg6[%c0_71, %c0_72] : memref<32x256xf32, #tpu.memory_space<vmem>>, vector<8x256xf32>
    tpu.vector_store %arg6[%c0_71, %c0_72], %56 {strides = array<i32>} : memref<32x256xf32, #tpu.memory_space<vmem>>, vector<8x256xf32>,
    %c8_73 = arith.constant 8 : index
    %c0_74 = arith.constant 0 : index
    %58 = vector.load %arg6[%c8_73, %c0_74] : memref<32x256xf32, #tpu.memory_space<vmem>>, vector<8x256xf32>
    %59 = arith.maximumf %58, %52 : vector<8x256xf32>
    %c8_75 = arith.constant 8 : index
    %c0_76 = arith.constant 0 : index
    %60 = vector.load %arg6[%c8_75, %c0_76] : memref<32x256xf32, #tpu.memory_space<vmem>>, vector<8x256xf32>
    tpu.vector_store %arg6[%c8_75, %c0_76], %59 {strides = array<i32>} : memref<32x256xf32, #tpu.memory_space<vmem>>, vector<8x256xf32>,
    %c16_77 = arith.constant 16 : index
    %c0_78 = arith.constant 0 : index
    %61 = vector.load %arg6[%c16_77, %c0_78] : memref<32x256xf32, #tpu.memory_space<vmem>>, vector<8x256xf32>
    %62 = arith.addf %61, %54 : vector<8x256xf32>
    %c16_79 = arith.constant 16 : index
    %c0_80 = arith.constant 0 : index
    %63 = vector.load %arg6[%c16_79, %c0_80] : memref<32x256xf32, #tpu.memory_space<vmem>>, vector<8x256xf32>
    tpu.vector_store %arg6[%c16_79, %c0_80], %62 {strides = array<i32>} : memref<32x256xf32, #tpu.memory_space<vmem>>, vector<8x256xf32>,
    %c24_81 = arith.constant 24 : index
    %c0_82 = arith.constant 0 : index
    %64 = vector.load %arg6[%c24_81, %c0_82] : memref<32x256xf32, #tpu.memory_space<vmem>>, vector<8x256xf32>
    %65 = arith.maximumf %64, %54 : vector<8x256xf32>
    %c24_83 = arith.constant 24 : index
    %c0_84 = arith.constant 0 : index
    %66 = vector.load %arg6[%c24_83, %c0_84] : memref<32x256xf32, #tpu.memory_space<vmem>>, vector<8x256xf32>
    tpu.vector_store %arg6[%c24_83, %c0_84], %65 {strides = array<i32>} : memref<32x256xf32, #tpu.memory_space<vmem>>, vector<8x256xf32>,
    %c0_i32_85 = arith.constant 0 : i32
    %67 = arith.cmpi eq, %arg1, %c0_i32_85 : i32
    %68 = arith.extui %67 : i1 to i32
    %c0_i32_86 = arith.constant 0 : i32
    %69 = arith.cmpi ne, %68, %c0_i32_86 : i32
    scf.if %69 {
      %c0_87 = arith.constant 0 : index
      %c0_88 = arith.constant 0 : index
      %70 = vector.load %arg6[%c0_87, %c0_88] : memref<32x256xf32, #tpu.memory_space<vmem>>, vector<8x256xf32>
      %cst = arith.constant dense<0.000000e+00> : vector<256xf32>
      %71 = vector.multi_reduction <add>, %70, %cst [0] : vector<8x256xf32> to vector<256xf32>
      %72 = vector.shape_cast %71 : vector<256xf32> to vector<1x256xf32>
      %c8_89 = arith.constant 8 : index
      %c0_90 = arith.constant 0 : index
      %73 = vector.load %arg6[%c8_89, %c0_90] : memref<32x256xf32, #tpu.memory_space<vmem>>, vector<8x256xf32>
      %cst_91 = arith.constant dense<0xFF800000> : vector<256xf32>
      %74 = vector.multi_reduction <maximumf>, %73, %cst_91 [0] : vector<8x256xf32> to vector<256xf32>
      %75 = vector.shape_cast %74 : vector<256xf32> to vector<1x256xf32>
      %c16_92 = arith.constant 16 : index
      %c0_93 = arith.constant 0 : index
      %76 = vector.load %arg6[%c16_92, %c0_93] : memref<32x256xf32, #tpu.memory_space<vmem>>, vector<8x256xf32>
      %cst_94 = arith.constant dense<0.000000e+00> : vector<256xf32>
      %77 = vector.multi_reduction <add>, %76, %cst_94 [0] : vector<8x256xf32> to vector<256xf32>
      %78 = vector.shape_cast %77 : vector<256xf32> to vector<1x256xf32>
      %c24_95 = arith.constant 24 : index
      %c0_96 = arith.constant 0 : index
      %79 = vector.load %arg6[%c24_95, %c0_96] : memref<32x256xf32, #tpu.memory_space<vmem>>, vector<8x256xf32>
      %cst_97 = arith.constant dense<0xFF800000> : vector<256xf32>
      %80 = vector.multi_reduction <maximumf>, %79, %cst_97 [0] : vector<8x256xf32> to vector<256xf32>
      %81 = vector.shape_cast %80 : vector<256xf32> to vector<1x256xf32>
      %82 = tpu.iota {dimensions = array<i32: 1>} : vector<1x256xi32>
      %83 = arith.sitofp %82 : vector<1x256xi32> to vector<1x256xf32>
      %cst_98 = arith.constant 6.250000e-02 : f32
      %84 = vector.broadcast %cst_98 : f32 to vector<1x256xf32>
      %85 = arith.mulf %83, %84 : vector<1x256xf32>
      %86 = math.floor %85 : vector<1x256xf32>
      %87 = arith.fptosi %86 : vector<1x256xf32> to vector<1x256xi32>
      %c16_i32 = arith.constant 16 : i32
      %88 = vector.broadcast %c16_i32 : i32 to vector<1x256xi32>
      %89 = arith.muli %87, %88 : vector<1x256xi32>
      %90 = arith.subi %82, %89 : vector<1x256xi32>
      %c0_i32_99 = arith.constant 0 : i32
      %91 = vector.broadcast %c0_i32_99 : i32 to vector<1x256xi32>
      %92 = arith.cmpi slt, %90, %91 : vector<1x256xi32>
      %c16_i32_100 = arith.constant 16 : i32
      %93 = vector.broadcast %c16_i32_100 : i32 to vector<1x256xi32>
      %94 = arith.addi %90, %93 : vector<1x256xi32>
      %95 = arith.select %92, %94, %90 : vector<1x256xi1>, vector<1x256xi32>
      %c16_i32_101 = arith.constant 16 : i32
      %96 = vector.broadcast %c16_i32_101 : i32 to vector<1x256xi32>
      %97 = arith.cmpi sge, %95, %96 : vector<1x256xi32>
      %c16_i32_102 = arith.constant 16 : i32
      %98 = vector.broadcast %c16_i32_102 : i32 to vector<1x256xi32>
      %99 = arith.subi %95, %98 : vector<1x256xi32>
      %100 = arith.select %97, %99, %95 : vector<1x256xi1>, vector<1x256xi32>
      %c3_i32 = arith.constant 3 : i32
      %101 = vector.broadcast %c3_i32 : i32 to vector<1x256xi32>
      %102 = arith.cmpi sge, %100, %101 : vector<1x256xi32>
      %c19_i32 = arith.constant 19 : i32
      %103 = vector.broadcast %c19_i32 : i32 to vector<1x256xi32>
      %104 = arith.cmpi slt, %100, %103 : vector<1x256xi32>
      %105 = arith.andi %102, %104 : vector<1x256xi1>
      %c2_i32 = arith.constant 2 : i32
      %106 = vector.broadcast %c2_i32 : i32 to vector<1x256xi32>
      %107 = arith.cmpi sge, %100, %106 : vector<1x256xi32>
      %c18_i32 = arith.constant 18 : i32
      %108 = vector.broadcast %c18_i32 : i32 to vector<1x256xi32>
      %109 = arith.cmpi slt, %100, %108 : vector<1x256xi32>
      %110 = arith.andi %107, %109 : vector<1x256xi1>
      %c1_i32 = arith.constant 1 : i32
      %111 = vector.broadcast %c1_i32 : i32 to vector<1x256xi32>
      %112 = arith.cmpi sge, %100, %111 : vector<1x256xi32>
      %c17_i32 = arith.constant 17 : i32
      %113 = vector.broadcast %c17_i32 : i32 to vector<1x256xi32>
      %114 = arith.cmpi slt, %100, %113 : vector<1x256xi32>
      %115 = arith.andi %112, %114 : vector<1x256xi1>
      %c0_i32_103 = arith.constant 0 : i32
      %116 = vector.broadcast %c0_i32_103 : i32 to vector<1x256xi32>
      %117 = arith.cmpi sge, %100, %116 : vector<1x256xi32>
      %c16_i32_104 = arith.constant 16 : i32
      %118 = vector.broadcast %c16_i32_104 : i32 to vector<1x256xi32>
      %119 = arith.cmpi slt, %100, %118 : vector<1x256xi32>
      %120 = arith.andi %117, %119 : vector<1x256xi1>
      %c-1_i32 = arith.constant -1 : i32
      %121 = vector.broadcast %c-1_i32 : i32 to vector<1x256xi32>
      %122 = arith.cmpi sge, %100, %121 : vector<1x256xi32>
      %c15_i32 = arith.constant 15 : i32
      %123 = vector.broadcast %c15_i32 : i32 to vector<1x256xi32>
      %124 = arith.cmpi slt, %100, %123 : vector<1x256xi32>
      %125 = arith.andi %122, %124 : vector<1x256xi1>
      %c-2_i32 = arith.constant -2 : i32
      %126 = vector.broadcast %c-2_i32 : i32 to vector<1x256xi32>
      %127 = arith.cmpi sge, %100, %126 : vector<1x256xi32>
      %c14_i32 = arith.constant 14 : i32
      %128 = vector.broadcast %c14_i32 : i32 to vector<1x256xi32>
      %129 = arith.cmpi slt, %100, %128 : vector<1x256xi32>
      %130 = arith.andi %127, %129 : vector<1x256xi1>
      %c-3_i32 = arith.constant -3 : i32
      %131 = vector.broadcast %c-3_i32 : i32 to vector<1x256xi32>
      %132 = arith.cmpi sge, %100, %131 : vector<1x256xi32>
      %c13_i32 = arith.constant 13 : i32
      %133 = vector.broadcast %c13_i32 : i32 to vector<1x256xi32>
      %134 = arith.cmpi slt, %100, %133 : vector<1x256xi32>
      %135 = arith.andi %132, %134 : vector<1x256xi1>
      %cst_105 = arith.constant 0.000000e+00 : f32
      %136 = vector.broadcast %cst_105 : f32 to vector<1x51xf32>
      %c0_106 = arith.constant 0 : index
      %c0_107 = arith.constant 0 : index
      %137 = vector.load %arg7[%c0_106, %c0_107] : memref<1x358xf32, #tpu.memory_space<vmem>>, vector<1x51xf32>
      tpu.vector_store %arg7[%c0_106, %c0_107], %136 {strides = array<i32>} : memref<1x358xf32, #tpu.memory_space<vmem>>, vector<1x51xf32>,
      %cst_108 = arith.constant 0.000000e+00 : f32
      %138 = vector.broadcast %cst_108 : f32 to vector<1x51xf32>
      %c0_109 = arith.constant 0 : index
      %c307 = arith.constant 307 : index
      %139 = vector.load %arg7[%c0_109, %c307] : memref<1x358xf32, #tpu.memory_space<vmem>>, vector<1x51xf32>
      tpu.vector_store %arg7[%c0_109, %c307], %138 {strides = array<i32>} : memref<1x358xf32, #tpu.memory_space<vmem>>, vector<1x51xf32>,
      %cst_110 = arith.constant 0.000000e+00 : f32
      %140 = vector.broadcast %cst_110 : f32 to vector<1x256xf32>
      %c0_111 = arith.constant 0 : index
      %c0_112 = arith.constant 0 : index
      %141 = vector.load %arg8[%c0_111, %c0_112] : memref<1x256xf32, #tpu.memory_space<vmem>>, vector<1x256xf32>
      tpu.vector_store %arg8[%c0_111, %c0_112], %140 {strides = array<i32>} : memref<1x256xf32, #tpu.memory_space<vmem>>, vector<1x256xf32>,
      %c0_113 = arith.constant 0 : index
      %c51 = arith.constant 51 : index
      %142 = vector.load %arg7[%c0_113, %c51] : memref<1x358xf32, #tpu.memory_space<vmem>>, vector<1x256xf32>
      tpu.vector_store %arg7[%c0_113, %c51], %72 {strides = array<i32>} : memref<1x358xf32, #tpu.memory_space<vmem>>, vector<1x256xf32>,
      %c0_114 = arith.constant 0 : index
      %143 = memref.load %arg2[%c0_114] : memref<196xf32, #tpu.memory_space<smem>>
      %c0_115 = arith.constant 0 : index
      %c0_116 = arith.constant 0 : index
      %144 = vector.load %arg7[%c0_115, %c0_116] : memref<1x358xf32, #tpu.memory_space<vmem>>, vector<1x256xf32>
      %145 = vector.broadcast %143 : f32 to vector<1x256xf32>
      %146 = arith.mulf %145, %144 : vector<1x256xf32>
      %c7 = arith.constant 7 : index
      %147 = memref.load %arg2[%c7] : memref<196xf32, #tpu.memory_space<smem>>
      %c0_117 = arith.constant 0 : index
      %c16_118 = arith.constant 16 : index
      %148 = vector.load %arg7[%c0_117, %c16_118] : memref<1x358xf32, #tpu.memory_space<vmem>>, vector<1x256xf32>
      %149 = vector.broadcast %147 : f32 to vector<1x256xf32>
      %150 = arith.mulf %149, %148 : vector<1x256xf32>
      %151 = arith.addf %146, %150 : vector<1x256xf32>
      %c14 = arith.constant 14 : index
      %152 = memref.load %arg2[%c14] : memref<196xf32, #tpu.memory_space<smem>>
      %c0_119 = arith.constant 0 : index
      %c32 = arith.constant 32 : index
      %153 = vector.load %arg7[%c0_119, %c32] : memref<1x358xf32, #tpu.memory_space<vmem>>, vector<1x256xf32>
      %154 = vector.broadcast %152 : f32 to vector<1x256xf32>
      %155 = arith.mulf %154, %153 : vector<1x256xf32>
      %156 = arith.addf %151, %155 : vector<1x256xf32>
      %c21 = arith.constant 21 : index
      %157 = memref.load %arg2[%c21] : memref<196xf32, #tpu.memory_space<smem>>
      %c0_120 = arith.constant 0 : index
      %c48 = arith.constant 48 : index
      %158 = vector.load %arg7[%c0_120, %c48] : memref<1x358xf32, #tpu.memory_space<vmem>>, vector<1x256xf32>
      %159 = vector.broadcast %157 : f32 to vector<1x256xf32>
      %160 = arith.mulf %159, %158 : vector<1x256xf32>
      %161 = arith.addf %156, %160 : vector<1x256xf32>
      %c28 = arith.constant 28 : index
      %162 = memref.load %arg2[%c28] : memref<196xf32, #tpu.memory_space<smem>>
      %c0_121 = arith.constant 0 : index
      %c64 = arith.constant 64 : index
      %163 = vector.load %arg7[%c0_121, %c64] : memref<1x358xf32, #tpu.memory_space<vmem>>, vector<1x256xf32>
      %164 = vector.broadcast %162 : f32 to vector<1x256xf32>
      %165 = arith.mulf %164, %163 : vector<1x256xf32>
      %166 = arith.addf %161, %165 : vector<1x256xf32>
      %c35 = arith.constant 35 : index
      %167 = memref.load %arg2[%c35] : memref<196xf32, #tpu.memory_space<smem>>
      %c0_122 = arith.constant 0 : index
      %c80 = arith.constant 80 : index
      %168 = vector.load %arg7[%c0_122, %c80] : memref<1x358xf32, #tpu.memory_space<vmem>>, vector<1x256xf32>
      %169 = vector.broadcast %167 : f32 to vector<1x256xf32>
      %170 = arith.mulf %169, %168 : vector<1x256xf32>
      %171 = arith.addf %166, %170 : vector<1x256xf32>
      %c42 = arith.constant 42 : index
      %172 = memref.load %arg2[%c42] : memref<196xf32, #tpu.memory_space<smem>>
      %c0_123 = arith.constant 0 : index
      %c96 = arith.constant 96 : index
      %173 = vector.load %arg7[%c0_123, %c96] : memref<1x358xf32, #tpu.memory_space<vmem>>, vector<1x256xf32>
      %174 = vector.broadcast %172 : f32 to vector<1x256xf32>
      %175 = arith.mulf %174, %173 : vector<1x256xf32>
      %176 = arith.addf %171, %175 : vector<1x256xf32>
      %c0_124 = arith.constant 0 : index
      %c0_125 = arith.constant 0 : index
      %177 = vector.load %arg8[%c0_124, %c0_125] : memref<1x256xf32, #tpu.memory_space<vmem>>, vector<1x256xf32>
      %cst_126 = arith.constant 0.000000e+00 : f32
      %178 = vector.broadcast %cst_126 : f32 to vector<1x256xf32>
      %179 = arith.select %105, %176, %178 : vector<1x256xi1>, vector<1x256xf32>
      %180 = arith.addf %177, %179 : vector<1x256xf32>
      %c0_127 = arith.constant 0 : index
      %c0_128 = arith.constant 0 : index
      %181 = vector.load %arg8[%c0_127, %c0_128] : memref<1x256xf32, #tpu.memory_space<vmem>>, vector<1x256xf32>
      tpu.vector_store %arg8[%c0_127, %c0_128], %180 {strides = array<i32>} : memref<1x256xf32, #tpu.memory_space<vmem>>, vector<1x256xf32>,
      %c1 = arith.constant 1 : index
      %182 = memref.load %arg2[%c1] : memref<196xf32, #tpu.memory_space<smem>>
      %c0_129 = arith.constant 0 : index
      %c1_130 = arith.constant 1 : index
      %183 = vector.load %arg7[%c0_129, %c1_130] : memref<1x358xf32, #tpu.memory_space<vmem>>, vector<1x256xf32>
      %184 = vector.broadcast %182 : f32 to vector<1x256xf32>
      %185 = arith.mulf %184, %183 : vector<1x256xf32>
      %c8_131 = arith.constant 8 : index
      %186 = memref.load %arg2[%c8_131] : memref<196xf32, #tpu.memory_space<smem>>
      %c0_132 = arith.constant 0 : index
      %c17 = arith.constant 17 : index
      %187 = vector.load %arg7[%c0_132, %c17] : memref<1x358xf32, #tpu.memory_space<vmem>>, vector<1x256xf32>
      %188 = vector.broadcast %186 : f32 to vector<1x256xf32>
      %189 = arith.mulf %188, %187 : vector<1x256xf32>
      %190 = arith.addf %185, %189 : vector<1x256xf32>
      %c15 = arith.constant 15 : index
      %191 = memref.load %arg2[%c15] : memref<196xf32, #tpu.memory_space<smem>>
      %c0_133 = arith.constant 0 : index
      %c33 = arith.constant 33 : index
      %192 = vector.load %arg7[%c0_133, %c33] : memref<1x358xf32, #tpu.memory_space<vmem>>, vector<1x256xf32>
      %193 = vector.broadcast %191 : f32 to vector<1x256xf32>
      %194 = arith.mulf %193, %192 : vector<1x256xf32>
      %195 = arith.addf %190, %194 : vector<1x256xf32>
      %c22 = arith.constant 22 : index
      %196 = memref.load %arg2[%c22] : memref<196xf32, #tpu.memory_space<smem>>
      %c0_134 = arith.constant 0 : index
      %c49 = arith.constant 49 : index
      %197 = vector.load %arg7[%c0_134, %c49] : memref<1x358xf32, #tpu.memory_space<vmem>>, vector<1x256xf32>
      %198 = vector.broadcast %196 : f32 to vector<1x256xf32>
      %199 = arith.mulf %198, %197 : vector<1x256xf32>
      %200 = arith.addf %195, %199 : vector<1x256xf32>
      %c29 = arith.constant 29 : index
      %201 = memref.load %arg2[%c29] : memref<196xf32, #tpu.memory_space<smem>>
      %c0_135 = arith.constant 0 : index
      %c65 = arith.constant 65 : index
      %202 = vector.load %arg7[%c0_135, %c65] : memref<1x358xf32, #tpu.memory_space<vmem>>, vector<1x256xf32>
      %203 = vector.broadcast %201 : f32 to vector<1x256xf32>
      %204 = arith.mulf %203, %202 : vector<1x256xf32>
      %205 = arith.addf %200, %204 : vector<1x256xf32>
      %c36 = arith.constant 36 : index
      %206 = memref.load %arg2[%c36] : memref<196xf32, #tpu.memory_space<smem>>
      %c0_136 = arith.constant 0 : index
      %c81 = arith.constant 81 : index
      %207 = vector.load %arg7[%c0_136, %c81] : memref<1x358xf32, #tpu.memory_space<vmem>>, vector<1x256xf32>
      %208 = vector.broadcast %206 : f32 to vector<1x256xf32>
      %209 = arith.mulf %208, %207 : vector<1x256xf32>
      %210 = arith.addf %205, %209 : vector<1x256xf32>
      %c43 = arith.constant 43 : index
      %211 = memref.load %arg2[%c43] : memref<196xf32, #tpu.memory_space<smem>>
      %c0_137 = arith.constant 0 : index
      %c97 = arith.constant 97 : index
      %212 = vector.load %arg7[%c0_137, %c97] : memref<1x358xf32, #tpu.memory_space<vmem>>, vector<1x256xf32>
      %213 = vector.broadcast %211 : f32 to vector<1x256xf32>
      %214 = arith.mulf %213, %212 : vector<1x256xf32>
      %215 = arith.addf %210, %214 : vector<1x256xf32>
      %c0_138 = arith.constant 0 : index
      %c0_139 = arith.constant 0 : index
      %216 = vector.load %arg8[%c0_138, %c0_139] : memref<1x256xf32, #tpu.memory_space<vmem>>, vector<1x256xf32>
      %cst_140 = arith.constant 0.000000e+00 : f32
      %217 = vector.broadcast %cst_140 : f32 to vector<1x256xf32>
      %218 = arith.select %110, %215, %217 : vector<1x256xi1>, vector<1x256xf32>
      %219 = arith.addf %216, %218 : vector<1x256xf32>
      %c0_141 = arith.constant 0 : index
      %c0_142 = arith.constant 0 : index
      %220 = vector.load %arg8[%c0_141, %c0_142] : memref<1x256xf32, #tpu.memory_space<vmem>>, vector<1x256xf32>
      tpu.vector_store %arg8[%c0_141, %c0_142], %219 {strides = array<i32>} : memref<1x256xf32, #tpu.memory_space<vmem>>, vector<1x256xf32>,
      %c2 = arith.constant 2 : index
      %221 = memref.load %arg2[%c2] : memref<196xf32, #tpu.memory_space<smem>>
      %c0_143 = arith.constant 0 : index
      %c2_144 = arith.constant 2 : index
      %222 = vector.load %arg7[%c0_143, %c2_144] : memref<1x358xf32, #tpu.memory_space<vmem>>, vector<1x256xf32>
      %223 = vector.broadcast %221 : f32 to vector<1x256xf32>
      %224 = arith.mulf %223, %222 : vector<1x256xf32>
      %c9 = arith.constant 9 : index
      %225 = memref.load %arg2[%c9] : memref<196xf32, #tpu.memory_space<smem>>
      %c0_145 = arith.constant 0 : index
      %c18 = arith.constant 18 : index
      %226 = vector.load %arg7[%c0_145, %c18] : memref<1x358xf32, #tpu.memory_space<vmem>>, vector<1x256xf32>
      %227 = vector.broadcast %225 : f32 to vector<1x256xf32>
      %228 = arith.mulf %227, %226 : vector<1x256xf32>
      %229 = arith.addf %224, %228 : vector<1x256xf32>
      %c16_146 = arith.constant 16 : index
      %230 = memref.load %arg2[%c16_146] : memref<196xf32, #tpu.memory_space<smem>>
      %c0_147 = arith.constant 0 : index
      %c34 = arith.constant 34 : index
      %231 = vector.load %arg7[%c0_147, %c34] : memref<1x358xf32, #tpu.memory_space<vmem>>, vector<1x256xf32>
      %232 = vector.broadcast %230 : f32 to vector<1x256xf32>
      %233 = arith.mulf %232, %231 : vector<1x256xf32>
      %234 = arith.addf %229, %233 : vector<1x256xf32>
      %c23 = arith.constant 23 : index
      %235 = memref.load %arg2[%c23] : memref<196xf32, #tpu.memory_space<smem>>
      %c0_148 = arith.constant 0 : index
      %c50 = arith.constant 50 : index
      %236 = vector.load %arg7[%c0_148, %c50] : memref<1x358xf32, #tpu.memory_space<vmem>>, vector<1x256xf32>
      %237 = vector.broadcast %235 : f32 to vector<1x256xf32>
      %238 = arith.mulf %237, %236 : vector<1x256xf32>
      %239 = arith.addf %234, %238 : vector<1x256xf32>
      %c30 = arith.constant 30 : index
      %240 = memref.load %arg2[%c30] : memref<196xf32, #tpu.memory_space<smem>>
      %c0_149 = arith.constant 0 : index
      %c66 = arith.constant 66 : index
      %241 = vector.load %arg7[%c0_149, %c66] : memref<1x358xf32, #tpu.memory_space<vmem>>, vector<1x256xf32>
      %242 = vector.broadcast %240 : f32 to vector<1x256xf32>
      %243 = arith.mulf %242, %241 : vector<1x256xf32>
      %244 = arith.addf %239, %243 : vector<1x256xf32>
      %c37 = arith.constant 37 : index
      %245 = memref.load %arg2[%c37] : memref<196xf32, #tpu.memory_space<smem>>
      %c0_150 = arith.constant 0 : index
      %c82 = arith.constant 82 : index
      %246 = vector.load %arg7[%c0_150, %c82] : memref<1x358xf32, #tpu.memory_space<vmem>>, vector<1x256xf32>
      %247 = vector.broadcast %245 : f32 to vector<1x256xf32>
      %248 = arith.mulf %247, %246 : vector<1x256xf32>
      %249 = arith.addf %244, %248 : vector<1x256xf32>
      %c44 = arith.constant 44 : index
      %250 = memref.load %arg2[%c44] : memref<196xf32, #tpu.memory_space<smem>>
      %c0_151 = arith.constant 0 : index
      %c98 = arith.constant 98 : index
      %251 = vector.load %arg7[%c0_151, %c98] : memref<1x358xf32, #tpu.memory_space<vmem>>, vector<1x256xf32>
      %252 = vector.broadcast %250 : f32 to vector<1x256xf32>
      %253 = arith.mulf %252, %251 : vector<1x256xf32>
      %254 = arith.addf %249, %253 : vector<1x256xf32>
      %c0_152 = arith.constant 0 : index
      %c0_153 = arith.constant 0 : index
      %255 = vector.load %arg8[%c0_152, %c0_153] : memref<1x256xf32, #tpu.memory_space<vmem>>, vector<1x256xf32>
      %cst_154 = arith.constant 0.000000e+00 : f32
      %256 = vector.broadcast %cst_154 : f32 to vector<1x256xf32>
      %257 = arith.select %115, %254, %256 : vector<1x256xi1>, vector<1x256xf32>
      %258 = arith.addf %255, %257 : vector<1x256xf32>
      %c0_155 = arith.constant 0 : index
      %c0_156 = arith.constant 0 : index
      %259 = vector.load %arg8[%c0_155, %c0_156] : memref<1x256xf32, #tpu.memory_space<vmem>>, vector<1x256xf32>
      tpu.vector_store %arg8[%c0_155, %c0_156], %258 {strides = array<i32>} : memref<1x256xf32, #tpu.memory_space<vmem>>, vector<1x256xf32>,
      %c3 = arith.constant 3 : index
      %260 = memref.load %arg2[%c3] : memref<196xf32, #tpu.memory_space<smem>>
      %c0_157 = arith.constant 0 : index
      %c3_158 = arith.constant 3 : index
      %261 = vector.load %arg7[%c0_157, %c3_158] : memref<1x358xf32, #tpu.memory_space<vmem>>, vector<1x256xf32>
      %262 = vector.broadcast %260 : f32 to vector<1x256xf32>
      %263 = arith.mulf %262, %261 : vector<1x256xf32>
      %c10 = arith.constant 10 : index
      %264 = memref.load %arg2[%c10] : memref<196xf32, #tpu.memory_space<smem>>
      %c0_159 = arith.constant 0 : index
      %c19 = arith.constant 19 : index
      %265 = vector.load %arg7[%c0_159, %c19] : memref<1x358xf32, #tpu.memory_space<vmem>>, vector<1x256xf32>
      %266 = vector.broadcast %264 : f32 to vector<1x256xf32>
      %267 = arith.mulf %266, %265 : vector<1x256xf32>
      %268 = arith.addf %263, %267 : vector<1x256xf32>
      %c17_160 = arith.constant 17 : index
      %269 = memref.load %arg2[%c17_160] : memref<196xf32, #tpu.memory_space<smem>>
      %c0_161 = arith.constant 0 : index
      %c35_162 = arith.constant 35 : index
      %270 = vector.load %arg7[%c0_161, %c35_162] : memref<1x358xf32, #tpu.memory_space<vmem>>, vector<1x256xf32>
      %271 = vector.broadcast %269 : f32 to vector<1x256xf32>
      %272 = arith.mulf %271, %270 : vector<1x256xf32>
      %273 = arith.addf %268, %272 : vector<1x256xf32>
      %c24_163 = arith.constant 24 : index
      %274 = memref.load %arg2[%c24_163] : memref<196xf32, #tpu.memory_space<smem>>
      %c0_164 = arith.constant 0 : index
      %c51_165 = arith.constant 51 : index
      %275 = vector.load %arg7[%c0_164, %c51_165] : memref<1x358xf32, #tpu.memory_space<vmem>>, vector<1x256xf32>
      %276 = vector.broadcast %274 : f32 to vector<1x256xf32>
      %277 = arith.mulf %276, %275 : vector<1x256xf32>
      %278 = arith.addf %273, %277 : vector<1x256xf32>
      %c31 = arith.constant 31 : index
      %279 = memref.load %arg2[%c31] : memref<196xf32, #tpu.memory_space<smem>>
      %c0_166 = arith.constant 0 : index
      %c67 = arith.constant 67 : index
      %280 = vector.load %arg7[%c0_166, %c67] : memref<1x358xf32, #tpu.memory_space<vmem>>, vector<1x256xf32>
      %281 = vector.broadcast %279 : f32 to vector<1x256xf32>
      %282 = arith.mulf %281, %280 : vector<1x256xf32>
      %283 = arith.addf %278, %282 : vector<1x256xf32>
      %c38 = arith.constant 38 : index
      %284 = memref.load %arg2[%c38] : memref<196xf32, #tpu.memory_space<smem>>
      %c0_167 = arith.constant 0 : index
      %c83 = arith.constant 83 : index
      %285 = vector.load %arg7[%c0_167, %c83] : memref<1x358xf32, #tpu.memory_space<vmem>>, vector<1x256xf32>
      %286 = vector.broadcast %284 : f32 to vector<1x256xf32>
      %287 = arith.mulf %286, %285 : vector<1x256xf32>
      %288 = arith.addf %283, %287 : vector<1x256xf32>
      %c45 = arith.constant 45 : index
      %289 = memref.load %arg2[%c45] : memref<196xf32, #tpu.memory_space<smem>>
      %c0_168 = arith.constant 0 : index
      %c99 = arith.constant 99 : index
      %290 = vector.load %arg7[%c0_168, %c99] : memref<1x358xf32, #tpu.memory_space<vmem>>, vector<1x256xf32>
      %291 = vector.broadcast %289 : f32 to vector<1x256xf32>
      %292 = arith.mulf %291, %290 : vector<1x256xf32>
      %293 = arith.addf %288, %292 : vector<1x256xf32>
      %c0_169 = arith.constant 0 : index
      %c0_170 = arith.constant 0 : index
      %294 = vector.load %arg8[%c0_169, %c0_170] : memref<1x256xf32, #tpu.memory_space<vmem>>, vector<1x256xf32>
      %cst_171 = arith.constant 0.000000e+00 : f32
      %295 = vector.broadcast %cst_171 : f32 to vector<1x256xf32>
      %296 = arith.select %120, %293, %295 : vector<1x256xi1>, vector<1x256xf32>
      %297 = arith.addf %294, %296 : vector<1x256xf32>
      %c0_172 = arith.constant 0 : index
      %c0_173 = arith.constant 0 : index
      %298 = vector.load %arg8[%c0_172, %c0_173] : memref<1x256xf32, #tpu.memory_space<vmem>>, vector<1x256xf32>
      tpu.vector_store %arg8[%c0_172, %c0_173], %297 {strides = array<i32>} : memref<1x256xf32, #tpu.memory_space<vmem>>, vector<1x256xf32>,
      %c4 = arith.constant 4 : index
      %299 = memref.load %arg2[%c4] : memref<196xf32, #tpu.memory_space<smem>>
      %c0_174 = arith.constant 0 : index
      %c4_175 = arith.constant 4 : index
      %300 = vector.load %arg7[%c0_174, %c4_175] : memref<1x358xf32, #tpu.memory_space<vmem>>, vector<1x256xf32>
      %301 = vector.broadcast %299 : f32 to vector<1x256xf32>
      %302 = arith.mulf %301, %300 : vector<1x256xf32>
      %c11 = arith.constant 11 : index
      %303 = memref.load %arg2[%c11] : memref<196xf32, #tpu.memory_space<smem>>
      %c0_176 = arith.constant 0 : index
      %c20 = arith.constant 20 : index
      %304 = vector.load %arg7[%c0_176, %c20] : memref<1x358xf32, #tpu.memory_space<vmem>>, vector<1x256xf32>
      %305 = vector.broadcast %303 : f32 to vector<1x256xf32>
      %306 = arith.mulf %305, %304 : vector<1x256xf32>
      %307 = arith.addf %302, %306 : vector<1x256xf32>
      %c18_177 = arith.constant 18 : index
      %308 = memref.load %arg2[%c18_177] : memref<196xf32, #tpu.memory_space<smem>>
      %c0_178 = arith.constant 0 : index
      %c36_179 = arith.constant 36 : index
      %309 = vector.load %arg7[%c0_178, %c36_179] : memref<1x358xf32, #tpu.memory_space<vmem>>, vector<1x256xf32>
      %310 = vector.broadcast %308 : f32 to vector<1x256xf32>
      %311 = arith.mulf %310, %309 : vector<1x256xf32>
      %312 = arith.addf %307, %311 : vector<1x256xf32>
      %c25 = arith.constant 25 : index
      %313 = memref.load %arg2[%c25] : memref<196xf32, #tpu.memory_space<smem>>
      %c0_180 = arith.constant 0 : index
      %c52 = arith.constant 52 : index
      %314 = vector.load %arg7[%c0_180, %c52] : memref<1x358xf32, #tpu.memory_space<vmem>>, vector<1x256xf32>
      %315 = vector.broadcast %313 : f32 to vector<1x256xf32>
      %316 = arith.mulf %315, %314 : vector<1x256xf32>
      %317 = arith.addf %312, %316 : vector<1x256xf32>
      %c32_181 = arith.constant 32 : index
      %318 = memref.load %arg2[%c32_181] : memref<196xf32, #tpu.memory_space<smem>>
      %c0_182 = arith.constant 0 : index
      %c68 = arith.constant 68 : index
      %319 = vector.load %arg7[%c0_182, %c68] : memref<1x358xf32, #tpu.memory_space<vmem>>, vector<1x256xf32>
      %320 = vector.broadcast %318 : f32 to vector<1x256xf32>
      %321 = arith.mulf %320, %319 : vector<1x256xf32>
      %322 = arith.addf %317, %321 : vector<1x256xf32>
      %c39 = arith.constant 39 : index
      %323 = memref.load %arg2[%c39] : memref<196xf32, #tpu.memory_space<smem>>
      %c0_183 = arith.constant 0 : index
      %c84 = arith.constant 84 : index
      %324 = vector.load %arg7[%c0_183, %c84] : memref<1x358xf32, #tpu.memory_space<vmem>>, vector<1x256xf32>
      %325 = vector.broadcast %323 : f32 to vector<1x256xf32>
      %326 = arith.mulf %325, %324 : vector<1x256xf32>
      %327 = arith.addf %322, %326 : vector<1x256xf32>
      %c46 = arith.constant 46 : index
      %328 = memref.load %arg2[%c46] : memref<196xf32, #tpu.memory_space<smem>>
      %c0_184 = arith.constant 0 : index
      %c100 = arith.constant 100 : index
      %329 = vector.load %arg7[%c0_184, %c100] : memref<1x358xf32, #tpu.memory_space<vmem>>, vector<1x256xf32>
      %330 = vector.broadcast %328 : f32 to vector<1x256xf32>
      %331 = arith.mulf %330, %329 : vector<1x256xf32>
      %332 = arith.addf %327, %331 : vector<1x256xf32>
      %c0_185 = arith.constant 0 : index
      %c0_186 = arith.constant 0 : index
      %333 = vector.load %arg8[%c0_185, %c0_186] : memref<1x256xf32, #tpu.memory_space<vmem>>, vector<1x256xf32>
      %cst_187 = arith.constant 0.000000e+00 : f32
      %334 = vector.broadcast %cst_187 : f32 to vector<1x256xf32>
      %335 = arith.select %125, %332, %334 : vector<1x256xi1>, vector<1x256xf32>
      %336 = arith.addf %333, %335 : vector<1x256xf32>
      %c0_188 = arith.constant 0 : index
      %c0_189 = arith.constant 0 : index
      %337 = vector.load %arg8[%c0_188, %c0_189] : memref<1x256xf32, #tpu.memory_space<vmem>>, vector<1x256xf32>
      tpu.vector_store %arg8[%c0_188, %c0_189], %336 {strides = array<i32>} : memref<1x256xf32, #tpu.memory_space<vmem>>, vector<1x256xf32>,
      %c5 = arith.constant 5 : index
      %338 = memref.load %arg2[%c5] : memref<196xf32, #tpu.memory_space<smem>>
      %c0_190 = arith.constant 0 : index
      %c5_191 = arith.constant 5 : index
      %339 = vector.load %arg7[%c0_190, %c5_191] : memref<1x358xf32, #tpu.memory_space<vmem>>, vector<1x256xf32>
      %340 = vector.broadcast %338 : f32 to vector<1x256xf32>
      %341 = arith.mulf %340, %339 : vector<1x256xf32>
      %c12 = arith.constant 12 : index
      %342 = memref.load %arg2[%c12] : memref<196xf32, #tpu.memory_space<smem>>
      %c0_192 = arith.constant 0 : index
      %c21_193 = arith.constant 21 : index
      %343 = vector.load %arg7[%c0_192, %c21_193] : memref<1x358xf32, #tpu.memory_space<vmem>>, vector<1x256xf32>
      %344 = vector.broadcast %342 : f32 to vector<1x256xf32>
      %345 = arith.mulf %344, %343 : vector<1x256xf32>
      %346 = arith.addf %341, %345 : vector<1x256xf32>
      %c19_194 = arith.constant 19 : index
      %347 = memref.load %arg2[%c19_194] : memref<196xf32, #tpu.memory_space<smem>>
      %c0_195 = arith.constant 0 : index
      %c37_196 = arith.constant 37 : index
      %348 = vector.load %arg7[%c0_195, %c37_196] : memref<1x358xf32, #tpu.memory_space<vmem>>, vector<1x256xf32>
      %349 = vector.broadcast %347 : f32 to vector<1x256xf32>
      %350 = arith.mulf %349, %348 : vector<1x256xf32>
      %351 = arith.addf %346, %350 : vector<1x256xf32>
      %c26 = arith.constant 26 : index
      %352 = memref.load %arg2[%c26] : memref<196xf32, #tpu.memory_space<smem>>
      %c0_197 = arith.constant 0 : index
      %c53 = arith.constant 53 : index
      %353 = vector.load %arg7[%c0_197, %c53] : memref<1x358xf32, #tpu.memory_space<vmem>>, vector<1x256xf32>
      %354 = vector.broadcast %352 : f32 to vector<1x256xf32>
      %355 = arith.mulf %354, %353 : vector<1x256xf32>
      %356 = arith.addf %351, %355 : vector<1x256xf32>
      %c33_198 = arith.constant 33 : index
      %357 = memref.load %arg2[%c33_198] : memref<196xf32, #tpu.memory_space<smem>>
      %c0_199 = arith.constant 0 : index
      %c69 = arith.constant 69 : index
      %358 = vector.load %arg7[%c0_199, %c69] : memref<1x358xf32, #tpu.memory_space<vmem>>, vector<1x256xf32>
      %359 = vector.broadcast %357 : f32 to vector<1x256xf32>
      %360 = arith.mulf %359, %358 : vector<1x256xf32>
      %361 = arith.addf %356, %360 : vector<1x256xf32>
      %c40 = arith.constant 40 : index
      %362 = memref.load %arg2[%c40] : memref<196xf32, #tpu.memory_space<smem>>
      %c0_200 = arith.constant 0 : index
      %c85 = arith.constant 85 : index
      %363 = vector.load %arg7[%c0_200, %c85] : memref<1x358xf32, #tpu.memory_space<vmem>>, vector<1x256xf32>
      %364 = vector.broadcast %362 : f32 to vector<1x256xf32>
      %365 = arith.mulf %364, %363 : vector<1x256xf32>
      %366 = arith.addf %361, %365 : vector<1x256xf32>
      %c47 = arith.constant 47 : index
      %367 = memref.load %arg2[%c47] : memref<196xf32, #tpu.memory_space<smem>>
      %c0_201 = arith.constant 0 : index
      %c101 = arith.constant 101 : index
      %368 = vector.load %arg7[%c0_201, %c101] : memref<1x358xf32, #tpu.memory_space<vmem>>, vector<1x256xf32>
      %369 = vector.broadcast %367 : f32 to vector<1x256xf32>
      %370 = arith.mulf %369, %368 : vector<1x256xf32>
      %371 = arith.addf %366, %370 : vector<1x256xf32>
      %c0_202 = arith.constant 0 : index
      %c0_203 = arith.constant 0 : index
      %372 = vector.load %arg8[%c0_202, %c0_203] : memref<1x256xf32, #tpu.memory_space<vmem>>, vector<1x256xf32>
      %cst_204 = arith.constant 0.000000e+00 : f32
      %373 = vector.broadcast %cst_204 : f32 to vector<1x256xf32>
      %374 = arith.select %130, %371, %373 : vector<1x256xi1>, vector<1x256xf32>
      %375 = arith.addf %372, %374 : vector<1x256xf32>
      %c0_205 = arith.constant 0 : index
      %c0_206 = arith.constant 0 : index
      %376 = vector.load %arg8[%c0_205, %c0_206] : memref<1x256xf32, #tpu.memory_space<vmem>>, vector<1x256xf32>
      tpu.vector_store %arg8[%c0_205, %c0_206], %375 {strides = array<i32>} : memref<1x256xf32, #tpu.memory_space<vmem>>, vector<1x256xf32>,
      %c6 = arith.constant 6 : index
      %377 = memref.load %arg2[%c6] : memref<196xf32, #tpu.memory_space<smem>>
      %c0_207 = arith.constant 0 : index
      %c6_208 = arith.constant 6 : index
      %378 = vector.load %arg7[%c0_207, %c6_208] : memref<1x358xf32, #tpu.memory_space<vmem>>, vector<1x256xf32>
      %379 = vector.broadcast %377 : f32 to vector<1x256xf32>
      %380 = arith.mulf %379, %378 : vector<1x256xf32>
      %c13 = arith.constant 13 : index
      %381 = memref.load %arg2[%c13] : memref<196xf32, #tpu.memory_space<smem>>
      %c0_209 = arith.constant 0 : index
      %c22_210 = arith.constant 22 : index
      %382 = vector.load %arg7[%c0_209, %c22_210] : memref<1x358xf32, #tpu.memory_space<vmem>>, vector<1x256xf32>
      %383 = vector.broadcast %381 : f32 to vector<1x256xf32>
      %384 = arith.mulf %383, %382 : vector<1x256xf32>
      %385 = arith.addf %380, %384 : vector<1x256xf32>
      %c20_211 = arith.constant 20 : index
      %386 = memref.load %arg2[%c20_211] : memref<196xf32, #tpu.memory_space<smem>>
      %c0_212 = arith.constant 0 : index
      %c38_213 = arith.constant 38 : index
      %387 = vector.load %arg7[%c0_212, %c38_213] : memref<1x358xf32, #tpu.memory_space<vmem>>, vector<1x256xf32>
      %388 = vector.broadcast %386 : f32 to vector<1x256xf32>
      %389 = arith.mulf %388, %387 : vector<1x256xf32>
      %390 = arith.addf %385, %389 : vector<1x256xf32>
      %c27 = arith.constant 27 : index
      %391 = memref.load %arg2[%c27] : memref<196xf32, #tpu.memory_space<smem>>
      %c0_214 = arith.constant 0 : index
      %c54 = arith.constant 54 : index
      %392 = vector.load %arg7[%c0_214, %c54] : memref<1x358xf32, #tpu.memory_space<vmem>>, vector<1x256xf32>
      %393 = vector.broadcast %391 : f32 to vector<1x256xf32>
      %394 = arith.mulf %393, %392 : vector<1x256xf32>
      %395 = arith.addf %390, %394 : vector<1x256xf32>
      %c34_215 = arith.constant 34 : index
      %396 = memref.load %arg2[%c34_215] : memref<196xf32, #tpu.memory_space<smem>>
      %c0_216 = arith.constant 0 : index
      %c70 = arith.constant 70 : index
      %397 = vector.load %arg7[%c0_216, %c70] : memref<1x358xf32, #tpu.memory_space<vmem>>, vector<1x256xf32>
      %398 = vector.broadcast %396 : f32 to vector<1x256xf32>
      %399 = arith.mulf %398, %397 : vector<1x256xf32>
      %400 = arith.addf %395, %399 : vector<1x256xf32>
      %c41 = arith.constant 41 : index
      %401 = memref.load %arg2[%c41] : memref<196xf32, #tpu.memory_space<smem>>
      %c0_217 = arith.constant 0 : index
      %c86 = arith.constant 86 : index
      %402 = vector.load %arg7[%c0_217, %c86] : memref<1x358xf32, #tpu.memory_space<vmem>>, vector<1x256xf32>
      %403 = vector.broadcast %401 : f32 to vector<1x256xf32>
      %404 = arith.mulf %403, %402 : vector<1x256xf32>
      %405 = arith.addf %400, %404 : vector<1x256xf32>
      %c48_218 = arith.constant 48 : index
      %406 = memref.load %arg2[%c48_218] : memref<196xf32, #tpu.memory_space<smem>>
      %c0_219 = arith.constant 0 : index
      %c102 = arith.constant 102 : index
      %407 = vector.load %arg7[%c0_219, %c102] : memref<1x358xf32, #tpu.memory_space<vmem>>, vector<1x256xf32>
      %408 = vector.broadcast %406 : f32 to vector<1x256xf32>
      %409 = arith.mulf %408, %407 : vector<1x256xf32>
      %410 = arith.addf %405, %409 : vector<1x256xf32>
      %c0_220 = arith.constant 0 : index
      %c0_221 = arith.constant 0 : index
      %411 = vector.load %arg8[%c0_220, %c0_221] : memref<1x256xf32, #tpu.memory_space<vmem>>, vector<1x256xf32>
      %cst_222 = arith.constant 0.000000e+00 : f32
      %412 = vector.broadcast %cst_222 : f32 to vector<1x256xf32>
      %413 = arith.select %135, %410, %412 : vector<1x256xi1>, vector<1x256xf32>
      %414 = arith.addf %411, %413 : vector<1x256xf32>
      %c0_223 = arith.constant 0 : index
      %c0_224 = arith.constant 0 : index
      %415 = vector.load %arg8[%c0_223, %c0_224] : memref<1x256xf32, #tpu.memory_space<vmem>>, vector<1x256xf32>
      tpu.vector_store %arg8[%c0_223, %c0_224], %414 {strides = array<i32>} : memref<1x256xf32, #tpu.memory_space<vmem>>, vector<1x256xf32>,
      %c0_225 = arith.constant 0 : index
      %c51_226 = arith.constant 51 : index
      %416 = vector.load %arg7[%c0_225, %c51_226] : memref<1x358xf32, #tpu.memory_space<vmem>>, vector<1x256xf32>
      tpu.vector_store %arg7[%c0_225, %c51_226], %75 {strides = array<i32>} : memref<1x358xf32, #tpu.memory_space<vmem>>, vector<1x256xf32>,
      %c49_227 = arith.constant 49 : index
      %417 = memref.load %arg2[%c49_227] : memref<196xf32, #tpu.memory_space<smem>>
      %c0_228 = arith.constant 0 : index
      %c0_229 = arith.constant 0 : index
      %418 = vector.load %arg7[%c0_228, %c0_229] : memref<1x358xf32, #tpu.memory_space<vmem>>, vector<1x256xf32>
      %419 = vector.broadcast %417 : f32 to vector<1x256xf32>
      %420 = arith.mulf %419, %418 : vector<1x256xf32>
      %c56 = arith.constant 56 : index
      %421 = memref.load %arg2[%c56] : memref<196xf32, #tpu.memory_space<smem>>
      %c0_230 = arith.constant 0 : index
      %c16_231 = arith.constant 16 : index
      %422 = vector.load %arg7[%c0_230, %c16_231] : memref<1x358xf32, #tpu.memory_space<vmem>>, vector<1x256xf32>
      %423 = vector.broadcast %421 : f32 to vector<1x256xf32>
      %424 = arith.mulf %423, %422 : vector<1x256xf32>
      %425 = arith.addf %420, %424 : vector<1x256xf32>
      %c63 = arith.constant 63 : index
      %426 = memref.load %arg2[%c63] : memref<196xf32, #tpu.memory_space<smem>>
      %c0_232 = arith.constant 0 : index
      %c32_233 = arith.constant 32 : index
      %427 = vector.load %arg7[%c0_232, %c32_233] : memref<1x358xf32, #tpu.memory_space<vmem>>, vector<1x256xf32>
      %428 = vector.broadcast %426 : f32 to vector<1x256xf32>
      %429 = arith.mulf %428, %427 : vector<1x256xf32>
      %430 = arith.addf %425, %429 : vector<1x256xf32>
      %c70_234 = arith.constant 70 : index
      %431 = memref.load %arg2[%c70_234] : memref<196xf32, #tpu.memory_space<smem>>
      %c0_235 = arith.constant 0 : index
      %c48_236 = arith.constant 48 : index
      %432 = vector.load %arg7[%c0_235, %c48_236] : memref<1x358xf32, #tpu.memory_space<vmem>>, vector<1x256xf32>
      %433 = vector.broadcast %431 : f32 to vector<1x256xf32>
      %434 = arith.mulf %433, %432 : vector<1x256xf32>
      %435 = arith.addf %430, %434 : vector<1x256xf32>
      %c77 = arith.constant 77 : index
      %436 = memref.load %arg2[%c77] : memref<196xf32, #tpu.memory_space<smem>>
      %c0_237 = arith.constant 0 : index
      %c64_238 = arith.constant 64 : index
      %437 = vector.load %arg7[%c0_237, %c64_238] : memref<1x358xf32, #tpu.memory_space<vmem>>, vector<1x256xf32>
      %438 = vector.broadcast %436 : f32 to vector<1x256xf32>
      %439 = arith.mulf %438, %437 : vector<1x256xf32>
      %440 = arith.addf %435, %439 : vector<1x256xf32>
      %c84_239 = arith.constant 84 : index
      %441 = memref.load %arg2[%c84_239] : memref<196xf32, #tpu.memory_space<smem>>
      %c0_240 = arith.constant 0 : index
      %c80_241 = arith.constant 80 : index
      %442 = vector.load %arg7[%c0_240, %c80_241] : memref<1x358xf32, #tpu.memory_space<vmem>>, vector<1x256xf32>
      %443 = vector.broadcast %441 : f32 to vector<1x256xf32>
      %444 = arith.mulf %443, %442 : vector<1x256xf32>
      %445 = arith.addf %440, %444 : vector<1x256xf32>
      %c91 = arith.constant 91 : index
      %446 = memref.load %arg2[%c91] : memref<196xf32, #tpu.memory_space<smem>>
      %c0_242 = arith.constant 0 : index
      %c96_243 = arith.constant 96 : index
      %447 = vector.load %arg7[%c0_242, %c96_243] : memref<1x358xf32, #tpu.memory_space<vmem>>, vector<1x256xf32>
      %448 = vector.broadcast %446 : f32 to vector<1x256xf32>
      %449 = arith.mulf %448, %447 : vector<1x256xf32>
      %450 = arith.addf %445, %449 : vector<1x256xf32>
      %c0_244 = arith.constant 0 : index
      %c0_245 = arith.constant 0 : index
      %451 = vector.load %arg8[%c0_244, %c0_245] : memref<1x256xf32, #tpu.memory_space<vmem>>, vector<1x256xf32>
      %cst_246 = arith.constant 0.000000e+00 : f32
      %452 = vector.broadcast %cst_246 : f32 to vector<1x256xf32>
      %453 = arith.select %105, %450, %452 : vector<1x256xi1>, vector<1x256xf32>
      %454 = arith.addf %451, %453 : vector<1x256xf32>
      %c0_247 = arith.constant 0 : index
      %c0_248 = arith.constant 0 : index
      %455 = vector.load %arg8[%c0_247, %c0_248] : memref<1x256xf32, #tpu.memory_space<vmem>>, vector<1x256xf32>
      tpu.vector_store %arg8[%c0_247, %c0_248], %454 {strides = array<i32>} : memref<1x256xf32, #tpu.memory_space<vmem>>, vector<1x256xf32>,
      %c50_249 = arith.constant 50 : index
      %456 = memref.load %arg2[%c50_249] : memref<196xf32, #tpu.memory_space<smem>>
      %c0_250 = arith.constant 0 : index
      %c1_251 = arith.constant 1 : index
      %457 = vector.load %arg7[%c0_250, %c1_251] : memref<1x358xf32, #tpu.memory_space<vmem>>, vector<1x256xf32>
      %458 = vector.broadcast %456 : f32 to vector<1x256xf32>
      %459 = arith.mulf %458, %457 : vector<1x256xf32>
      %c57 = arith.constant 57 : index
      %460 = memref.load %arg2[%c57] : memref<196xf32, #tpu.memory_space<smem>>
      %c0_252 = arith.constant 0 : index
      %c17_253 = arith.constant 17 : index
      %461 = vector.load %arg7[%c0_252, %c17_253] : memref<1x358xf32, #tpu.memory_space<vmem>>, vector<1x256xf32>
      %462 = vector.broadcast %460 : f32 to vector<1x256xf32>
      %463 = arith.mulf %462, %461 : vector<1x256xf32>
      %464 = arith.addf %459, %463 : vector<1x256xf32>
      %c64_254 = arith.constant 64 : index
      %465 = memref.load %arg2[%c64_254] : memref<196xf32, #tpu.memory_space<smem>>
      %c0_255 = arith.constant 0 : index
      %c33_256 = arith.constant 33 : index
      %466 = vector.load %arg7[%c0_255, %c33_256] : memref<1x358xf32, #tpu.memory_space<vmem>>, vector<1x256xf32>
      %467 = vector.broadcast %465 : f32 to vector<1x256xf32>
      %468 = arith.mulf %467, %466 : vector<1x256xf32>
      %469 = arith.addf %464, %468 : vector<1x256xf32>
      %c71 = arith.constant 71 : index
      %470 = memref.load %arg2[%c71] : memref<196xf32, #tpu.memory_space<smem>>
      %c0_257 = arith.constant 0 : index
      %c49_258 = arith.constant 49 : index
      %471 = vector.load %arg7[%c0_257, %c49_258] : memref<1x358xf32, #tpu.memory_space<vmem>>, vector<1x256xf32>
      %472 = vector.broadcast %470 : f32 to vector<1x256xf32>
      %473 = arith.mulf %472, %471 : vector<1x256xf32>
      %474 = arith.addf %469, %473 : vector<1x256xf32>
      %c78 = arith.constant 78 : index
      %475 = memref.load %arg2[%c78] : memref<196xf32, #tpu.memory_space<smem>>
      %c0_259 = arith.constant 0 : index
      %c65_260 = arith.constant 65 : index
      %476 = vector.load %arg7[%c0_259, %c65_260] : memref<1x358xf32, #tpu.memory_space<vmem>>, vector<1x256xf32>
      %477 = vector.broadcast %475 : f32 to vector<1x256xf32>
      %478 = arith.mulf %477, %476 : vector<1x256xf32>
      %479 = arith.addf %474, %478 : vector<1x256xf32>
      %c85_261 = arith.constant 85 : index
      %480 = memref.load %arg2[%c85_261] : memref<196xf32, #tpu.memory_space<smem>>
      %c0_262 = arith.constant 0 : index
      %c81_263 = arith.constant 81 : index
      %481 = vector.load %arg7[%c0_262, %c81_263] : memref<1x358xf32, #tpu.memory_space<vmem>>, vector<1x256xf32>
      %482 = vector.broadcast %480 : f32 to vector<1x256xf32>
      %483 = arith.mulf %482, %481 : vector<1x256xf32>
      %484 = arith.addf %479, %483 : vector<1x256xf32>
      %c92 = arith.constant 92 : index
      %485 = memref.load %arg2[%c92] : memref<196xf32, #tpu.memory_space<smem>>
      %c0_264 = arith.constant 0 : index
      %c97_265 = arith.constant 97 : index
      %486 = vector.load %arg7[%c0_264, %c97_265] : memref<1x358xf32, #tpu.memory_space<vmem>>, vector<1x256xf32>
      %487 = vector.broadcast %485 : f32 to vector<1x256xf32>
      %488 = arith.mulf %487, %486 : vector<1x256xf32>
      %489 = arith.addf %484, %488 : vector<1x256xf32>
      %c0_266 = arith.constant 0 : index
      %c0_267 = arith.constant 0 : index
      %490 = vector.load %arg8[%c0_266, %c0_267] : memref<1x256xf32, #tpu.memory_space<vmem>>, vector<1x256xf32>
      %cst_268 = arith.constant 0.000000e+00 : f32
      %491 = vector.broadcast %cst_268 : f32 to vector<1x256xf32>
      %492 = arith.select %110, %489, %491 : vector<1x256xi1>, vector<1x256xf32>
      %493 = arith.addf %490, %492 : vector<1x256xf32>
      %c0_269 = arith.constant 0 : index
      %c0_270 = arith.constant 0 : index
      %494 = vector.load %arg8[%c0_269, %c0_270] : memref<1x256xf32, #tpu.memory_space<vmem>>, vector<1x256xf32>
      tpu.vector_store %arg8[%c0_269, %c0_270], %493 {strides = array<i32>} : memref<1x256xf32, #tpu.memory_space<vmem>>, vector<1x256xf32>,
      %c51_271 = arith.constant 51 : index
      %495 = memref.load %arg2[%c51_271] : memref<196xf32, #tpu.memory_space<smem>>
      %c0_272 = arith.constant 0 : index
      %c2_273 = arith.constant 2 : index
      %496 = vector.load %arg7[%c0_272, %c2_273] : memref<1x358xf32, #tpu.memory_space<vmem>>, vector<1x256xf32>
      %497 = vector.broadcast %495 : f32 to vector<1x256xf32>
      %498 = arith.mulf %497, %496 : vector<1x256xf32>
      %c58 = arith.constant 58 : index
      %499 = memref.load %arg2[%c58] : memref<196xf32, #tpu.memory_space<smem>>
      %c0_274 = arith.constant 0 : index
      %c18_275 = arith.constant 18 : index
      %500 = vector.load %arg7[%c0_274, %c18_275] : memref<1x358xf32, #tpu.memory_space<vmem>>, vector<1x256xf32>
      %501 = vector.broadcast %499 : f32 to vector<1x256xf32>
      %502 = arith.mulf %501, %500 : vector<1x256xf32>
      %503 = arith.addf %498, %502 : vector<1x256xf32>
      %c65_276 = arith.constant 65 : index
      %504 = memref.load %arg2[%c65_276] : memref<196xf32, #tpu.memory_space<smem>>
      %c0_277 = arith.constant 0 : index
      %c34_278 = arith.constant 34 : index
      %505 = vector.load %arg7[%c0_277, %c34_278] : memref<1x358xf32, #tpu.memory_space<vmem>>, vector<1x256xf32>
      %506 = vector.broadcast %504 : f32 to vector<1x256xf32>
      %507 = arith.mulf %506, %505 : vector<1x256xf32>
      %508 = arith.addf %503, %507 : vector<1x256xf32>
      %c72 = arith.constant 72 : index
      %509 = memref.load %arg2[%c72] : memref<196xf32, #tpu.memory_space<smem>>
      %c0_279 = arith.constant 0 : index
      %c50_280 = arith.constant 50 : index
      %510 = vector.load %arg7[%c0_279, %c50_280] : memref<1x358xf32, #tpu.memory_space<vmem>>, vector<1x256xf32>
      %511 = vector.broadcast %509 : f32 to vector<1x256xf32>
      %512 = arith.mulf %511, %510 : vector<1x256xf32>
      %513 = arith.addf %508, %512 : vector<1x256xf32>
      %c79 = arith.constant 79 : index
      %514 = memref.load %arg2[%c79] : memref<196xf32, #tpu.memory_space<smem>>
      %c0_281 = arith.constant 0 : index
      %c66_282 = arith.constant 66 : index
      %515 = vector.load %arg7[%c0_281, %c66_282] : memref<1x358xf32, #tpu.memory_space<vmem>>, vector<1x256xf32>
      %516 = vector.broadcast %514 : f32 to vector<1x256xf32>
      %517 = arith.mulf %516, %515 : vector<1x256xf32>
      %518 = arith.addf %513, %517 : vector<1x256xf32>
      %c86_283 = arith.constant 86 : index
      %519 = memref.load %arg2[%c86_283] : memref<196xf32, #tpu.memory_space<smem>>
      %c0_284 = arith.constant 0 : index
      %c82_285 = arith.constant 82 : index
      %520 = vector.load %arg7[%c0_284, %c82_285] : memref<1x358xf32, #tpu.memory_space<vmem>>, vector<1x256xf32>
      %521 = vector.broadcast %519 : f32 to vector<1x256xf32>
      %522 = arith.mulf %521, %520 : vector<1x256xf32>
      %523 = arith.addf %518, %522 : vector<1x256xf32>
      %c93 = arith.constant 93 : index
      %524 = memref.load %arg2[%c93] : memref<196xf32, #tpu.memory_space<smem>>
      %c0_286 = arith.constant 0 : index
      %c98_287 = arith.constant 98 : index
      %525 = vector.load %arg7[%c0_286, %c98_287] : memref<1x358xf32, #tpu.memory_space<vmem>>, vector<1x256xf32>
      %526 = vector.broadcast %524 : f32 to vector<1x256xf32>
      %527 = arith.mulf %526, %525 : vector<1x256xf32>
      %528 = arith.addf %523, %527 : vector<1x256xf32>
      %c0_288 = arith.constant 0 : index
      %c0_289 = arith.constant 0 : index
      %529 = vector.load %arg8[%c0_288, %c0_289] : memref<1x256xf32, #tpu.memory_space<vmem>>, vector<1x256xf32>
      %cst_290 = arith.constant 0.000000e+00 : f32
      %530 = vector.broadcast %cst_290 : f32 to vector<1x256xf32>
      %531 = arith.select %115, %528, %530 : vector<1x256xi1>, vector<1x256xf32>
      %532 = arith.addf %529, %531 : vector<1x256xf32>
      %c0_291 = arith.constant 0 : index
      %c0_292 = arith.constant 0 : index
      %533 = vector.load %arg8[%c0_291, %c0_292] : memref<1x256xf32, #tpu.memory_space<vmem>>, vector<1x256xf32>
      tpu.vector_store %arg8[%c0_291, %c0_292], %532 {strides = array<i32>} : memref<1x256xf32, #tpu.memory_space<vmem>>, vector<1x256xf32>,
      %c52_293 = arith.constant 52 : index
      %534 = memref.load %arg2[%c52_293] : memref<196xf32, #tpu.memory_space<smem>>
      %c0_294 = arith.constant 0 : index
      %c3_295 = arith.constant 3 : index
      %535 = vector.load %arg7[%c0_294, %c3_295] : memref<1x358xf32, #tpu.memory_space<vmem>>, vector<1x256xf32>
      %536 = vector.broadcast %534 : f32 to vector<1x256xf32>
      %537 = arith.mulf %536, %535 : vector<1x256xf32>
      %c59 = arith.constant 59 : index
      %538 = memref.load %arg2[%c59] : memref<196xf32, #tpu.memory_space<smem>>
      %c0_296 = arith.constant 0 : index
      %c19_297 = arith.constant 19 : index
      %539 = vector.load %arg7[%c0_296, %c19_297] : memref<1x358xf32, #tpu.memory_space<vmem>>, vector<1x256xf32>
      %540 = vector.broadcast %538 : f32 to vector<1x256xf32>
      %541 = arith.mulf %540, %539 : vector<1x256xf32>
      %542 = arith.addf %537, %541 : vector<1x256xf32>
      %c66_298 = arith.constant 66 : index
      %543 = memref.load %arg2[%c66_298] : memref<196xf32, #tpu.memory_space<smem>>
      %c0_299 = arith.constant 0 : index
      %c35_300 = arith.constant 35 : index
      %544 = vector.load %arg7[%c0_299, %c35_300] : memref<1x358xf32, #tpu.memory_space<vmem>>, vector<1x256xf32>
      %545 = vector.broadcast %543 : f32 to vector<1x256xf32>
      %546 = arith.mulf %545, %544 : vector<1x256xf32>
      %547 = arith.addf %542, %546 : vector<1x256xf32>
      %c73 = arith.constant 73 : index
      %548 = memref.load %arg2[%c73] : memref<196xf32, #tpu.memory_space<smem>>
      %c0_301 = arith.constant 0 : index
      %c51_302 = arith.constant 51 : index
      %549 = vector.load %arg7[%c0_301, %c51_302] : memref<1x358xf32, #tpu.memory_space<vmem>>, vector<1x256xf32>
      %550 = vector.broadcast %548 : f32 to vector<1x256xf32>
      %551 = arith.mulf %550, %549 : vector<1x256xf32>
      %552 = arith.addf %547, %551 : vector<1x256xf32>
      %c80_303 = arith.constant 80 : index
      %553 = memref.load %arg2[%c80_303] : memref<196xf32, #tpu.memory_space<smem>>
      %c0_304 = arith.constant 0 : index
      %c67_305 = arith.constant 67 : index
      %554 = vector.load %arg7[%c0_304, %c67_305] : memref<1x358xf32, #tpu.memory_space<vmem>>, vector<1x256xf32>
      %555 = vector.broadcast %553 : f32 to vector<1x256xf32>
      %556 = arith.mulf %555, %554 : vector<1x256xf32>
      %557 = arith.addf %552, %556 : vector<1x256xf32>
      %c87 = arith.constant 87 : index
      %558 = memref.load %arg2[%c87] : memref<196xf32, #tpu.memory_space<smem>>
      %c0_306 = arith.constant 0 : index
      %c83_307 = arith.constant 83 : index
      %559 = vector.load %arg7[%c0_306, %c83_307] : memref<1x358xf32, #tpu.memory_space<vmem>>, vector<1x256xf32>
      %560 = vector.broadcast %558 : f32 to vector<1x256xf32>
      %561 = arith.mulf %560, %559 : vector<1x256xf32>
      %562 = arith.addf %557, %561 : vector<1x256xf32>
      %c94 = arith.constant 94 : index
      %563 = memref.load %arg2[%c94] : memref<196xf32, #tpu.memory_space<smem>>
      %c0_308 = arith.constant 0 : index
      %c99_309 = arith.constant 99 : index
      %564 = vector.load %arg7[%c0_308, %c99_309] : memref<1x358xf32, #tpu.memory_space<vmem>>, vector<1x256xf32>
      %565 = vector.broadcast %563 : f32 to vector<1x256xf32>
      %566 = arith.mulf %565, %564 : vector<1x256xf32>
      %567 = arith.addf %562, %566 : vector<1x256xf32>
      %c0_310 = arith.constant 0 : index
      %c0_311 = arith.constant 0 : index
      %568 = vector.load %arg8[%c0_310, %c0_311] : memref<1x256xf32, #tpu.memory_space<vmem>>, vector<1x256xf32>
      %cst_312 = arith.constant 0.000000e+00 : f32
      %569 = vector.broadcast %cst_312 : f32 to vector<1x256xf32>
      %570 = arith.select %120, %567, %569 : vector<1x256xi1>, vector<1x256xf32>
      %571 = arith.addf %568, %570 : vector<1x256xf32>
      %c0_313 = arith.constant 0 : index
      %c0_314 = arith.constant 0 : index
      %572 = vector.load %arg8[%c0_313, %c0_314] : memref<1x256xf32, #tpu.memory_space<vmem>>, vector<1x256xf32>
      tpu.vector_store %arg8[%c0_313, %c0_314], %571 {strides = array<i32>} : memref<1x256xf32, #tpu.memory_space<vmem>>, vector<1x256xf32>,
      %c53_315 = arith.constant 53 : index
      %573 = memref.load %arg2[%c53_315] : memref<196xf32, #tpu.memory_space<smem>>
      %c0_316 = arith.constant 0 : index
      %c4_317 = arith.constant 4 : index
      %574 = vector.load %arg7[%c0_316, %c4_317] : memref<1x358xf32, #tpu.memory_space<vmem>>, vector<1x256xf32>
      %575 = vector.broadcast %573 : f32 to vector<1x256xf32>
      %576 = arith.mulf %575, %574 : vector<1x256xf32>
      %c60 = arith.constant 60 : index
      %577 = memref.load %arg2[%c60] : memref<196xf32, #tpu.memory_space<smem>>
      %c0_318 = arith.constant 0 : index
      %c20_319 = arith.constant 20 : index
      %578 = vector.load %arg7[%c0_318, %c20_319] : memref<1x358xf32, #tpu.memory_space<vmem>>, vector<1x256xf32>
      %579 = vector.broadcast %577 : f32 to vector<1x256xf32>
      %580 = arith.mulf %579, %578 : vector<1x256xf32>
      %581 = arith.addf %576, %580 : vector<1x256xf32>
      %c67_320 = arith.constant 67 : index
      %582 = memref.load %arg2[%c67_320] : memref<196xf32, #tpu.memory_space<smem>>
      %c0_321 = arith.constant 0 : index
      %c36_322 = arith.constant 36 : index
      %583 = vector.load %arg7[%c0_321, %c36_322] : memref<1x358xf32, #tpu.memory_space<vmem>>, vector<1x256xf32>
      %584 = vector.broadcast %582 : f32 to vector<1x256xf32>
      %585 = arith.mulf %584, %583 : vector<1x256xf32>
      %586 = arith.addf %581, %585 : vector<1x256xf32>
      %c74 = arith.constant 74 : index
      %587 = memref.load %arg2[%c74] : memref<196xf32, #tpu.memory_space<smem>>
      %c0_323 = arith.constant 0 : index
      %c52_324 = arith.constant 52 : index
      %588 = vector.load %arg7[%c0_323, %c52_324] : memref<1x358xf32, #tpu.memory_space<vmem>>, vector<1x256xf32>
      %589 = vector.broadcast %587 : f32 to vector<1x256xf32>
      %590 = arith.mulf %589, %588 : vector<1x256xf32>
      %591 = arith.addf %586, %590 : vector<1x256xf32>
      %c81_325 = arith.constant 81 : index
      %592 = memref.load %arg2[%c81_325] : memref<196xf32, #tpu.memory_space<smem>>
      %c0_326 = arith.constant 0 : index
      %c68_327 = arith.constant 68 : index
      %593 = vector.load %arg7[%c0_326, %c68_327] : memref<1x358xf32, #tpu.memory_space<vmem>>, vector<1x256xf32>
      %594 = vector.broadcast %592 : f32 to vector<1x256xf32>
      %595 = arith.mulf %594, %593 : vector<1x256xf32>
      %596 = arith.addf %591, %595 : vector<1x256xf32>
      %c88 = arith.constant 88 : index
      %597 = memref.load %arg2[%c88] : memref<196xf32, #tpu.memory_space<smem>>
      %c0_328 = arith.constant 0 : index
      %c84_329 = arith.constant 84 : index
      %598 = vector.load %arg7[%c0_328, %c84_329] : memref<1x358xf32, #tpu.memory_space<vmem>>, vector<1x256xf32>
      %599 = vector.broadcast %597 : f32 to vector<1x256xf32>
      %600 = arith.mulf %599, %598 : vector<1x256xf32>
      %601 = arith.addf %596, %600 : vector<1x256xf32>
      %c95 = arith.constant 95 : index
      %602 = memref.load %arg2[%c95] : memref<196xf32, #tpu.memory_space<smem>>
      %c0_330 = arith.constant 0 : index
      %c100_331 = arith.constant 100 : index
      %603 = vector.load %arg7[%c0_330, %c100_331] : memref<1x358xf32, #tpu.memory_space<vmem>>, vector<1x256xf32>
      %604 = vector.broadcast %602 : f32 to vector<1x256xf32>
      %605 = arith.mulf %604, %603 : vector<1x256xf32>
      %606 = arith.addf %601, %605 : vector<1x256xf32>
      %c0_332 = arith.constant 0 : index
      %c0_333 = arith.constant 0 : index
      %607 = vector.load %arg8[%c0_332, %c0_333] : memref<1x256xf32, #tpu.memory_space<vmem>>, vector<1x256xf32>
      %cst_334 = arith.constant 0.000000e+00 : f32
      %608 = vector.broadcast %cst_334 : f32 to vector<1x256xf32>
      %609 = arith.select %125, %606, %608 : vector<1x256xi1>, vector<1x256xf32>
      %610 = arith.addf %607, %609 : vector<1x256xf32>
      %c0_335 = arith.constant 0 : index
      %c0_336 = arith.constant 0 : index
      %611 = vector.load %arg8[%c0_335, %c0_336] : memref<1x256xf32, #tpu.memory_space<vmem>>, vector<1x256xf32>
      tpu.vector_store %arg8[%c0_335, %c0_336], %610 {strides = array<i32>} : memref<1x256xf32, #tpu.memory_space<vmem>>, vector<1x256xf32>,
      %c54_337 = arith.constant 54 : index
      %612 = memref.load %arg2[%c54_337] : memref<196xf32, #tpu.memory_space<smem>>
      %c0_338 = arith.constant 0 : index
      %c5_339 = arith.constant 5 : index
      %613 = vector.load %arg7[%c0_338, %c5_339] : memref<1x358xf32, #tpu.memory_space<vmem>>, vector<1x256xf32>
      %614 = vector.broadcast %612 : f32 to vector<1x256xf32>
      %615 = arith.mulf %614, %613 : vector<1x256xf32>
      %c61 = arith.constant 61 : index
      %616 = memref.load %arg2[%c61] : memref<196xf32, #tpu.memory_space<smem>>
      %c0_340 = arith.constant 0 : index
      %c21_341 = arith.constant 21 : index
      %617 = vector.load %arg7[%c0_340, %c21_341] : memref<1x358xf32, #tpu.memory_space<vmem>>, vector<1x256xf32>
      %618 = vector.broadcast %616 : f32 to vector<1x256xf32>
      %619 = arith.mulf %618, %617 : vector<1x256xf32>
      %620 = arith.addf %615, %619 : vector<1x256xf32>
      %c68_342 = arith.constant 68 : index
      %621 = memref.load %arg2[%c68_342] : memref<196xf32, #tpu.memory_space<smem>>
      %c0_343 = arith.constant 0 : index
      %c37_344 = arith.constant 37 : index
      %622 = vector.load %arg7[%c0_343, %c37_344] : memref<1x358xf32, #tpu.memory_space<vmem>>, vector<1x256xf32>
      %623 = vector.broadcast %621 : f32 to vector<1x256xf32>
      %624 = arith.mulf %623, %622 : vector<1x256xf32>
      %625 = arith.addf %620, %624 : vector<1x256xf32>
      %c75 = arith.constant 75 : index
      %626 = memref.load %arg2[%c75] : memref<196xf32, #tpu.memory_space<smem>>
      %c0_345 = arith.constant 0 : index
      %c53_346 = arith.constant 53 : index
      %627 = vector.load %arg7[%c0_345, %c53_346] : memref<1x358xf32, #tpu.memory_space<vmem>>, vector<1x256xf32>
      %628 = vector.broadcast %626 : f32 to vector<1x256xf32>
      %629 = arith.mulf %628, %627 : vector<1x256xf32>
      %630 = arith.addf %625, %629 : vector<1x256xf32>
      %c82_347 = arith.constant 82 : index
      %631 = memref.load %arg2[%c82_347] : memref<196xf32, #tpu.memory_space<smem>>
      %c0_348 = arith.constant 0 : index
      %c69_349 = arith.constant 69 : index
      %632 = vector.load %arg7[%c0_348, %c69_349] : memref<1x358xf32, #tpu.memory_space<vmem>>, vector<1x256xf32>
      %633 = vector.broadcast %631 : f32 to vector<1x256xf32>
      %634 = arith.mulf %633, %632 : vector<1x256xf32>
      %635 = arith.addf %630, %634 : vector<1x256xf32>
      %c89 = arith.constant 89 : index
      %636 = memref.load %arg2[%c89] : memref<196xf32, #tpu.memory_space<smem>>
      %c0_350 = arith.constant 0 : index
      %c85_351 = arith.constant 85 : index
      %637 = vector.load %arg7[%c0_350, %c85_351] : memref<1x358xf32, #tpu.memory_space<vmem>>, vector<1x256xf32>
      %638 = vector.broadcast %636 : f32 to vector<1x256xf32>
      %639 = arith.mulf %638, %637 : vector<1x256xf32>
      %640 = arith.addf %635, %639 : vector<1x256xf32>
      %c96_352 = arith.constant 96 : index
      %641 = memref.load %arg2[%c96_352] : memref<196xf32, #tpu.memory_space<smem>>
      %c0_353 = arith.constant 0 : index
      %c101_354 = arith.constant 101 : index
      %642 = vector.load %arg7[%c0_353, %c101_354] : memref<1x358xf32, #tpu.memory_space<vmem>>, vector<1x256xf32>
      %643 = vector.broadcast %641 : f32 to vector<1x256xf32>
      %644 = arith.mulf %643, %642 : vector<1x256xf32>
      %645 = arith.addf %640, %644 : vector<1x256xf32>
      %c0_355 = arith.constant 0 : index
      %c0_356 = arith.constant 0 : index
      %646 = vector.load %arg8[%c0_355, %c0_356] : memref<1x256xf32, #tpu.memory_space<vmem>>, vector<1x256xf32>
      %cst_357 = arith.constant 0.000000e+00 : f32
      %647 = vector.broadcast %cst_357 : f32 to vector<1x256xf32>
      %648 = arith.select %130, %645, %647 : vector<1x256xi1>, vector<1x256xf32>
      %649 = arith.addf %646, %648 : vector<1x256xf32>
      %c0_358 = arith.constant 0 : index
      %c0_359 = arith.constant 0 : index
      %650 = vector.load %arg8[%c0_358, %c0_359] : memref<1x256xf32, #tpu.memory_space<vmem>>, vector<1x256xf32>
      tpu.vector_store %arg8[%c0_358, %c0_359], %649 {strides = array<i32>} : memref<1x256xf32, #tpu.memory_space<vmem>>, vector<1x256xf32>,
      %c55 = arith.constant 55 : index
      %651 = memref.load %arg2[%c55] : memref<196xf32, #tpu.memory_space<smem>>
      %c0_360 = arith.constant 0 : index
      %c6_361 = arith.constant 6 : index
      %652 = vector.load %arg7[%c0_360, %c6_361] : memref<1x358xf32, #tpu.memory_space<vmem>>, vector<1x256xf32>
      %653 = vector.broadcast %651 : f32 to vector<1x256xf32>
      %654 = arith.mulf %653, %652 : vector<1x256xf32>
      %c62 = arith.constant 62 : index
      %655 = memref.load %arg2[%c62] : memref<196xf32, #tpu.memory_space<smem>>
      %c0_362 = arith.constant 0 : index
      %c22_363 = arith.constant 22 : index
      %656 = vector.load %arg7[%c0_362, %c22_363] : memref<1x358xf32, #tpu.memory_space<vmem>>, vector<1x256xf32>
      %657 = vector.broadcast %655 : f32 to vector<1x256xf32>
      %658 = arith.mulf %657, %656 : vector<1x256xf32>
      %659 = arith.addf %654, %658 : vector<1x256xf32>
      %c69_364 = arith.constant 69 : index
      %660 = memref.load %arg2[%c69_364] : memref<196xf32, #tpu.memory_space<smem>>
      %c0_365 = arith.constant 0 : index
      %c38_366 = arith.constant 38 : index
      %661 = vector.load %arg7[%c0_365, %c38_366] : memref<1x358xf32, #tpu.memory_space<vmem>>, vector<1x256xf32>
      %662 = vector.broadcast %660 : f32 to vector<1x256xf32>
      %663 = arith.mulf %662, %661 : vector<1x256xf32>
      %664 = arith.addf %659, %663 : vector<1x256xf32>
      %c76 = arith.constant 76 : index
      %665 = memref.load %arg2[%c76] : memref<196xf32, #tpu.memory_space<smem>>
      %c0_367 = arith.constant 0 : index
      %c54_368 = arith.constant 54 : index
      %666 = vector.load %arg7[%c0_367, %c54_368] : memref<1x358xf32, #tpu.memory_space<vmem>>, vector<1x256xf32>
      %667 = vector.broadcast %665 : f32 to vector<1x256xf32>
      %668 = arith.mulf %667, %666 : vector<1x256xf32>
      %669 = arith.addf %664, %668 : vector<1x256xf32>
      %c83_369 = arith.constant 83 : index
      %670 = memref.load %arg2[%c83_369] : memref<196xf32, #tpu.memory_space<smem>>
      %c0_370 = arith.constant 0 : index
      %c70_371 = arith.constant 70 : index
      %671 = vector.load %arg7[%c0_370, %c70_371] : memref<1x358xf32, #tpu.memory_space<vmem>>, vector<1x256xf32>
      %672 = vector.broadcast %670 : f32 to vector<1x256xf32>
      %673 = arith.mulf %672, %671 : vector<1x256xf32>
      %674 = arith.addf %669, %673 : vector<1x256xf32>
      %c90 = arith.constant 90 : index
      %675 = memref.load %arg2[%c90] : memref<196xf32, #tpu.memory_space<smem>>
      %c0_372 = arith.constant 0 : index
      %c86_373 = arith.constant 86 : index
      %676 = vector.load %arg7[%c0_372, %c86_373] : memref<1x358xf32, #tpu.memory_space<vmem>>, vector<1x256xf32>
      %677 = vector.broadcast %675 : f32 to vector<1x256xf32>
      %678 = arith.mulf %677, %676 : vector<1x256xf32>
      %679 = arith.addf %674, %678 : vector<1x256xf32>
      %c97_374 = arith.constant 97 : index
      %680 = memref.load %arg2[%c97_374] : memref<196xf32, #tpu.memory_space<smem>>
      %c0_375 = arith.constant 0 : index
      %c102_376 = arith.constant 102 : index
      %681 = vector.load %arg7[%c0_375, %c102_376] : memref<1x358xf32, #tpu.memory_space<vmem>>, vector<1x256xf32>
      %682 = vector.broadcast %680 : f32 to vector<1x256xf32>
      %683 = arith.mulf %682, %681 : vector<1x256xf32>
      %684 = arith.addf %679, %683 : vector<1x256xf32>
      %c0_377 = arith.constant 0 : index
      %c0_378 = arith.constant 0 : index
      %685 = vector.load %arg8[%c0_377, %c0_378] : memref<1x256xf32, #tpu.memory_space<vmem>>, vector<1x256xf32>
      %cst_379 = arith.constant 0.000000e+00 : f32
      %686 = vector.broadcast %cst_379 : f32 to vector<1x256xf32>
      %687 = arith.select %135, %684, %686 : vector<1x256xi1>, vector<1x256xf32>
      %688 = arith.addf %685, %687 : vector<1x256xf32>
      %c0_380 = arith.constant 0 : index
      %c0_381 = arith.constant 0 : index
      %689 = vector.load %arg8[%c0_380, %c0_381] : memref<1x256xf32, #tpu.memory_space<vmem>>, vector<1x256xf32>
      tpu.vector_store %arg8[%c0_380, %c0_381], %688 {strides = array<i32>} : memref<1x256xf32, #tpu.memory_space<vmem>>, vector<1x256xf32>,
      %c0_382 = arith.constant 0 : index
      %c51_383 = arith.constant 51 : index
      %690 = vector.load %arg7[%c0_382, %c51_383] : memref<1x358xf32, #tpu.memory_space<vmem>>, vector<1x256xf32>
      tpu.vector_store %arg7[%c0_382, %c51_383], %78 {strides = array<i32>} : memref<1x358xf32, #tpu.memory_space<vmem>>, vector<1x256xf32>,
      %c98_384 = arith.constant 98 : index
      %691 = memref.load %arg2[%c98_384] : memref<196xf32, #tpu.memory_space<smem>>
      %c0_385 = arith.constant 0 : index
      %c0_386 = arith.constant 0 : index
      %692 = vector.load %arg7[%c0_385, %c0_386] : memref<1x358xf32, #tpu.memory_space<vmem>>, vector<1x256xf32>
      %693 = vector.broadcast %691 : f32 to vector<1x256xf32>
      %694 = arith.mulf %693, %692 : vector<1x256xf32>
      %c105 = arith.constant 105 : index
      %695 = memref.load %arg2[%c105] : memref<196xf32, #tpu.memory_space<smem>>
      %c0_387 = arith.constant 0 : index
      %c16_388 = arith.constant 16 : index
      %696 = vector.load %arg7[%c0_387, %c16_388] : memref<1x358xf32, #tpu.memory_space<vmem>>, vector<1x256xf32>
      %697 = vector.broadcast %695 : f32 to vector<1x256xf32>
      %698 = arith.mulf %697, %696 : vector<1x256xf32>
      %699 = arith.addf %694, %698 : vector<1x256xf32>
      %c112 = arith.constant 112 : index
      %700 = memref.load %arg2[%c112] : memref<196xf32, #tpu.memory_space<smem>>
      %c0_389 = arith.constant 0 : index
      %c32_390 = arith.constant 32 : index
      %701 = vector.load %arg7[%c0_389, %c32_390] : memref<1x358xf32, #tpu.memory_space<vmem>>, vector<1x256xf32>
      %702 = vector.broadcast %700 : f32 to vector<1x256xf32>
      %703 = arith.mulf %702, %701 : vector<1x256xf32>
      %704 = arith.addf %699, %703 : vector<1x256xf32>
      %c119 = arith.constant 119 : index
      %705 = memref.load %arg2[%c119] : memref<196xf32, #tpu.memory_space<smem>>
      %c0_391 = arith.constant 0 : index
      %c48_392 = arith.constant 48 : index
      %706 = vector.load %arg7[%c0_391, %c48_392] : memref<1x358xf32, #tpu.memory_space<vmem>>, vector<1x256xf32>
      %707 = vector.broadcast %705 : f32 to vector<1x256xf32>
      %708 = arith.mulf %707, %706 : vector<1x256xf32>
      %709 = arith.addf %704, %708 : vector<1x256xf32>
      %c126 = arith.constant 126 : index
      %710 = memref.load %arg2[%c126] : memref<196xf32, #tpu.memory_space<smem>>
      %c0_393 = arith.constant 0 : index
      %c64_394 = arith.constant 64 : index
      %711 = vector.load %arg7[%c0_393, %c64_394] : memref<1x358xf32, #tpu.memory_space<vmem>>, vector<1x256xf32>
      %712 = vector.broadcast %710 : f32 to vector<1x256xf32>
      %713 = arith.mulf %712, %711 : vector<1x256xf32>
      %714 = arith.addf %709, %713 : vector<1x256xf32>
      %c133 = arith.constant 133 : index
      %715 = memref.load %arg2[%c133] : memref<196xf32, #tpu.memory_space<smem>>
      %c0_395 = arith.constant 0 : index
      %c80_396 = arith.constant 80 : index
      %716 = vector.load %arg7[%c0_395, %c80_396] : memref<1x358xf32, #tpu.memory_space<vmem>>, vector<1x256xf32>
      %717 = vector.broadcast %715 : f32 to vector<1x256xf32>
      %718 = arith.mulf %717, %716 : vector<1x256xf32>
      %719 = arith.addf %714, %718 : vector<1x256xf32>
      %c140 = arith.constant 140 : index
      %720 = memref.load %arg2[%c140] : memref<196xf32, #tpu.memory_space<smem>>
      %c0_397 = arith.constant 0 : index
      %c96_398 = arith.constant 96 : index
      %721 = vector.load %arg7[%c0_397, %c96_398] : memref<1x358xf32, #tpu.memory_space<vmem>>, vector<1x256xf32>
      %722 = vector.broadcast %720 : f32 to vector<1x256xf32>
      %723 = arith.mulf %722, %721 : vector<1x256xf32>
      %724 = arith.addf %719, %723 : vector<1x256xf32>
      %c0_399 = arith.constant 0 : index
      %c0_400 = arith.constant 0 : index
      %725 = vector.load %arg8[%c0_399, %c0_400] : memref<1x256xf32, #tpu.memory_space<vmem>>, vector<1x256xf32>
      %cst_401 = arith.constant 0.000000e+00 : f32
      %726 = vector.broadcast %cst_401 : f32 to vector<1x256xf32>
      %727 = arith.select %105, %724, %726 : vector<1x256xi1>, vector<1x256xf32>
      %728 = arith.addf %725, %727 : vector<1x256xf32>
      %c0_402 = arith.constant 0 : index
      %c0_403 = arith.constant 0 : index
      %729 = vector.load %arg8[%c0_402, %c0_403] : memref<1x256xf32, #tpu.memory_space<vmem>>, vector<1x256xf32>
      tpu.vector_store %arg8[%c0_402, %c0_403], %728 {strides = array<i32>} : memref<1x256xf32, #tpu.memory_space<vmem>>, vector<1x256xf32>,
      %c99_404 = arith.constant 99 : index
      %730 = memref.load %arg2[%c99_404] : memref<196xf32, #tpu.memory_space<smem>>
      %c0_405 = arith.constant 0 : index
      %c1_406 = arith.constant 1 : index
      %731 = vector.load %arg7[%c0_405, %c1_406] : memref<1x358xf32, #tpu.memory_space<vmem>>, vector<1x256xf32>
      %732 = vector.broadcast %730 : f32 to vector<1x256xf32>
      %733 = arith.mulf %732, %731 : vector<1x256xf32>
      %c106 = arith.constant 106 : index
      %734 = memref.load %arg2[%c106] : memref<196xf32, #tpu.memory_space<smem>>
      %c0_407 = arith.constant 0 : index
      %c17_408 = arith.constant 17 : index
      %735 = vector.load %arg7[%c0_407, %c17_408] : memref<1x358xf32, #tpu.memory_space<vmem>>, vector<1x256xf32>
      %736 = vector.broadcast %734 : f32 to vector<1x256xf32>
      %737 = arith.mulf %736, %735 : vector<1x256xf32>
      %738 = arith.addf %733, %737 : vector<1x256xf32>
      %c113 = arith.constant 113 : index
      %739 = memref.load %arg2[%c113] : memref<196xf32, #tpu.memory_space<smem>>
      %c0_409 = arith.constant 0 : index
      %c33_410 = arith.constant 33 : index
      %740 = vector.load %arg7[%c0_409, %c33_410] : memref<1x358xf32, #tpu.memory_space<vmem>>, vector<1x256xf32>
      %741 = vector.broadcast %739 : f32 to vector<1x256xf32>
      %742 = arith.mulf %741, %740 : vector<1x256xf32>
      %743 = arith.addf %738, %742 : vector<1x256xf32>
      %c120 = arith.constant 120 : index
      %744 = memref.load %arg2[%c120] : memref<196xf32, #tpu.memory_space<smem>>
      %c0_411 = arith.constant 0 : index
      %c49_412 = arith.constant 49 : index
      %745 = vector.load %arg7[%c0_411, %c49_412] : memref<1x358xf32, #tpu.memory_space<vmem>>, vector<1x256xf32>
      %746 = vector.broadcast %744 : f32 to vector<1x256xf32>
      %747 = arith.mulf %746, %745 : vector<1x256xf32>
      %748 = arith.addf %743, %747 : vector<1x256xf32>
      %c127 = arith.constant 127 : index
      %749 = memref.load %arg2[%c127] : memref<196xf32, #tpu.memory_space<smem>>
      %c0_413 = arith.constant 0 : index
      %c65_414 = arith.constant 65 : index
      %750 = vector.load %arg7[%c0_413, %c65_414] : memref<1x358xf32, #tpu.memory_space<vmem>>, vector<1x256xf32>
      %751 = vector.broadcast %749 : f32 to vector<1x256xf32>
      %752 = arith.mulf %751, %750 : vector<1x256xf32>
      %753 = arith.addf %748, %752 : vector<1x256xf32>
      %c134 = arith.constant 134 : index
      %754 = memref.load %arg2[%c134] : memref<196xf32, #tpu.memory_space<smem>>
      %c0_415 = arith.constant 0 : index
      %c81_416 = arith.constant 81 : index
      %755 = vector.load %arg7[%c0_415, %c81_416] : memref<1x358xf32, #tpu.memory_space<vmem>>, vector<1x256xf32>
      %756 = vector.broadcast %754 : f32 to vector<1x256xf32>
      %757 = arith.mulf %756, %755 : vector<1x256xf32>
      %758 = arith.addf %753, %757 : vector<1x256xf32>
      %c141 = arith.constant 141 : index
      %759 = memref.load %arg2[%c141] : memref<196xf32, #tpu.memory_space<smem>>
      %c0_417 = arith.constant 0 : index
      %c97_418 = arith.constant 97 : index
      %760 = vector.load %arg7[%c0_417, %c97_418] : memref<1x358xf32, #tpu.memory_space<vmem>>, vector<1x256xf32>
      %761 = vector.broadcast %759 : f32 to vector<1x256xf32>
      %762 = arith.mulf %761, %760 : vector<1x256xf32>
      %763 = arith.addf %758, %762 : vector<1x256xf32>
      %c0_419 = arith.constant 0 : index
      %c0_420 = arith.constant 0 : index
      %764 = vector.load %arg8[%c0_419, %c0_420] : memref<1x256xf32, #tpu.memory_space<vmem>>, vector<1x256xf32>
      %cst_421 = arith.constant 0.000000e+00 : f32
      %765 = vector.broadcast %cst_421 : f32 to vector<1x256xf32>
      %766 = arith.select %110, %763, %765 : vector<1x256xi1>, vector<1x256xf32>
      %767 = arith.addf %764, %766 : vector<1x256xf32>
      %c0_422 = arith.constant 0 : index
      %c0_423 = arith.constant 0 : index
      %768 = vector.load %arg8[%c0_422, %c0_423] : memref<1x256xf32, #tpu.memory_space<vmem>>, vector<1x256xf32>
      tpu.vector_store %arg8[%c0_422, %c0_423], %767 {strides = array<i32>} : memref<1x256xf32, #tpu.memory_space<vmem>>, vector<1x256xf32>,
      %c100_424 = arith.constant 100 : index
      %769 = memref.load %arg2[%c100_424] : memref<196xf32, #tpu.memory_space<smem>>
      %c0_425 = arith.constant 0 : index
      %c2_426 = arith.constant 2 : index
      %770 = vector.load %arg7[%c0_425, %c2_426] : memref<1x358xf32, #tpu.memory_space<vmem>>, vector<1x256xf32>
      %771 = vector.broadcast %769 : f32 to vector<1x256xf32>
      %772 = arith.mulf %771, %770 : vector<1x256xf32>
      %c107 = arith.constant 107 : index
      %773 = memref.load %arg2[%c107] : memref<196xf32, #tpu.memory_space<smem>>
      %c0_427 = arith.constant 0 : index
      %c18_428 = arith.constant 18 : index
      %774 = vector.load %arg7[%c0_427, %c18_428] : memref<1x358xf32, #tpu.memory_space<vmem>>, vector<1x256xf32>
      %775 = vector.broadcast %773 : f32 to vector<1x256xf32>
      %776 = arith.mulf %775, %774 : vector<1x256xf32>
      %777 = arith.addf %772, %776 : vector<1x256xf32>
      %c114 = arith.constant 114 : index
      %778 = memref.load %arg2[%c114] : memref<196xf32, #tpu.memory_space<smem>>
      %c0_429 = arith.constant 0 : index
      %c34_430 = arith.constant 34 : index
      %779 = vector.load %arg7[%c0_429, %c34_430] : memref<1x358xf32, #tpu.memory_space<vmem>>, vector<1x256xf32>
      %780 = vector.broadcast %778 : f32 to vector<1x256xf32>
      %781 = arith.mulf %780, %779 : vector<1x256xf32>
      %782 = arith.addf %777, %781 : vector<1x256xf32>
      %c121 = arith.constant 121 : index
      %783 = memref.load %arg2[%c121] : memref<196xf32, #tpu.memory_space<smem>>
      %c0_431 = arith.constant 0 : index
      %c50_432 = arith.constant 50 : index
      %784 = vector.load %arg7[%c0_431, %c50_432] : memref<1x358xf32, #tpu.memory_space<vmem>>, vector<1x256xf32>
      %785 = vector.broadcast %783 : f32 to vector<1x256xf32>
      %786 = arith.mulf %785, %784 : vector<1x256xf32>
      %787 = arith.addf %782, %786 : vector<1x256xf32>
      %c128 = arith.constant 128 : index
      %788 = memref.load %arg2[%c128] : memref<196xf32, #tpu.memory_space<smem>>
      %c0_433 = arith.constant 0 : index
      %c66_434 = arith.constant 66 : index
      %789 = vector.load %arg7[%c0_433, %c66_434] : memref<1x358xf32, #tpu.memory_space<vmem>>, vector<1x256xf32>
      %790 = vector.broadcast %788 : f32 to vector<1x256xf32>
      %791 = arith.mulf %790, %789 : vector<1x256xf32>
      %792 = arith.addf %787, %791 : vector<1x256xf32>
      %c135 = arith.constant 135 : index
      %793 = memref.load %arg2[%c135] : memref<196xf32, #tpu.memory_space<smem>>
      %c0_435 = arith.constant 0 : index
      %c82_436 = arith.constant 82 : index
      %794 = vector.load %arg7[%c0_435, %c82_436] : memref<1x358xf32, #tpu.memory_space<vmem>>, vector<1x256xf32>
      %795 = vector.broadcast %793 : f32 to vector<1x256xf32>
      %796 = arith.mulf %795, %794 : vector<1x256xf32>
      %797 = arith.addf %792, %796 : vector<1x256xf32>
      %c142 = arith.constant 142 : index
      %798 = memref.load %arg2[%c142] : memref<196xf32, #tpu.memory_space<smem>>
      %c0_437 = arith.constant 0 : index
      %c98_438 = arith.constant 98 : index
      %799 = vector.load %arg7[%c0_437, %c98_438] : memref<1x358xf32, #tpu.memory_space<vmem>>, vector<1x256xf32>
      %800 = vector.broadcast %798 : f32 to vector<1x256xf32>
      %801 = arith.mulf %800, %799 : vector<1x256xf32>
      %802 = arith.addf %797, %801 : vector<1x256xf32>
      %c0_439 = arith.constant 0 : index
      %c0_440 = arith.constant 0 : index
      %803 = vector.load %arg8[%c0_439, %c0_440] : memref<1x256xf32, #tpu.memory_space<vmem>>, vector<1x256xf32>
      %cst_441 = arith.constant 0.000000e+00 : f32
      %804 = vector.broadcast %cst_441 : f32 to vector<1x256xf32>
      %805 = arith.select %115, %802, %804 : vector<1x256xi1>, vector<1x256xf32>
      %806 = arith.addf %803, %805 : vector<1x256xf32>
      %c0_442 = arith.constant 0 : index
      %c0_443 = arith.constant 0 : index
      %807 = vector.load %arg8[%c0_442, %c0_443] : memref<1x256xf32, #tpu.memory_space<vmem>>, vector<1x256xf32>
      tpu.vector_store %arg8[%c0_442, %c0_443], %806 {strides = array<i32>} : memref<1x256xf32, #tpu.memory_space<vmem>>, vector<1x256xf32>,
      %c101_444 = arith.constant 101 : index
      %808 = memref.load %arg2[%c101_444] : memref<196xf32, #tpu.memory_space<smem>>
      %c0_445 = arith.constant 0 : index
      %c3_446 = arith.constant 3 : index
      %809 = vector.load %arg7[%c0_445, %c3_446] : memref<1x358xf32, #tpu.memory_space<vmem>>, vector<1x256xf32>
      %810 = vector.broadcast %808 : f32 to vector<1x256xf32>
      %811 = arith.mulf %810, %809 : vector<1x256xf32>
      %c108 = arith.constant 108 : index
      %812 = memref.load %arg2[%c108] : memref<196xf32, #tpu.memory_space<smem>>
      %c0_447 = arith.constant 0 : index
      %c19_448 = arith.constant 19 : index
      %813 = vector.load %arg7[%c0_447, %c19_448] : memref<1x358xf32, #tpu.memory_space<vmem>>, vector<1x256xf32>
      %814 = vector.broadcast %812 : f32 to vector<1x256xf32>
      %815 = arith.mulf %814, %813 : vector<1x256xf32>
      %816 = arith.addf %811, %815 : vector<1x256xf32>
      %c115 = arith.constant 115 : index
      %817 = memref.load %arg2[%c115] : memref<196xf32, #tpu.memory_space<smem>>
      %c0_449 = arith.constant 0 : index
      %c35_450 = arith.constant 35 : index
      %818 = vector.load %arg7[%c0_449, %c35_450] : memref<1x358xf32, #tpu.memory_space<vmem>>, vector<1x256xf32>
      %819 = vector.broadcast %817 : f32 to vector<1x256xf32>
      %820 = arith.mulf %819, %818 : vector<1x256xf32>
      %821 = arith.addf %816, %820 : vector<1x256xf32>
      %c122 = arith.constant 122 : index
      %822 = memref.load %arg2[%c122] : memref<196xf32, #tpu.memory_space<smem>>
      %c0_451 = arith.constant 0 : index
      %c51_452 = arith.constant 51 : index
      %823 = vector.load %arg7[%c0_451, %c51_452] : memref<1x358xf32, #tpu.memory_space<vmem>>, vector<1x256xf32>
      %824 = vector.broadcast %822 : f32 to vector<1x256xf32>
      %825 = arith.mulf %824, %823 : vector<1x256xf32>
      %826 = arith.addf %821, %825 : vector<1x256xf32>
      %c129 = arith.constant 129 : index
      %827 = memref.load %arg2[%c129] : memref<196xf32, #tpu.memory_space<smem>>
      %c0_453 = arith.constant 0 : index
      %c67_454 = arith.constant 67 : index
      %828 = vector.load %arg7[%c0_453, %c67_454] : memref<1x358xf32, #tpu.memory_space<vmem>>, vector<1x256xf32>
      %829 = vector.broadcast %827 : f32 to vector<1x256xf32>
      %830 = arith.mulf %829, %828 : vector<1x256xf32>
      %831 = arith.addf %826, %830 : vector<1x256xf32>
      %c136 = arith.constant 136 : index
      %832 = memref.load %arg2[%c136] : memref<196xf32, #tpu.memory_space<smem>>
      %c0_455 = arith.constant 0 : index
      %c83_456 = arith.constant 83 : index
      %833 = vector.load %arg7[%c0_455, %c83_456] : memref<1x358xf32, #tpu.memory_space<vmem>>, vector<1x256xf32>
      %834 = vector.broadcast %832 : f32 to vector<1x256xf32>
      %835 = arith.mulf %834, %833 : vector<1x256xf32>
      %836 = arith.addf %831, %835 : vector<1x256xf32>
      %c143 = arith.constant 143 : index
      %837 = memref.load %arg2[%c143] : memref<196xf32, #tpu.memory_space<smem>>
      %c0_457 = arith.constant 0 : index
      %c99_458 = arith.constant 99 : index
      %838 = vector.load %arg7[%c0_457, %c99_458] : memref<1x358xf32, #tpu.memory_space<vmem>>, vector<1x256xf32>
      %839 = vector.broadcast %837 : f32 to vector<1x256xf32>
      %840 = arith.mulf %839, %838 : vector<1x256xf32>
      %841 = arith.addf %836, %840 : vector<1x256xf32>
      %c0_459 = arith.constant 0 : index
      %c0_460 = arith.constant 0 : index
      %842 = vector.load %arg8[%c0_459, %c0_460] : memref<1x256xf32, #tpu.memory_space<vmem>>, vector<1x256xf32>
      %cst_461 = arith.constant 0.000000e+00 : f32
      %843 = vector.broadcast %cst_461 : f32 to vector<1x256xf32>
      %844 = arith.select %120, %841, %843 : vector<1x256xi1>, vector<1x256xf32>
      %845 = arith.addf %842, %844 : vector<1x256xf32>
      %c0_462 = arith.constant 0 : index
      %c0_463 = arith.constant 0 : index
      %846 = vector.load %arg8[%c0_462, %c0_463] : memref<1x256xf32, #tpu.memory_space<vmem>>, vector<1x256xf32>
      tpu.vector_store %arg8[%c0_462, %c0_463], %845 {strides = array<i32>} : memref<1x256xf32, #tpu.memory_space<vmem>>, vector<1x256xf32>,
      %c102_464 = arith.constant 102 : index
      %847 = memref.load %arg2[%c102_464] : memref<196xf32, #tpu.memory_space<smem>>
      %c0_465 = arith.constant 0 : index
      %c4_466 = arith.constant 4 : index
      %848 = vector.load %arg7[%c0_465, %c4_466] : memref<1x358xf32, #tpu.memory_space<vmem>>, vector<1x256xf32>
      %849 = vector.broadcast %847 : f32 to vector<1x256xf32>
      %850 = arith.mulf %849, %848 : vector<1x256xf32>
      %c109 = arith.constant 109 : index
      %851 = memref.load %arg2[%c109] : memref<196xf32, #tpu.memory_space<smem>>
      %c0_467 = arith.constant 0 : index
      %c20_468 = arith.constant 20 : index
      %852 = vector.load %arg7[%c0_467, %c20_468] : memref<1x358xf32, #tpu.memory_space<vmem>>, vector<1x256xf32>
      %853 = vector.broadcast %851 : f32 to vector<1x256xf32>
      %854 = arith.mulf %853, %852 : vector<1x256xf32>
      %855 = arith.addf %850, %854 : vector<1x256xf32>
      %c116 = arith.constant 116 : index
      %856 = memref.load %arg2[%c116] : memref<196xf32, #tpu.memory_space<smem>>
      %c0_469 = arith.constant 0 : index
      %c36_470 = arith.constant 36 : index
      %857 = vector.load %arg7[%c0_469, %c36_470] : memref<1x358xf32, #tpu.memory_space<vmem>>, vector<1x256xf32>
      %858 = vector.broadcast %856 : f32 to vector<1x256xf32>
      %859 = arith.mulf %858, %857 : vector<1x256xf32>
      %860 = arith.addf %855, %859 : vector<1x256xf32>
      %c123 = arith.constant 123 : index
      %861 = memref.load %arg2[%c123] : memref<196xf32, #tpu.memory_space<smem>>
      %c0_471 = arith.constant 0 : index
      %c52_472 = arith.constant 52 : index
      %862 = vector.load %arg7[%c0_471, %c52_472] : memref<1x358xf32, #tpu.memory_space<vmem>>, vector<1x256xf32>
      %863 = vector.broadcast %861 : f32 to vector<1x256xf32>
      %864 = arith.mulf %863, %862 : vector<1x256xf32>
      %865 = arith.addf %860, %864 : vector<1x256xf32>
      %c130 = arith.constant 130 : index
      %866 = memref.load %arg2[%c130] : memref<196xf32, #tpu.memory_space<smem>>
      %c0_473 = arith.constant 0 : index
      %c68_474 = arith.constant 68 : index
      %867 = vector.load %arg7[%c0_473, %c68_474] : memref<1x358xf32, #tpu.memory_space<vmem>>, vector<1x256xf32>
      %868 = vector.broadcast %866 : f32 to vector<1x256xf32>
      %869 = arith.mulf %868, %867 : vector<1x256xf32>
      %870 = arith.addf %865, %869 : vector<1x256xf32>
      %c137 = arith.constant 137 : index
      %871 = memref.load %arg2[%c137] : memref<196xf32, #tpu.memory_space<smem>>
      %c0_475 = arith.constant 0 : index
      %c84_476 = arith.constant 84 : index
      %872 = vector.load %arg7[%c0_475, %c84_476] : memref<1x358xf32, #tpu.memory_space<vmem>>, vector<1x256xf32>
      %873 = vector.broadcast %871 : f32 to vector<1x256xf32>
      %874 = arith.mulf %873, %872 : vector<1x256xf32>
      %875 = arith.addf %870, %874 : vector<1x256xf32>
      %c144 = arith.constant 144 : index
      %876 = memref.load %arg2[%c144] : memref<196xf32, #tpu.memory_space<smem>>
      %c0_477 = arith.constant 0 : index
      %c100_478 = arith.constant 100 : index
      %877 = vector.load %arg7[%c0_477, %c100_478] : memref<1x358xf32, #tpu.memory_space<vmem>>, vector<1x256xf32>
      %878 = vector.broadcast %876 : f32 to vector<1x256xf32>
      %879 = arith.mulf %878, %877 : vector<1x256xf32>
      %880 = arith.addf %875, %879 : vector<1x256xf32>
      %c0_479 = arith.constant 0 : index
      %c0_480 = arith.constant 0 : index
      %881 = vector.load %arg8[%c0_479, %c0_480] : memref<1x256xf32, #tpu.memory_space<vmem>>, vector<1x256xf32>
      %cst_481 = arith.constant 0.000000e+00 : f32
      %882 = vector.broadcast %cst_481 : f32 to vector<1x256xf32>
      %883 = arith.select %125, %880, %882 : vector<1x256xi1>, vector<1x256xf32>
      %884 = arith.addf %881, %883 : vector<1x256xf32>
      %c0_482 = arith.constant 0 : index
      %c0_483 = arith.constant 0 : index
      %885 = vector.load %arg8[%c0_482, %c0_483] : memref<1x256xf32, #tpu.memory_space<vmem>>, vector<1x256xf32>
      tpu.vector_store %arg8[%c0_482, %c0_483], %884 {strides = array<i32>} : memref<1x256xf32, #tpu.memory_space<vmem>>, vector<1x256xf32>,
      %c103 = arith.constant 103 : index
      %886 = memref.load %arg2[%c103] : memref<196xf32, #tpu.memory_space<smem>>
      %c0_484 = arith.constant 0 : index
      %c5_485 = arith.constant 5 : index
      %887 = vector.load %arg7[%c0_484, %c5_485] : memref<1x358xf32, #tpu.memory_space<vmem>>, vector<1x256xf32>
      %888 = vector.broadcast %886 : f32 to vector<1x256xf32>
      %889 = arith.mulf %888, %887 : vector<1x256xf32>
      %c110 = arith.constant 110 : index
      %890 = memref.load %arg2[%c110] : memref<196xf32, #tpu.memory_space<smem>>
      %c0_486 = arith.constant 0 : index
      %c21_487 = arith.constant 21 : index
      %891 = vector.load %arg7[%c0_486, %c21_487] : memref<1x358xf32, #tpu.memory_space<vmem>>, vector<1x256xf32>
      %892 = vector.broadcast %890 : f32 to vector<1x256xf32>
      %893 = arith.mulf %892, %891 : vector<1x256xf32>
      %894 = arith.addf %889, %893 : vector<1x256xf32>
      %c117 = arith.constant 117 : index
      %895 = memref.load %arg2[%c117] : memref<196xf32, #tpu.memory_space<smem>>
      %c0_488 = arith.constant 0 : index
      %c37_489 = arith.constant 37 : index
      %896 = vector.load %arg7[%c0_488, %c37_489] : memref<1x358xf32, #tpu.memory_space<vmem>>, vector<1x256xf32>
      %897 = vector.broadcast %895 : f32 to vector<1x256xf32>
      %898 = arith.mulf %897, %896 : vector<1x256xf32>
      %899 = arith.addf %894, %898 : vector<1x256xf32>
      %c124 = arith.constant 124 : index
      %900 = memref.load %arg2[%c124] : memref<196xf32, #tpu.memory_space<smem>>
      %c0_490 = arith.constant 0 : index
      %c53_491 = arith.constant 53 : index
      %901 = vector.load %arg7[%c0_490, %c53_491] : memref<1x358xf32, #tpu.memory_space<vmem>>, vector<1x256xf32>
      %902 = vector.broadcast %900 : f32 to vector<1x256xf32>
      %903 = arith.mulf %902, %901 : vector<1x256xf32>
      %904 = arith.addf %899, %903 : vector<1x256xf32>
      %c131 = arith.constant 131 : index
      %905 = memref.load %arg2[%c131] : memref<196xf32, #tpu.memory_space<smem>>
      %c0_492 = arith.constant 0 : index
      %c69_493 = arith.constant 69 : index
      %906 = vector.load %arg7[%c0_492, %c69_493] : memref<1x358xf32, #tpu.memory_space<vmem>>, vector<1x256xf32>
      %907 = vector.broadcast %905 : f32 to vector<1x256xf32>
      %908 = arith.mulf %907, %906 : vector<1x256xf32>
      %909 = arith.addf %904, %908 : vector<1x256xf32>
      %c138 = arith.constant 138 : index
      %910 = memref.load %arg2[%c138] : memref<196xf32, #tpu.memory_space<smem>>
      %c0_494 = arith.constant 0 : index
      %c85_495 = arith.constant 85 : index
      %911 = vector.load %arg7[%c0_494, %c85_495] : memref<1x358xf32, #tpu.memory_space<vmem>>, vector<1x256xf32>
      %912 = vector.broadcast %910 : f32 to vector<1x256xf32>
      %913 = arith.mulf %912, %911 : vector<1x256xf32>
      %914 = arith.addf %909, %913 : vector<1x256xf32>
      %c145 = arith.constant 145 : index
      %915 = memref.load %arg2[%c145] : memref<196xf32, #tpu.memory_space<smem>>
      %c0_496 = arith.constant 0 : index
      %c101_497 = arith.constant 101 : index
      %916 = vector.load %arg7[%c0_496, %c101_497] : memref<1x358xf32, #tpu.memory_space<vmem>>, vector<1x256xf32>
      %917 = vector.broadcast %915 : f32 to vector<1x256xf32>
      %918 = arith.mulf %917, %916 : vector<1x256xf32>
      %919 = arith.addf %914, %918 : vector<1x256xf32>
      %c0_498 = arith.constant 0 : index
      %c0_499 = arith.constant 0 : index
      %920 = vector.load %arg8[%c0_498, %c0_499] : memref<1x256xf32, #tpu.memory_space<vmem>>, vector<1x256xf32>
      %cst_500 = arith.constant 0.000000e+00 : f32
      %921 = vector.broadcast %cst_500 : f32 to vector<1x256xf32>
      %922 = arith.select %130, %919, %921 : vector<1x256xi1>, vector<1x256xf32>
      %923 = arith.addf %920, %922 : vector<1x256xf32>
      %c0_501 = arith.constant 0 : index
      %c0_502 = arith.constant 0 : index
      %924 = vector.load %arg8[%c0_501, %c0_502] : memref<1x256xf32, #tpu.memory_space<vmem>>, vector<1x256xf32>
      tpu.vector_store %arg8[%c0_501, %c0_502], %923 {strides = array<i32>} : memref<1x256xf32, #tpu.memory_space<vmem>>, vector<1x256xf32>,
      %c104 = arith.constant 104 : index
      %925 = memref.load %arg2[%c104] : memref<196xf32, #tpu.memory_space<smem>>
      %c0_503 = arith.constant 0 : index
      %c6_504 = arith.constant 6 : index
      %926 = vector.load %arg7[%c0_503, %c6_504] : memref<1x358xf32, #tpu.memory_space<vmem>>, vector<1x256xf32>
      %927 = vector.broadcast %925 : f32 to vector<1x256xf32>
      %928 = arith.mulf %927, %926 : vector<1x256xf32>
      %c111 = arith.constant 111 : index
      %929 = memref.load %arg2[%c111] : memref<196xf32, #tpu.memory_space<smem>>
      %c0_505 = arith.constant 0 : index
      %c22_506 = arith.constant 22 : index
      %930 = vector.load %arg7[%c0_505, %c22_506] : memref<1x358xf32, #tpu.memory_space<vmem>>, vector<1x256xf32>
      %931 = vector.broadcast %929 : f32 to vector<1x256xf32>
      %932 = arith.mulf %931, %930 : vector<1x256xf32>
      %933 = arith.addf %928, %932 : vector<1x256xf32>
      %c118 = arith.constant 118 : index
      %934 = memref.load %arg2[%c118] : memref<196xf32, #tpu.memory_space<smem>>
      %c0_507 = arith.constant 0 : index
      %c38_508 = arith.constant 38 : index
      %935 = vector.load %arg7[%c0_507, %c38_508] : memref<1x358xf32, #tpu.memory_space<vmem>>, vector<1x256xf32>
      %936 = vector.broadcast %934 : f32 to vector<1x256xf32>
      %937 = arith.mulf %936, %935 : vector<1x256xf32>
      %938 = arith.addf %933, %937 : vector<1x256xf32>
      %c125 = arith.constant 125 : index
      %939 = memref.load %arg2[%c125] : memref<196xf32, #tpu.memory_space<smem>>
      %c0_509 = arith.constant 0 : index
      %c54_510 = arith.constant 54 : index
      %940 = vector.load %arg7[%c0_509, %c54_510] : memref<1x358xf32, #tpu.memory_space<vmem>>, vector<1x256xf32>
      %941 = vector.broadcast %939 : f32 to vector<1x256xf32>
      %942 = arith.mulf %941, %940 : vector<1x256xf32>
      %943 = arith.addf %938, %942 : vector<1x256xf32>
      %c132 = arith.constant 132 : index
      %944 = memref.load %arg2[%c132] : memref<196xf32, #tpu.memory_space<smem>>
      %c0_511 = arith.constant 0 : index
      %c70_512 = arith.constant 70 : index
      %945 = vector.load %arg7[%c0_511, %c70_512] : memref<1x358xf32, #tpu.memory_space<vmem>>, vector<1x256xf32>
      %946 = vector.broadcast %944 : f32 to vector<1x256xf32>
      %947 = arith.mulf %946, %945 : vector<1x256xf32>
      %948 = arith.addf %943, %947 : vector<1x256xf32>
      %c139 = arith.constant 139 : index
      %949 = memref.load %arg2[%c139] : memref<196xf32, #tpu.memory_space<smem>>
      %c0_513 = arith.constant 0 : index
      %c86_514 = arith.constant 86 : index
      %950 = vector.load %arg7[%c0_513, %c86_514] : memref<1x358xf32, #tpu.memory_space<vmem>>, vector<1x256xf32>
      %951 = vector.broadcast %949 : f32 to vector<1x256xf32>
      %952 = arith.mulf %951, %950 : vector<1x256xf32>
      %953 = arith.addf %948, %952 : vector<1x256xf32>
      %c146 = arith.constant 146 : index
      %954 = memref.load %arg2[%c146] : memref<196xf32, #tpu.memory_space<smem>>
      %c0_515 = arith.constant 0 : index
      %c102_516 = arith.constant 102 : index
      %955 = vector.load %arg7[%c0_515, %c102_516] : memref<1x358xf32, #tpu.memory_space<vmem>>, vector<1x256xf32>
      %956 = vector.broadcast %954 : f32 to vector<1x256xf32>
      %957 = arith.mulf %956, %955 : vector<1x256xf32>
      %958 = arith.addf %953, %957 : vector<1x256xf32>
      %c0_517 = arith.constant 0 : index
      %c0_518 = arith.constant 0 : index
      %959 = vector.load %arg8[%c0_517, %c0_518] : memref<1x256xf32, #tpu.memory_space<vmem>>, vector<1x256xf32>
      %cst_519 = arith.constant 0.000000e+00 : f32
      %960 = vector.broadcast %cst_519 : f32 to vector<1x256xf32>
      %961 = arith.select %135, %958, %960 : vector<1x256xi1>, vector<1x256xf32>
      %962 = arith.addf %959, %961 : vector<1x256xf32>
      %c0_520 = arith.constant 0 : index
      %c0_521 = arith.constant 0 : index
      %963 = vector.load %arg8[%c0_520, %c0_521] : memref<1x256xf32, #tpu.memory_space<vmem>>, vector<1x256xf32>
      tpu.vector_store %arg8[%c0_520, %c0_521], %962 {strides = array<i32>} : memref<1x256xf32, #tpu.memory_space<vmem>>, vector<1x256xf32>,
      %c0_522 = arith.constant 0 : index
      %c51_523 = arith.constant 51 : index
      %964 = vector.load %arg7[%c0_522, %c51_523] : memref<1x358xf32, #tpu.memory_space<vmem>>, vector<1x256xf32>
      tpu.vector_store %arg7[%c0_522, %c51_523], %81 {strides = array<i32>} : memref<1x358xf32, #tpu.memory_space<vmem>>, vector<1x256xf32>,
      %c147 = arith.constant 147 : index
      %965 = memref.load %arg2[%c147] : memref<196xf32, #tpu.memory_space<smem>>
      %c0_524 = arith.constant 0 : index
      %c0_525 = arith.constant 0 : index
      %966 = vector.load %arg7[%c0_524, %c0_525] : memref<1x358xf32, #tpu.memory_space<vmem>>, vector<1x256xf32>
      %967 = vector.broadcast %965 : f32 to vector<1x256xf32>
      %968 = arith.mulf %967, %966 : vector<1x256xf32>
      %c154 = arith.constant 154 : index
      %969 = memref.load %arg2[%c154] : memref<196xf32, #tpu.memory_space<smem>>
      %c0_526 = arith.constant 0 : index
      %c16_527 = arith.constant 16 : index
      %970 = vector.load %arg7[%c0_526, %c16_527] : memref<1x358xf32, #tpu.memory_space<vmem>>, vector<1x256xf32>
      %971 = vector.broadcast %969 : f32 to vector<1x256xf32>
      %972 = arith.mulf %971, %970 : vector<1x256xf32>
      %973 = arith.addf %968, %972 : vector<1x256xf32>
      %c161 = arith.constant 161 : index
      %974 = memref.load %arg2[%c161] : memref<196xf32, #tpu.memory_space<smem>>
      %c0_528 = arith.constant 0 : index
      %c32_529 = arith.constant 32 : index
      %975 = vector.load %arg7[%c0_528, %c32_529] : memref<1x358xf32, #tpu.memory_space<vmem>>, vector<1x256xf32>
      %976 = vector.broadcast %974 : f32 to vector<1x256xf32>
      %977 = arith.mulf %976, %975 : vector<1x256xf32>
      %978 = arith.addf %973, %977 : vector<1x256xf32>
      %c168 = arith.constant 168 : index
      %979 = memref.load %arg2[%c168] : memref<196xf32, #tpu.memory_space<smem>>
      %c0_530 = arith.constant 0 : index
      %c48_531 = arith.constant 48 : index
      %980 = vector.load %arg7[%c0_530, %c48_531] : memref<1x358xf32, #tpu.memory_space<vmem>>, vector<1x256xf32>
      %981 = vector.broadcast %979 : f32 to vector<1x256xf32>
      %982 = arith.mulf %981, %980 : vector<1x256xf32>
      %983 = arith.addf %978, %982 : vector<1x256xf32>
      %c175 = arith.constant 175 : index
      %984 = memref.load %arg2[%c175] : memref<196xf32, #tpu.memory_space<smem>>
      %c0_532 = arith.constant 0 : index
      %c64_533 = arith.constant 64 : index
      %985 = vector.load %arg7[%c0_532, %c64_533] : memref<1x358xf32, #tpu.memory_space<vmem>>, vector<1x256xf32>
      %986 = vector.broadcast %984 : f32 to vector<1x256xf32>
      %987 = arith.mulf %986, %985 : vector<1x256xf32>
      %988 = arith.addf %983, %987 : vector<1x256xf32>
      %c182 = arith.constant 182 : index
      %989 = memref.load %arg2[%c182] : memref<196xf32, #tpu.memory_space<smem>>
      %c0_534 = arith.constant 0 : index
      %c80_535 = arith.constant 80 : index
      %990 = vector.load %arg7[%c0_534, %c80_535] : memref<1x358xf32, #tpu.memory_space<vmem>>, vector<1x256xf32>
      %991 = vector.broadcast %989 : f32 to vector<1x256xf32>
      %992 = arith.mulf %991, %990 : vector<1x256xf32>
      %993 = arith.addf %988, %992 : vector<1x256xf32>
      %c189 = arith.constant 189 : index
      %994 = memref.load %arg2[%c189] : memref<196xf32, #tpu.memory_space<smem>>
      %c0_536 = arith.constant 0 : index
      %c96_537 = arith.constant 96 : index
      %995 = vector.load %arg7[%c0_536, %c96_537] : memref<1x358xf32, #tpu.memory_space<vmem>>, vector<1x256xf32>
      %996 = vector.broadcast %994 : f32 to vector<1x256xf32>
      %997 = arith.mulf %996, %995 : vector<1x256xf32>
      %998 = arith.addf %993, %997 : vector<1x256xf32>
      %c0_538 = arith.constant 0 : index
      %c0_539 = arith.constant 0 : index
      %999 = vector.load %arg8[%c0_538, %c0_539] : memref<1x256xf32, #tpu.memory_space<vmem>>, vector<1x256xf32>
      %cst_540 = arith.constant 0.000000e+00 : f32
      %1000 = vector.broadcast %cst_540 : f32 to vector<1x256xf32>
      %1001 = arith.select %105, %998, %1000 : vector<1x256xi1>, vector<1x256xf32>
      %1002 = arith.addf %999, %1001 : vector<1x256xf32>
      %c0_541 = arith.constant 0 : index
      %c0_542 = arith.constant 0 : index
      %1003 = vector.load %arg8[%c0_541, %c0_542] : memref<1x256xf32, #tpu.memory_space<vmem>>, vector<1x256xf32>
      tpu.vector_store %arg8[%c0_541, %c0_542], %1002 {strides = array<i32>} : memref<1x256xf32, #tpu.memory_space<vmem>>, vector<1x256xf32>,
      %c148 = arith.constant 148 : index
      %1004 = memref.load %arg2[%c148] : memref<196xf32, #tpu.memory_space<smem>>
      %c0_543 = arith.constant 0 : index
      %c1_544 = arith.constant 1 : index
      %1005 = vector.load %arg7[%c0_543, %c1_544] : memref<1x358xf32, #tpu.memory_space<vmem>>, vector<1x256xf32>
      %1006 = vector.broadcast %1004 : f32 to vector<1x256xf32>
      %1007 = arith.mulf %1006, %1005 : vector<1x256xf32>
      %c155 = arith.constant 155 : index
      %1008 = memref.load %arg2[%c155] : memref<196xf32, #tpu.memory_space<smem>>
      %c0_545 = arith.constant 0 : index
      %c17_546 = arith.constant 17 : index
      %1009 = vector.load %arg7[%c0_545, %c17_546] : memref<1x358xf32, #tpu.memory_space<vmem>>, vector<1x256xf32>
      %1010 = vector.broadcast %1008 : f32 to vector<1x256xf32>
      %1011 = arith.mulf %1010, %1009 : vector<1x256xf32>
      %1012 = arith.addf %1007, %1011 : vector<1x256xf32>
      %c162 = arith.constant 162 : index
      %1013 = memref.load %arg2[%c162] : memref<196xf32, #tpu.memory_space<smem>>
      %c0_547 = arith.constant 0 : index
      %c33_548 = arith.constant 33 : index
      %1014 = vector.load %arg7[%c0_547, %c33_548] : memref<1x358xf32, #tpu.memory_space<vmem>>, vector<1x256xf32>
      %1015 = vector.broadcast %1013 : f32 to vector<1x256xf32>
      %1016 = arith.mulf %1015, %1014 : vector<1x256xf32>
      %1017 = arith.addf %1012, %1016 : vector<1x256xf32>
      %c169 = arith.constant 169 : index
      %1018 = memref.load %arg2[%c169] : memref<196xf32, #tpu.memory_space<smem>>
      %c0_549 = arith.constant 0 : index
      %c49_550 = arith.constant 49 : index
      %1019 = vector.load %arg7[%c0_549, %c49_550] : memref<1x358xf32, #tpu.memory_space<vmem>>, vector<1x256xf32>
      %1020 = vector.broadcast %1018 : f32 to vector<1x256xf32>
      %1021 = arith.mulf %1020, %1019 : vector<1x256xf32>
      %1022 = arith.addf %1017, %1021 : vector<1x256xf32>
      %c176 = arith.constant 176 : index
      %1023 = memref.load %arg2[%c176] : memref<196xf32, #tpu.memory_space<smem>>
      %c0_551 = arith.constant 0 : index
      %c65_552 = arith.constant 65 : index
      %1024 = vector.load %arg7[%c0_551, %c65_552] : memref<1x358xf32, #tpu.memory_space<vmem>>, vector<1x256xf32>
      %1025 = vector.broadcast %1023 : f32 to vector<1x256xf32>
      %1026 = arith.mulf %1025, %1024 : vector<1x256xf32>
      %1027 = arith.addf %1022, %1026 : vector<1x256xf32>
      %c183 = arith.constant 183 : index
      %1028 = memref.load %arg2[%c183] : memref<196xf32, #tpu.memory_space<smem>>
      %c0_553 = arith.constant 0 : index
      %c81_554 = arith.constant 81 : index
      %1029 = vector.load %arg7[%c0_553, %c81_554] : memref<1x358xf32, #tpu.memory_space<vmem>>, vector<1x256xf32>
      %1030 = vector.broadcast %1028 : f32 to vector<1x256xf32>
      %1031 = arith.mulf %1030, %1029 : vector<1x256xf32>
      %1032 = arith.addf %1027, %1031 : vector<1x256xf32>
      %c190 = arith.constant 190 : index
      %1033 = memref.load %arg2[%c190] : memref<196xf32, #tpu.memory_space<smem>>
      %c0_555 = arith.constant 0 : index
      %c97_556 = arith.constant 97 : index
      %1034 = vector.load %arg7[%c0_555, %c97_556] : memref<1x358xf32, #tpu.memory_space<vmem>>, vector<1x256xf32>
      %1035 = vector.broadcast %1033 : f32 to vector<1x256xf32>
      %1036 = arith.mulf %1035, %1034 : vector<1x256xf32>
      %1037 = arith.addf %1032, %1036 : vector<1x256xf32>
      %c0_557 = arith.constant 0 : index
      %c0_558 = arith.constant 0 : index
      %1038 = vector.load %arg8[%c0_557, %c0_558] : memref<1x256xf32, #tpu.memory_space<vmem>>, vector<1x256xf32>
      %cst_559 = arith.constant 0.000000e+00 : f32
      %1039 = vector.broadcast %cst_559 : f32 to vector<1x256xf32>
      %1040 = arith.select %110, %1037, %1039 : vector<1x256xi1>, vector<1x256xf32>
      %1041 = arith.addf %1038, %1040 : vector<1x256xf32>
      %c0_560 = arith.constant 0 : index
      %c0_561 = arith.constant 0 : index
      %1042 = vector.load %arg8[%c0_560, %c0_561] : memref<1x256xf32, #tpu.memory_space<vmem>>, vector<1x256xf32>
      tpu.vector_store %arg8[%c0_560, %c0_561], %1041 {strides = array<i32>} : memref<1x256xf32, #tpu.memory_space<vmem>>, vector<1x256xf32>,
      %c149 = arith.constant 149 : index
      %1043 = memref.load %arg2[%c149] : memref<196xf32, #tpu.memory_space<smem>>
      %c0_562 = arith.constant 0 : index
      %c2_563 = arith.constant 2 : index
      %1044 = vector.load %arg7[%c0_562, %c2_563] : memref<1x358xf32, #tpu.memory_space<vmem>>, vector<1x256xf32>
      %1045 = vector.broadcast %1043 : f32 to vector<1x256xf32>
      %1046 = arith.mulf %1045, %1044 : vector<1x256xf32>
      %c156 = arith.constant 156 : index
      %1047 = memref.load %arg2[%c156] : memref<196xf32, #tpu.memory_space<smem>>
      %c0_564 = arith.constant 0 : index
      %c18_565 = arith.constant 18 : index
      %1048 = vector.load %arg7[%c0_564, %c18_565] : memref<1x358xf32, #tpu.memory_space<vmem>>, vector<1x256xf32>
      %1049 = vector.broadcast %1047 : f32 to vector<1x256xf32>
      %1050 = arith.mulf %1049, %1048 : vector<1x256xf32>
      %1051 = arith.addf %1046, %1050 : vector<1x256xf32>
      %c163 = arith.constant 163 : index
      %1052 = memref.load %arg2[%c163] : memref<196xf32, #tpu.memory_space<smem>>
      %c0_566 = arith.constant 0 : index
      %c34_567 = arith.constant 34 : index
      %1053 = vector.load %arg7[%c0_566, %c34_567] : memref<1x358xf32, #tpu.memory_space<vmem>>, vector<1x256xf32>
      %1054 = vector.broadcast %1052 : f32 to vector<1x256xf32>
      %1055 = arith.mulf %1054, %1053 : vector<1x256xf32>
      %1056 = arith.addf %1051, %1055 : vector<1x256xf32>
      %c170 = arith.constant 170 : index
      %1057 = memref.load %arg2[%c170] : memref<196xf32, #tpu.memory_space<smem>>
      %c0_568 = arith.constant 0 : index
      %c50_569 = arith.constant 50 : index
      %1058 = vector.load %arg7[%c0_568, %c50_569] : memref<1x358xf32, #tpu.memory_space<vmem>>, vector<1x256xf32>
      %1059 = vector.broadcast %1057 : f32 to vector<1x256xf32>
      %1060 = arith.mulf %1059, %1058 : vector<1x256xf32>
      %1061 = arith.addf %1056, %1060 : vector<1x256xf32>
      %c177 = arith.constant 177 : index
      %1062 = memref.load %arg2[%c177] : memref<196xf32, #tpu.memory_space<smem>>
      %c0_570 = arith.constant 0 : index
      %c66_571 = arith.constant 66 : index
      %1063 = vector.load %arg7[%c0_570, %c66_571] : memref<1x358xf32, #tpu.memory_space<vmem>>, vector<1x256xf32>
      %1064 = vector.broadcast %1062 : f32 to vector<1x256xf32>
      %1065 = arith.mulf %1064, %1063 : vector<1x256xf32>
      %1066 = arith.addf %1061, %1065 : vector<1x256xf32>
      %c184 = arith.constant 184 : index
      %1067 = memref.load %arg2[%c184] : memref<196xf32, #tpu.memory_space<smem>>
      %c0_572 = arith.constant 0 : index
      %c82_573 = arith.constant 82 : index
      %1068 = vector.load %arg7[%c0_572, %c82_573] : memref<1x358xf32, #tpu.memory_space<vmem>>, vector<1x256xf32>
      %1069 = vector.broadcast %1067 : f32 to vector<1x256xf32>
      %1070 = arith.mulf %1069, %1068 : vector<1x256xf32>
      %1071 = arith.addf %1066, %1070 : vector<1x256xf32>
      %c191 = arith.constant 191 : index
      %1072 = memref.load %arg2[%c191] : memref<196xf32, #tpu.memory_space<smem>>
      %c0_574 = arith.constant 0 : index
      %c98_575 = arith.constant 98 : index
      %1073 = vector.load %arg7[%c0_574, %c98_575] : memref<1x358xf32, #tpu.memory_space<vmem>>, vector<1x256xf32>
      %1074 = vector.broadcast %1072 : f32 to vector<1x256xf32>
      %1075 = arith.mulf %1074, %1073 : vector<1x256xf32>
      %1076 = arith.addf %1071, %1075 : vector<1x256xf32>
      %c0_576 = arith.constant 0 : index
      %c0_577 = arith.constant 0 : index
      %1077 = vector.load %arg8[%c0_576, %c0_577] : memref<1x256xf32, #tpu.memory_space<vmem>>, vector<1x256xf32>
      %cst_578 = arith.constant 0.000000e+00 : f32
      %1078 = vector.broadcast %cst_578 : f32 to vector<1x256xf32>
      %1079 = arith.select %115, %1076, %1078 : vector<1x256xi1>, vector<1x256xf32>
      %1080 = arith.addf %1077, %1079 : vector<1x256xf32>
      %c0_579 = arith.constant 0 : index
      %c0_580 = arith.constant 0 : index
      %1081 = vector.load %arg8[%c0_579, %c0_580] : memref<1x256xf32, #tpu.memory_space<vmem>>, vector<1x256xf32>
      tpu.vector_store %arg8[%c0_579, %c0_580], %1080 {strides = array<i32>} : memref<1x256xf32, #tpu.memory_space<vmem>>, vector<1x256xf32>,
      %c150 = arith.constant 150 : index
      %1082 = memref.load %arg2[%c150] : memref<196xf32, #tpu.memory_space<smem>>
      %c0_581 = arith.constant 0 : index
      %c3_582 = arith.constant 3 : index
      %1083 = vector.load %arg7[%c0_581, %c3_582] : memref<1x358xf32, #tpu.memory_space<vmem>>, vector<1x256xf32>
      %1084 = vector.broadcast %1082 : f32 to vector<1x256xf32>
      %1085 = arith.mulf %1084, %1083 : vector<1x256xf32>
      %c157 = arith.constant 157 : index
      %1086 = memref.load %arg2[%c157] : memref<196xf32, #tpu.memory_space<smem>>
      %c0_583 = arith.constant 0 : index
      %c19_584 = arith.constant 19 : index
      %1087 = vector.load %arg7[%c0_583, %c19_584] : memref<1x358xf32, #tpu.memory_space<vmem>>, vector<1x256xf32>
      %1088 = vector.broadcast %1086 : f32 to vector<1x256xf32>
      %1089 = arith.mulf %1088, %1087 : vector<1x256xf32>
      %1090 = arith.addf %1085, %1089 : vector<1x256xf32>
      %c164 = arith.constant 164 : index
      %1091 = memref.load %arg2[%c164] : memref<196xf32, #tpu.memory_space<smem>>
      %c0_585 = arith.constant 0 : index
      %c35_586 = arith.constant 35 : index
      %1092 = vector.load %arg7[%c0_585, %c35_586] : memref<1x358xf32, #tpu.memory_space<vmem>>, vector<1x256xf32>
      %1093 = vector.broadcast %1091 : f32 to vector<1x256xf32>
      %1094 = arith.mulf %1093, %1092 : vector<1x256xf32>
      %1095 = arith.addf %1090, %1094 : vector<1x256xf32>
      %c171 = arith.constant 171 : index
      %1096 = memref.load %arg2[%c171] : memref<196xf32, #tpu.memory_space<smem>>
      %c0_587 = arith.constant 0 : index
      %c51_588 = arith.constant 51 : index
      %1097 = vector.load %arg7[%c0_587, %c51_588] : memref<1x358xf32, #tpu.memory_space<vmem>>, vector<1x256xf32>
      %1098 = vector.broadcast %1096 : f32 to vector<1x256xf32>
      %1099 = arith.mulf %1098, %1097 : vector<1x256xf32>
      %1100 = arith.addf %1095, %1099 : vector<1x256xf32>
      %c178 = arith.constant 178 : index
      %1101 = memref.load %arg2[%c178] : memref<196xf32, #tpu.memory_space<smem>>
      %c0_589 = arith.constant 0 : index
      %c67_590 = arith.constant 67 : index
      %1102 = vector.load %arg7[%c0_589, %c67_590] : memref<1x358xf32, #tpu.memory_space<vmem>>, vector<1x256xf32>
      %1103 = vector.broadcast %1101 : f32 to vector<1x256xf32>
      %1104 = arith.mulf %1103, %1102 : vector<1x256xf32>
      %1105 = arith.addf %1100, %1104 : vector<1x256xf32>
      %c185 = arith.constant 185 : index
      %1106 = memref.load %arg2[%c185] : memref<196xf32, #tpu.memory_space<smem>>
      %c0_591 = arith.constant 0 : index
      %c83_592 = arith.constant 83 : index
      %1107 = vector.load %arg7[%c0_591, %c83_592] : memref<1x358xf32, #tpu.memory_space<vmem>>, vector<1x256xf32>
      %1108 = vector.broadcast %1106 : f32 to vector<1x256xf32>
      %1109 = arith.mulf %1108, %1107 : vector<1x256xf32>
      %1110 = arith.addf %1105, %1109 : vector<1x256xf32>
      %c192 = arith.constant 192 : index
      %1111 = memref.load %arg2[%c192] : memref<196xf32, #tpu.memory_space<smem>>
      %c0_593 = arith.constant 0 : index
      %c99_594 = arith.constant 99 : index
      %1112 = vector.load %arg7[%c0_593, %c99_594] : memref<1x358xf32, #tpu.memory_space<vmem>>, vector<1x256xf32>
      %1113 = vector.broadcast %1111 : f32 to vector<1x256xf32>
      %1114 = arith.mulf %1113, %1112 : vector<1x256xf32>
      %1115 = arith.addf %1110, %1114 : vector<1x256xf32>
      %c0_595 = arith.constant 0 : index
      %c0_596 = arith.constant 0 : index
      %1116 = vector.load %arg8[%c0_595, %c0_596] : memref<1x256xf32, #tpu.memory_space<vmem>>, vector<1x256xf32>
      %cst_597 = arith.constant 0.000000e+00 : f32
      %1117 = vector.broadcast %cst_597 : f32 to vector<1x256xf32>
      %1118 = arith.select %120, %1115, %1117 : vector<1x256xi1>, vector<1x256xf32>
      %1119 = arith.addf %1116, %1118 : vector<1x256xf32>
      %c0_598 = arith.constant 0 : index
      %c0_599 = arith.constant 0 : index
      %1120 = vector.load %arg8[%c0_598, %c0_599] : memref<1x256xf32, #tpu.memory_space<vmem>>, vector<1x256xf32>
      tpu.vector_store %arg8[%c0_598, %c0_599], %1119 {strides = array<i32>} : memref<1x256xf32, #tpu.memory_space<vmem>>, vector<1x256xf32>,
      %c151 = arith.constant 151 : index
      %1121 = memref.load %arg2[%c151] : memref<196xf32, #tpu.memory_space<smem>>
      %c0_600 = arith.constant 0 : index
      %c4_601 = arith.constant 4 : index
      %1122 = vector.load %arg7[%c0_600, %c4_601] : memref<1x358xf32, #tpu.memory_space<vmem>>, vector<1x256xf32>
      %1123 = vector.broadcast %1121 : f32 to vector<1x256xf32>
      %1124 = arith.mulf %1123, %1122 : vector<1x256xf32>
      %c158 = arith.constant 158 : index
      %1125 = memref.load %arg2[%c158] : memref<196xf32, #tpu.memory_space<smem>>
      %c0_602 = arith.constant 0 : index
      %c20_603 = arith.constant 20 : index
      %1126 = vector.load %arg7[%c0_602, %c20_603] : memref<1x358xf32, #tpu.memory_space<vmem>>, vector<1x256xf32>
      %1127 = vector.broadcast %1125 : f32 to vector<1x256xf32>
      %1128 = arith.mulf %1127, %1126 : vector<1x256xf32>
      %1129 = arith.addf %1124, %1128 : vector<1x256xf32>
      %c165 = arith.constant 165 : index
      %1130 = memref.load %arg2[%c165] : memref<196xf32, #tpu.memory_space<smem>>
      %c0_604 = arith.constant 0 : index
      %c36_605 = arith.constant 36 : index
      %1131 = vector.load %arg7[%c0_604, %c36_605] : memref<1x358xf32, #tpu.memory_space<vmem>>, vector<1x256xf32>
      %1132 = vector.broadcast %1130 : f32 to vector<1x256xf32>
      %1133 = arith.mulf %1132, %1131 : vector<1x256xf32>
      %1134 = arith.addf %1129, %1133 : vector<1x256xf32>
      %c172 = arith.constant 172 : index
      %1135 = memref.load %arg2[%c172] : memref<196xf32, #tpu.memory_space<smem>>
      %c0_606 = arith.constant 0 : index
      %c52_607 = arith.constant 52 : index
      %1136 = vector.load %arg7[%c0_606, %c52_607] : memref<1x358xf32, #tpu.memory_space<vmem>>, vector<1x256xf32>
      %1137 = vector.broadcast %1135 : f32 to vector<1x256xf32>
      %1138 = arith.mulf %1137, %1136 : vector<1x256xf32>
      %1139 = arith.addf %1134, %1138 : vector<1x256xf32>
      %c179 = arith.constant 179 : index
      %1140 = memref.load %arg2[%c179] : memref<196xf32, #tpu.memory_space<smem>>
      %c0_608 = arith.constant 0 : index
      %c68_609 = arith.constant 68 : index
      %1141 = vector.load %arg7[%c0_608, %c68_609] : memref<1x358xf32, #tpu.memory_space<vmem>>, vector<1x256xf32>
      %1142 = vector.broadcast %1140 : f32 to vector<1x256xf32>
      %1143 = arith.mulf %1142, %1141 : vector<1x256xf32>
      %1144 = arith.addf %1139, %1143 : vector<1x256xf32>
      %c186 = arith.constant 186 : index
      %1145 = memref.load %arg2[%c186] : memref<196xf32, #tpu.memory_space<smem>>
      %c0_610 = arith.constant 0 : index
      %c84_611 = arith.constant 84 : index
      %1146 = vector.load %arg7[%c0_610, %c84_611] : memref<1x358xf32, #tpu.memory_space<vmem>>, vector<1x256xf32>
      %1147 = vector.broadcast %1145 : f32 to vector<1x256xf32>
      %1148 = arith.mulf %1147, %1146 : vector<1x256xf32>
      %1149 = arith.addf %1144, %1148 : vector<1x256xf32>
      %c193 = arith.constant 193 : index
      %1150 = memref.load %arg2[%c193] : memref<196xf32, #tpu.memory_space<smem>>
      %c0_612 = arith.constant 0 : index
      %c100_613 = arith.constant 100 : index
      %1151 = vector.load %arg7[%c0_612, %c100_613] : memref<1x358xf32, #tpu.memory_space<vmem>>, vector<1x256xf32>
      %1152 = vector.broadcast %1150 : f32 to vector<1x256xf32>
      %1153 = arith.mulf %1152, %1151 : vector<1x256xf32>
      %1154 = arith.addf %1149, %1153 : vector<1x256xf32>
      %c0_614 = arith.constant 0 : index
      %c0_615 = arith.constant 0 : index
      %1155 = vector.load %arg8[%c0_614, %c0_615] : memref<1x256xf32, #tpu.memory_space<vmem>>, vector<1x256xf32>
      %cst_616 = arith.constant 0.000000e+00 : f32
      %1156 = vector.broadcast %cst_616 : f32 to vector<1x256xf32>
      %1157 = arith.select %125, %1154, %1156 : vector<1x256xi1>, vector<1x256xf32>
      %1158 = arith.addf %1155, %1157 : vector<1x256xf32>
      %c0_617 = arith.constant 0 : index
      %c0_618 = arith.constant 0 : index
      %1159 = vector.load %arg8[%c0_617, %c0_618] : memref<1x256xf32, #tpu.memory_space<vmem>>, vector<1x256xf32>
      tpu.vector_store %arg8[%c0_617, %c0_618], %1158 {strides = array<i32>} : memref<1x256xf32, #tpu.memory_space<vmem>>, vector<1x256xf32>,
      %c152 = arith.constant 152 : index
      %1160 = memref.load %arg2[%c152] : memref<196xf32, #tpu.memory_space<smem>>
      %c0_619 = arith.constant 0 : index
      %c5_620 = arith.constant 5 : index
      %1161 = vector.load %arg7[%c0_619, %c5_620] : memref<1x358xf32, #tpu.memory_space<vmem>>, vector<1x256xf32>
      %1162 = vector.broadcast %1160 : f32 to vector<1x256xf32>
      %1163 = arith.mulf %1162, %1161 : vector<1x256xf32>
      %c159 = arith.constant 159 : index
      %1164 = memref.load %arg2[%c159] : memref<196xf32, #tpu.memory_space<smem>>
      %c0_621 = arith.constant 0 : index
      %c21_622 = arith.constant 21 : index
      %1165 = vector.load %arg7[%c0_621, %c21_622] : memref<1x358xf32, #tpu.memory_space<vmem>>, vector<1x256xf32>
      %1166 = vector.broadcast %1164 : f32 to vector<1x256xf32>
      %1167 = arith.mulf %1166, %1165 : vector<1x256xf32>
      %1168 = arith.addf %1163, %1167 : vector<1x256xf32>
      %c166 = arith.constant 166 : index
      %1169 = memref.load %arg2[%c166] : memref<196xf32, #tpu.memory_space<smem>>
      %c0_623 = arith.constant 0 : index
      %c37_624 = arith.constant 37 : index
      %1170 = vector.load %arg7[%c0_623, %c37_624] : memref<1x358xf32, #tpu.memory_space<vmem>>, vector<1x256xf32>
      %1171 = vector.broadcast %1169 : f32 to vector<1x256xf32>
      %1172 = arith.mulf %1171, %1170 : vector<1x256xf32>
      %1173 = arith.addf %1168, %1172 : vector<1x256xf32>
      %c173 = arith.constant 173 : index
      %1174 = memref.load %arg2[%c173] : memref<196xf32, #tpu.memory_space<smem>>
      %c0_625 = arith.constant 0 : index
      %c53_626 = arith.constant 53 : index
      %1175 = vector.load %arg7[%c0_625, %c53_626] : memref<1x358xf32, #tpu.memory_space<vmem>>, vector<1x256xf32>
      %1176 = vector.broadcast %1174 : f32 to vector<1x256xf32>
      %1177 = arith.mulf %1176, %1175 : vector<1x256xf32>
      %1178 = arith.addf %1173, %1177 : vector<1x256xf32>
      %c180 = arith.constant 180 : index
      %1179 = memref.load %arg2[%c180] : memref<196xf32, #tpu.memory_space<smem>>
      %c0_627 = arith.constant 0 : index
      %c69_628 = arith.constant 69 : index
      %1180 = vector.load %arg7[%c0_627, %c69_628] : memref<1x358xf32, #tpu.memory_space<vmem>>, vector<1x256xf32>
      %1181 = vector.broadcast %1179 : f32 to vector<1x256xf32>
      %1182 = arith.mulf %1181, %1180 : vector<1x256xf32>
      %1183 = arith.addf %1178, %1182 : vector<1x256xf32>
      %c187 = arith.constant 187 : index
      %1184 = memref.load %arg2[%c187] : memref<196xf32, #tpu.memory_space<smem>>
      %c0_629 = arith.constant 0 : index
      %c85_630 = arith.constant 85 : index
      %1185 = vector.load %arg7[%c0_629, %c85_630] : memref<1x358xf32, #tpu.memory_space<vmem>>, vector<1x256xf32>
      %1186 = vector.broadcast %1184 : f32 to vector<1x256xf32>
      %1187 = arith.mulf %1186, %1185 : vector<1x256xf32>
      %1188 = arith.addf %1183, %1187 : vector<1x256xf32>
      %c194 = arith.constant 194 : index
      %1189 = memref.load %arg2[%c194] : memref<196xf32, #tpu.memory_space<smem>>
      %c0_631 = arith.constant 0 : index
      %c101_632 = arith.constant 101 : index
      %1190 = vector.load %arg7[%c0_631, %c101_632] : memref<1x358xf32, #tpu.memory_space<vmem>>, vector<1x256xf32>
      %1191 = vector.broadcast %1189 : f32 to vector<1x256xf32>
      %1192 = arith.mulf %1191, %1190 : vector<1x256xf32>
      %1193 = arith.addf %1188, %1192 : vector<1x256xf32>
      %c0_633 = arith.constant 0 : index
      %c0_634 = arith.constant 0 : index
      %1194 = vector.load %arg8[%c0_633, %c0_634] : memref<1x256xf32, #tpu.memory_space<vmem>>, vector<1x256xf32>
      %cst_635 = arith.constant 0.000000e+00 : f32
      %1195 = vector.broadcast %cst_635 : f32 to vector<1x256xf32>
      %1196 = arith.select %130, %1193, %1195 : vector<1x256xi1>, vector<1x256xf32>
      %1197 = arith.addf %1194, %1196 : vector<1x256xf32>
      %c0_636 = arith.constant 0 : index
      %c0_637 = arith.constant 0 : index
      %1198 = vector.load %arg8[%c0_636, %c0_637] : memref<1x256xf32, #tpu.memory_space<vmem>>, vector<1x256xf32>
      tpu.vector_store %arg8[%c0_636, %c0_637], %1197 {strides = array<i32>} : memref<1x256xf32, #tpu.memory_space<vmem>>, vector<1x256xf32>,
      %c153 = arith.constant 153 : index
      %1199 = memref.load %arg2[%c153] : memref<196xf32, #tpu.memory_space<smem>>
      %c0_638 = arith.constant 0 : index
      %c6_639 = arith.constant 6 : index
      %1200 = vector.load %arg7[%c0_638, %c6_639] : memref<1x358xf32, #tpu.memory_space<vmem>>, vector<1x256xf32>
      %1201 = vector.broadcast %1199 : f32 to vector<1x256xf32>
      %1202 = arith.mulf %1201, %1200 : vector<1x256xf32>
      %c160 = arith.constant 160 : index
      %1203 = memref.load %arg2[%c160] : memref<196xf32, #tpu.memory_space<smem>>
      %c0_640 = arith.constant 0 : index
      %c22_641 = arith.constant 22 : index
      %1204 = vector.load %arg7[%c0_640, %c22_641] : memref<1x358xf32, #tpu.memory_space<vmem>>, vector<1x256xf32>
      %1205 = vector.broadcast %1203 : f32 to vector<1x256xf32>
      %1206 = arith.mulf %1205, %1204 : vector<1x256xf32>
      %1207 = arith.addf %1202, %1206 : vector<1x256xf32>
      %c167 = arith.constant 167 : index
      %1208 = memref.load %arg2[%c167] : memref<196xf32, #tpu.memory_space<smem>>
      %c0_642 = arith.constant 0 : index
      %c38_643 = arith.constant 38 : index
      %1209 = vector.load %arg7[%c0_642, %c38_643] : memref<1x358xf32, #tpu.memory_space<vmem>>, vector<1x256xf32>
      %1210 = vector.broadcast %1208 : f32 to vector<1x256xf32>
      %1211 = arith.mulf %1210, %1209 : vector<1x256xf32>
      %1212 = arith.addf %1207, %1211 : vector<1x256xf32>
      %c174 = arith.constant 174 : index
      %1213 = memref.load %arg2[%c174] : memref<196xf32, #tpu.memory_space<smem>>
      %c0_644 = arith.constant 0 : index
      %c54_645 = arith.constant 54 : index
      %1214 = vector.load %arg7[%c0_644, %c54_645] : memref<1x358xf32, #tpu.memory_space<vmem>>, vector<1x256xf32>
      %1215 = vector.broadcast %1213 : f32 to vector<1x256xf32>
      %1216 = arith.mulf %1215, %1214 : vector<1x256xf32>
      %1217 = arith.addf %1212, %1216 : vector<1x256xf32>
      %c181 = arith.constant 181 : index
      %1218 = memref.load %arg2[%c181] : memref<196xf32, #tpu.memory_space<smem>>
      %c0_646 = arith.constant 0 : index
      %c70_647 = arith.constant 70 : index
      %1219 = vector.load %arg7[%c0_646, %c70_647] : memref<1x358xf32, #tpu.memory_space<vmem>>, vector<1x256xf32>
      %1220 = vector.broadcast %1218 : f32 to vector<1x256xf32>
      %1221 = arith.mulf %1220, %1219 : vector<1x256xf32>
      %1222 = arith.addf %1217, %1221 : vector<1x256xf32>
      %c188 = arith.constant 188 : index
      %1223 = memref.load %arg2[%c188] : memref<196xf32, #tpu.memory_space<smem>>
      %c0_648 = arith.constant 0 : index
      %c86_649 = arith.constant 86 : index
      %1224 = vector.load %arg7[%c0_648, %c86_649] : memref<1x358xf32, #tpu.memory_space<vmem>>, vector<1x256xf32>
      %1225 = vector.broadcast %1223 : f32 to vector<1x256xf32>
      %1226 = arith.mulf %1225, %1224 : vector<1x256xf32>
      %1227 = arith.addf %1222, %1226 : vector<1x256xf32>
      %c195 = arith.constant 195 : index
      %1228 = memref.load %arg2[%c195] : memref<196xf32, #tpu.memory_space<smem>>
      %c0_650 = arith.constant 0 : index
      %c102_651 = arith.constant 102 : index
      %1229 = vector.load %arg7[%c0_650, %c102_651] : memref<1x358xf32, #tpu.memory_space<vmem>>, vector<1x256xf32>
      %1230 = vector.broadcast %1228 : f32 to vector<1x256xf32>
      %1231 = arith.mulf %1230, %1229 : vector<1x256xf32>
      %1232 = arith.addf %1227, %1231 : vector<1x256xf32>
      %c0_652 = arith.constant 0 : index
      %c0_653 = arith.constant 0 : index
      %1233 = vector.load %arg8[%c0_652, %c0_653] : memref<1x256xf32, #tpu.memory_space<vmem>>, vector<1x256xf32>
      %cst_654 = arith.constant 0.000000e+00 : f32
      %1234 = vector.broadcast %cst_654 : f32 to vector<1x256xf32>
      %1235 = arith.select %135, %1232, %1234 : vector<1x256xi1>, vector<1x256xf32>
      %1236 = arith.addf %1233, %1235 : vector<1x256xf32>
      %c0_655 = arith.constant 0 : index
      %c0_656 = arith.constant 0 : index
      %1237 = vector.load %arg8[%c0_655, %c0_656] : memref<1x256xf32, #tpu.memory_space<vmem>>, vector<1x256xf32>
      tpu.vector_store %arg8[%c0_655, %c0_656], %1236 {strides = array<i32>} : memref<1x256xf32, #tpu.memory_space<vmem>>, vector<1x256xf32>,
      %c0_657 = arith.constant 0 : index
      %c0_658 = arith.constant 0 : index
      %1238 = vector.load %arg8[%c0_657, %c0_658] : memref<1x256xf32, #tpu.memory_space<vmem>>, vector<1x256xf32>
      %1239 = arith.negf %1238 : vector<1x256xf32>
      %1240 = math.exp %1239 : vector<1x256xf32>
      %cst_659 = arith.constant 1.000000e+00 : f32
      %1241 = vector.broadcast %cst_659 : f32 to vector<1x256xf32>
      %1242 = arith.addf %1241, %1240 : vector<1x256xf32>
      %1243 = arith.divf %1241, %1242 : vector<1x256xf32>
      %c0_660 = arith.constant 0 : index
      %c0_661 = arith.constant 0 : index
      %c0_662 = arith.constant 0 : index
      %1244 = vector.load %arg5[%c0_660, %c0_661, %c0_662] : memref<1x1x256xf32, #tpu.memory_space<vmem>>, vector<1x1x256xf32>
      %1245 = vector.shape_cast %1244 : vector<1x1x256xf32> to vector<1x256xf32>
      %1246 = vector.shape_cast %1243 : vector<1x256xf32> to vector<1x1x256xf32>
      tpu.vector_store %arg5[%c0_660, %c0_661, %c0_662], %1246 {strides = array<i32>} : memref<1x1x256xf32, #tpu.memory_space<vmem>>, vector<1x1x256xf32>,
    } else {
    }
    return
  }
  func.func @transform_0(%arg0: i32, %arg1: i32) -> i32 {
    %c0_i32 = arith.constant 0 : i32
    %c0_i32_0 = arith.constant 0 : i32
    return %c0_i32 : i32
  }
  func.func @transform_1(%arg0: i32, %arg1: i32) -> (i32, i32, i32) {
    %c0_i32 = arith.constant 0 : i32
    %c0_i32_0 = arith.constant 0 : i32
    return %arg0, %arg1, %c0_i32 : i32, i32, i32
  }
  func.func @transform_2(%arg0: i32, %arg1: i32) -> (i32, i32, i32) {
    %c0_i32 = arith.constant 0 : i32
    %c0_i32_0 = arith.constant 0 : i32
    return %arg0, %arg1, %c0_i32 : i32, i32, i32
  }
  func.func @transform_3(%arg0: i32, %arg1: i32) -> (i32, i32, i32) {
    %c0_i32 = arith.constant 0 : i32
    %c0_i32_0 = arith.constant 0 : i32
    %c0_i32_1 = arith.constant 0 : i32
    return %arg0, %c0_i32, %c0_i32_0 : i32, i32, i32
  }
}

</mosaic_0001>

<llo_original>
// kernel: tpu_custom_call.1
$region0: #{tpu_custom_call.1}
  #allocation0 [shape = 'u32[]', space=smem, size = 0x4, offset = 0x4, fixed_abs, tag = 'smem constant byte address 0x4 - core index']
  #allocation1 [shape = 'u32[144,128]{1,0:T(1,128)}', space=vmem, size = 0x12000, scoped, tag = 'internal scratch']
  #allocation2 [shape = 'f32[32,256]{1,0:T(8,128)}', space=vmem, size = 0x8000, scoped, tag = 'scratch operand']
  #allocation3 [shape = 'f32[1,358]{1,0:T(1,128)}', space=vmem, size = 0x600, scoped, tag = 'scratch operand']
  #allocation4 [shape = 'f32[1,256]{1,0:T(1,128)}', space=vmem, size = 0x400, scoped, tag = 'scratch operand']
  %s0 = inlined_call_operand.hbm [shape: f32[196], index: 0, kind: input, shape index: {}]
  %s1 = inlined_call_operand.hbm [shape: f32[2,32,256], index: 1, kind: input, shape index: {}]
  %s2 = inlined_call_operand.hbm [shape: f32[2,32,256], index: 2, kind: input, shape index: {}]
  %s3 = inlined_call_operand.hbm [shape: f32[2,1,256], index: 3, kind: output, shape index: {}]
  %s4 = sld [smem:[#allocation0]]
  $region65: #{tpu_custom_call.1} parent=0
    _
  %s6 = ssub.s32 1, %s4
  %s7 = scalar_select 0, %s6, %s4
  $region1: #{tpu_custom_call.1} parent=0
    #allocation5 [shape = 'u8[1024]{0}', space=smem, size = 0x400, scoped, tag = 'input window, operand 0, single buffered']
    #allocation6 [shape = 's32[2]{0}', space=sflag, size = 0x8, scoped, tag = 'scoped memory for tpu_custom_call.1']
    #allocation7 [shape = 's32[2]{0}', space=sflag, size = 0x8, scoped, tag = 'scoped memory for tpu_custom_call.1']
    #allocation8 [shape = 's32[2]{0}', space=sflag, size = 0x8, scoped, tag = 'scoped memory for tpu_custom_call.1']
    #allocation9 [shape = 'u8[65536]{0}', space=vmem, size = 0x10000, scoped, tag = 'input window, operand 1']
    #allocation10 [shape = 'u8[65536]{0}', space=vmem, size = 0x10000, scoped, tag = 'input window, operand 2']
    #allocation11 [shape = 's32[2]{0}', space=sflag, size = 0x8, scoped, tag = 'scoped memory for tpu_custom_call.1']
    #allocation12 [shape = 'u8[2048]{0}', space=vmem, size = 0x800, scoped, tag = 'output window, operand 0']
    %8 = vsyncpa [#allocation8], 0
    %9 = vsyncpa [#allocation6], 0
    %s10 = scalar_lea.sflag [#allocation6], 1
    %11 = vsyncpa %s10, 0
    %12 = vsyncpa [#allocation11], 0
    %s13 = scalar_lea.sflag [#allocation11], 1
    %14 = vsyncpa %s13, 0
    %15 = vsyncpa [#allocation7], 0
    %s16 = scalar_lea.sflag [#allocation7], 1
    %17 = vsyncpa %s16, 0
    loop: start=0, step=1, limit=4
    $region2: #{tpu_custom_call.1} parent=1 // loop_pre_header
      _
    $region3: #{tpu_custom_call.1} parent=1 // loop_header
      %s19 = sphi 0, %s23
      %p20 = scmp.ge.s32.totalorder %s19, 4
      %s26 = sphi 0, %s38
      %s27 = sphi 0, %s34
      %s28 = sphi 0, %s26
      %s29 = sphi 0, %s27
      %s30 = sphi 0, %s28
      %s31 = sphi 0, %s29
      %s39 = sphi 0, %s39
      %s41 = sphi 0, %s39
      %s42 = sphi 0, %s41
      %s56 = sphi 0, %s42
      %s64 = sphi 0, %s66
      %s67 = sphi 0, %s64
      %s68 = sphi 0, %s67
      %s84 = sphi 0, %s68
      %s92 = sphi 0, %s94
      %s95 = sphi 0, %s92
      %s96 = sphi 0, %s95
      %s112 = sphi 0, %s96
      %s118 = sphi 0, %s120
      %s121 = sphi 0, %s118
      %s122 = sphi 0, %s121
      %s138 = sphi 0, %s122
    $region4: #{tpu_custom_call.1} parent=1 // loop_header_branch
      %22 = sbr.rel (%p20) target = $region8
    $region5: #{tpu_custom_call.1} parent=1 // loop_body
      %s24 = ssub.s32 %s19, 1
      %s25 = ssub.s32 %s19, 2
      %s32 = sadd.s32 1, %s27
      %p33 = scmp.ge.s32.totalorder %s32, 1
      %s34 = scalar_select %p33, 0, %s32
      %s35 = sadd.s32 1, %s26
      %s36 = scalar_select %p33, %s35, %s26
      %p37 = scmp.ge.s32.totalorder %s36, 2
      %s38 = scalar_select %p37, 0, %s36
      %s40 = sadd.s32 %s39, 1
      %p43 = scmp.eq.s32.totalorder %s19, 1
      %p44 = scmp.ne.s32.totalorder %s39, %s41
      %p45 = scmp.eq.s32.totalorder %s19, 0
      %p46 = por %p44, %p45
      %p47 = scmp.ne.s32.totalorder %s39, %s41
      %p48 = scmp.eq.s32.totalorder %s24, 1
      %p49 = por %p47, %p48
      %p50 = scmp.ne.s32.totalorder %s41, %s42
      %p51 = scmp.eq.s32.totalorder %s24, 0
      %p52 = por %p50, %p51
      %p53 = scmp.ne.s32.totalorder %s41, %s42
      %p54 = scmp.eq.s32.totalorder %s25, 1
      %p55 = por %p53, %p54
      %p57 = scmp.ne.s32.totalorder %s42, %s56
      %p58 = scmp.eq.s32.totalorder %s25, 0
      %p59 = por %p57, %p58
      %s60 = ssub.s32 %s26, %s38
      %s61 = ssub.s32 %s27, %s34
      %s62 = sor.u32 %s60, %s61
      %p63 = scmp.eq.s32.totalorder %s62, 0
      %s65 = sadd.s32 %s64, 1
      %s66 = scalar_select %p63, %s64, %s65
      %p69 = pneg %p63
      %p70 = scmp.eq.s32.totalorder %s19, 1
      %p71 = por %p69, %p70
      %p72 = scmp.ne.s32.totalorder %s64, %s67
      %p73 = scmp.eq.s32.totalorder %s19, 0
      %p74 = por %p72, %p73
      %p75 = scmp.ne.s32.totalorder %s64, %s67
      %p76 = scmp.eq.s32.totalorder %s24, 1
      %p77 = por %p75, %p76
      %p78 = scmp.ne.s32.totalorder %s67, %s68
      %p79 = scmp.eq.s32.totalorder %s24, 0
      %p80 = por %p78, %p79
      %p81 = scmp.ne.s32.totalorder %s67, %s68
      %p82 = scmp.eq.s32.totalorder %s25, 1
      %p83 = por %p81, %p82
      %p85 = scmp.ne.s32.totalorder %s68, %s84
      %p86 = scmp.eq.s32.totalorder %s25, 0
      %p87 = por %p85, %p86
      %s88 = ssub.s32 %s26, %s38
      %s89 = ssub.s32 %s27, %s34
      %s90 = sor.u32 %s88, %s89
      %p91 = scmp.eq.s32.totalorder %s90, 0
      %s93 = sadd.s32 %s92, 1
      %s94 = scalar_select %p91, %s92, %s93
      %p97 = pneg %p91
      %p98 = scmp.eq.s32.totalorder %s19, 1
      %p99 = por %p97, %p98
      %p100 = scmp.ne.s32.totalorder %s92, %s95
      %p101 = scmp.eq.s32.totalorder %s19, 0
      %p102 = por %p100, %p101
      %p103 = scmp.ne.s32.totalorder %s92, %s95
      %p104 = scmp.eq.s32.totalorder %s24, 1
      %p105 = por %p103, %p104
      %p106 = scmp.ne.s32.totalorder %s95, %s96
      %p107 = scmp.eq.s32.totalorder %s24, 0
      %p108 = por %p106, %p107
      %p109 = scmp.ne.s32.totalorder %s95, %s96
      %p110 = scmp.eq.s32.totalorder %s25, 1
      %p111 = por %p109, %p110
      %p113 = scmp.ne.s32.totalorder %s96, %s112
      %p114 = scmp.eq.s32.totalorder %s25, 0
      %p115 = por %p113, %p114
      %s116 = ssub.s32 %s26, %s38
      %p117 = scmp.eq.s32.totalorder %s116, 0
      %s119 = sadd.s32 %s118, 1
      %s120 = scalar_select %p117, %s118, %s119
      %p123 = pneg %p117
      %p124 = scmp.eq.s32.totalorder %s19, 1
      %p125 = por %p123, %p124
      %p126 = scmp.ne.s32.totalorder %s118, %s121
      %p127 = scmp.eq.s32.totalorder %s19, 0
      %p128 = por %p126, %p127
      %p129 = scmp.ne.s32.totalorder %s118, %s121
      %p130 = scmp.eq.s32.totalorder %s24, 1
      %p131 = por %p129, %p130
      %p132 = scmp.ne.s32.totalorder %s121, %s122
      %p133 = scmp.eq.s32.totalorder %s24, 0
      %p134 = por %p132, %p133
      %p135 = scmp.ne.s32.totalorder %s121, %s122
      %p136 = scmp.eq.s32.totalorder %s25, 1
      %p137 = por %p135, %p136
      %p139 = scmp.ne.s32.totalorder %s122, %s138
      %p140 = scmp.eq.s32.totalorder %s25, 0
      %p141 = por %p139, %p140
      %p142 = scmp.le.s32.totalorder 1, %s19
      %p143 = scmp.lt.s32.totalorder %s19, 3
      %p144 = pnand %p142, %p143
      %p145 = pneg %p144
      // Predicated region
      $region9: #{tpu_custom_call.1} parent=5 // pred_check
        _
      $region10: #{tpu_custom_call.1} parent=5 // pred_check_branch
        %147 = sbr.rel (%p144) target = $region12
      $region11: #{tpu_custom_call.1} parent=5 // pred_region
        %s148 = ssub.s32 %s19, 1
        // Predicated region
        $region13: #{tpu_custom_call.1} parent=11 // pred_check
          %p149 = pneg %p52
        $region14: #{tpu_custom_call.1} parent=11 // pred_check_branch
          %151 = sbr.rel (%p149) target = $region16
        $region15: #{tpu_custom_call.1} parent=11 // pred_region
          %s153 = ssub.s32 32, 32
          %154 = vsyncadd [#allocation8], %s153
          %157 = dma.hbm_to_smem %s0, 32, [#allocation5], [#allocation8]
        $region16: #{tpu_custom_call.1} parent=11 // pred_fallthru
          _
      $region12: #{tpu_custom_call.1} parent=5 // pred_fallthru
        _
      %p158 = scmp.lt.s32.totalorder %s19, 2
      // Predicated region
      $region17: #{tpu_custom_call.1} parent=5 // pred_check
        %p159 = pneg %p158
      $region18: #{tpu_custom_call.1} parent=5 // pred_check_branch
        %161 = sbr.rel (%p159) target = $region20
      $region19: #{tpu_custom_call.1} parent=5 // pred_region
        // Predicated region
        $region21: #{tpu_custom_call.1} parent=19 // pred_check
          %p162 = pneg %p74
        $region22: #{tpu_custom_call.1} parent=19 // pred_check_branch
          %164 = sbr.rel (%p162) target = $region24
        $region23: #{tpu_custom_call.1} parent=19 // pred_region
          %s165 = sand.u32 %s64, 1
          %s166 = scalar_lea.sflag [#allocation6], %s165
          %s167 = sand.u32 %s64, 1
          %s168 = smul.addr %s167, 64
          %s169 = scalar_lea.vmem [#allocation9], %s168
          %s170 = smul.u32 4, %s27
          %s172 = ssub.s32 1024, 1024
          %173 = vsyncadd %s166, %s172
          %s174 = smul.addr %s170, 2
          %s175 = smul.addr %s26, 8
          %s176 = sadd.s32 %s174, %s175
          %s177 = smul.addr %s176, 128
          %s178 = scalar_lea.hbm %s1, %s177
          %s179 = sshll.u32 %s169, 4
          %s180 = int_to_ptr.vmem [resolvable:$true] %s179
          %185 = dma.hbm_to_vmem [thread:$0]  %s178, 1024, %s180, %s166, 256, 256, 16
        $region24: #{tpu_custom_call.1} parent=19 // pred_fallthru
          _
        // Predicated region
        $region25: #{tpu_custom_call.1} parent=19 // pred_check
          %p186 = pneg %p102
        $region26: #{tpu_custom_call.1} parent=19 // pred_check_branch
          %188 = sbr.rel (%p186) target = $region28
        $region27: #{tpu_custom_call.1} parent=19 // pred_region
          %s189 = sand.u32 %s92, 1
          %s190 = scalar_lea.sflag [#allocation11], %s189
          %s191 = sand.u32 %s92, 1
          %s192 = smul.addr %s191, 64
          %s193 = scalar_lea.vmem [#allocation10], %s192
          %s194 = smul.u32 4, %s27
          %s196 = ssub.s32 1024, 1024
          %197 = vsyncadd %s190, %s196
          %s198 = smul.addr %s194, 2
          %s199 = smul.addr %s26, 8
          %s200 = sadd.s32 %s198, %s199
          %s201 = smul.addr %s200, 128
          %s202 = scalar_lea.hbm %s2, %s201
          %s203 = sshll.u32 %s193, 4
          %s204 = int_to_ptr.vmem [resolvable:$true] %s203
          %209 = dma.hbm_to_vmem [thread:$0]  %s202, 1024, %s204, %s190, 256, 256, 16
        $region28: #{tpu_custom_call.1} parent=19 // pred_fallthru
          _
      $region20: #{tpu_custom_call.1} parent=5 // pred_fallthru
        _
      %p210 = scmp.le.s32.totalorder 1, %s19
      %p211 = scmp.lt.s32.totalorder %s19, 3
      %p212 = pnand %p210, %p211
      %p213 = pneg %p212
      // Predicated region
      $region29: #{tpu_custom_call.1} parent=5 // pred_check
        _
      $region30: #{tpu_custom_call.1} parent=5 // pred_check_branch
        %215 = sbr.rel (%p212) target = $region32
      $region31: #{tpu_custom_call.1} parent=5 // pred_region
        %s216 = ssub.s32 %s19, 1
        // Predicated region
        $region33: #{tpu_custom_call.1} parent=31 // pred_check
          %p217 = pneg %p52
        $region34: #{tpu_custom_call.1} parent=31 // pred_check_branch
          %219 = sbr.rel (%p217) target = $region36
        $region35: #{tpu_custom_call.1} parent=31 // pred_region
          %220 = dma.done [#allocation8], 32
        $region36: #{tpu_custom_call.1} parent=31 // pred_fallthru
          _
        %s221 = sand.u32 %s67, 1
        %s222 = scalar_lea.sflag [#allocation6], %s221
        %s223 = sand.u32 %s67, 1
        %s224 = smul.addr %s223, 64
        %s225 = scalar_lea.vmem [#allocation9], %s224
        // Predicated region
        $region37: #{tpu_custom_call.1} parent=31 // pred_check
          %p226 = pneg %p80
        $region38: #{tpu_custom_call.1} parent=31 // pred_check_branch
          %228 = sbr.rel (%p226) target = $region40
        $region39: #{tpu_custom_call.1} parent=31 // pred_region
          %229 = dma.done %s222, 1024
        $region40: #{tpu_custom_call.1} parent=31 // pred_fallthru
          _
        %s230 = sand.u32 %s95, 1
        %s231 = scalar_lea.sflag [#allocation11], %s230
        %s232 = sand.u32 %s95, 1
        %s233 = smul.addr %s232, 64
        %s234 = scalar_lea.vmem [#allocation10], %s233
        // Predicated region
        $region41: #{tpu_custom_call.1} parent=31 // pred_check
          %p235 = pneg %p108
        $region42: #{tpu_custom_call.1} parent=31 // pred_check_branch
          %237 = sbr.rel (%p235) target = $region44
        $region43: #{tpu_custom_call.1} parent=31 // pred_region
          %238 = dma.done %s231, 1024
        $region44: #{tpu_custom_call.1} parent=31 // pred_fallthru
          _
        %239 = sfence
        %p240 = pneg %p52
        %p241 = pneg %p49
        %s242 = sand.u32 %s67, 1
        %s243 = scalar_lea.sflag [#allocation6], %s242
        %s244 = sand.u32 %s67, 1
        %s245 = smul.addr %s244, 64
        %s246 = scalar_lea.vmem [#allocation9], %s245
        %p247 = pneg %p80
        %p248 = pneg %p77
        %s249 = sand.u32 %s95, 1
        %s250 = scalar_lea.sflag [#allocation11], %s249
        %s251 = sand.u32 %s95, 1
        %s252 = smul.addr %s251, 64
        %s253 = scalar_lea.vmem [#allocation10], %s252
        %p254 = pneg %p108
        %p255 = pneg %p105
        %p256 = pneg %p134
        %p257 = pneg %p131
        %s258 = sand.u32 %s121, 1
        %s259 = scalar_lea.sflag [#allocation7], %s258
        %s260 = sand.u32 %s121, 1
        %s261 = smul.addr %s260, 2
        %s262 = scalar_lea.vmem [#allocation12], %s261
        %s263 = smul.u32 4, %s29
        %s264 = smul.u32 4, %s29
        %p265 = scmp.eq.s32.totalorder %s29, 0
        // Predicated region
        $region45: #{tpu_custom_call.1} parent=31 // pred_check
          %p266 = pneg %p265
        $region46: #{tpu_custom_call.1} parent=31 // pred_check_branch
          %268 = sbr.rel (%p266) target = $region48
        $region47: #{tpu_custom_call.1} parent=31 // pred_region
          %269 = vst [vmem:[#allocation2] sm:$0xff] 0.0
          %270 = vst [vmem:[#allocation2 + $0x8] sm:$0xff] 0.0
          %271 = vst [vmem:[#allocation2 + $0x10] sm:$0xff] -inf
          %272 = vst [vmem:[#allocation2 + $0x18] sm:$0xff] -inf
          %273 = vst [vmem:[#allocation2 + $0x20] sm:$0xff] 0.0
          %274 = vst [vmem:[#allocation2 + $0x28] sm:$0xff] 0.0
          %275 = vst [vmem:[#allocation2 + $0x30] sm:$0xff] -inf
          %276 = vst [vmem:[#allocation2 + $0x38] sm:$0xff] -inf
        $region48: #{tpu_custom_call.1} parent=31 // pred_fallthru
          _
        %v277 = vld [vmem:[%s225] sm:$0xff]
        %v278 = vld [vmem:[%s225 + $0x8] sm:$0xff]
        %v279 = vld [vmem:[%s234] sm:$0xff]
        %v280 = vld [vmem:[%s234 + $0x8] sm:$0xff]
        %v281 = vld [vmem:[#allocation2] sm:$0xff]
        %v282 = vld [vmem:[#allocation2 + $0x8] sm:$0xff]
        %v283 = vadd.f32 %v281, %v277
        %v284 = vadd.f32 %v282, %v278
        %285 = vst [vmem:[#allocation2] sm:$0xff] %v283
        %286 = vst [vmem:[#allocation2 + $0x8] sm:$0xff] %v284
        %v287 = vld [vmem:[#allocation2 + $0x10] sm:$0xff]
        %v288 = vld [vmem:[#allocation2 + $0x18] sm:$0xff]
        %v289 = vmax.f32 %v287, %v277
        %v290 = vmax.f32 %v288, %v278
        %291 = vst [vmem:[#allocation2 + $0x10] sm:$0xff] %v289
        %292 = vst [vmem:[#allocation2 + $0x18] sm:$0xff] %v290
        %v293 = vld [vmem:[#allocation2 + $0x20] sm:$0xff]
        %v294 = vld [vmem:[#allocation2 + $0x28] sm:$0xff]
        %v295 = vadd.f32 %v293, %v279
        %v296 = vadd.f32 %v294, %v280
        %297 = vst [vmem:[#allocation2 + $0x20] sm:$0xff] %v295
        %298 = vst [vmem:[#allocation2 + $0x28] sm:$0xff] %v296
        %v299 = vld [vmem:[#allocation2 + $0x30] sm:$0xff]
        %v300 = vld [vmem:[#allocation2 + $0x38] sm:$0xff]
        %v301 = vmax.f32 %v299, %v279
        %v302 = vmax.f32 %v300, %v280
        %303 = vst [vmem:[#allocation2 + $0x30] sm:$0xff] %v301
        %304 = vst [vmem:[#allocation2 + $0x38] sm:$0xff] %v302
        %v305 = vld [vmem:[%s225 + $0x10] sm:$0xff]
        %v306 = vld [vmem:[%s225 + $0x18] sm:$0xff]
        %v307 = vld [vmem:[%s234 + $0x10] sm:$0xff]
        %v308 = vld [vmem:[%s234 + $0x18] sm:$0xff]
        %v309 = vld [vmem:[#allocation2] sm:$0xff]
        %v310 = vld [vmem:[#allocation2 + $0x8] sm:$0xff]
        %v311 = vadd.f32 %v309, %v305
        %v312 = vadd.f32 %v310, %v306
        %313 = vst [vmem:[#allocation2] sm:$0xff] %v311
        %314 = vst [vmem:[#allocation2 + $0x8] sm:$0xff] %v312
        %v315 = vld [vmem:[#allocation2 + $0x10] sm:$0xff]
        %v316 = vld [vmem:[#allocation2 + $0x18] sm:$0xff]
        %v317 = vmax.f32 %v315, %v305
        %v318 = vmax.f32 %v316, %v306
        %319 = vst [vmem:[#allocation2 + $0x10] sm:$0xff] %v317
        %320 = vst [vmem:[#allocation2 + $0x18] sm:$0xff] %v318
        %v321 = vld [vmem:[#allocation2 + $0x20] sm:$0xff]
        %v322 = vld [vmem:[#allocation2 + $0x28] sm:$0xff]
        %v323 = vadd.f32 %v321, %v307
        %v324 = vadd.f32 %v322, %v308
        %325 = vst [vmem:[#allocation2 + $0x20] sm:$0xff] %v323
        %326 = vst [vmem:[#allocation2 + $0x28] sm:$0xff] %v324
        %v327 = vld [vmem:[#allocation2 + $0x30] sm:$0xff]
        %v328 = vld [vmem:[#allocation2 + $0x38] sm:$0xff]
        %v329 = vmax.f32 %v327, %v307
        %v330 = vmax.f32 %v328, %v308
        %331 = vst [vmem:[#allocation2 + $0x30] sm:$0xff] %v329
        %332 = vst [vmem:[#allocation2 + $0x38] sm:$0xff] %v330
        %v333 = vld [vmem:[%s225 + $0x20] sm:$0xff]
        %v334 = vld [vmem:[%s225 + $0x28] sm:$0xff]
        %v335 = vld [vmem:[%s234 + $0x20] sm:$0xff]
        %v336 = vld [vmem:[%s234 + $0x28] sm:$0xff]
        %v337 = vld [vmem:[#allocation2] sm:$0xff]
        %v338 = vld [vmem:[#allocation2 + $0x8] sm:$0xff]
        %v339 = vadd.f32 %v337, %v333
        %v340 = vadd.f32 %v338, %v334
        %341 = vst [vmem:[#allocation2] sm:$0xff] %v339
        %342 = vst [vmem:[#allocation2 + $0x8] sm:$0xff] %v340
        %v343 = vld [vmem:[#allocation2 + $0x10] sm:$0xff]
        %v344 = vld [vmem:[#allocation2 + $0x18] sm:$0xff]
        %v345 = vmax.f32 %v343, %v333
        %v346 = vmax.f32 %v344, %v334
        %347 = vst [vmem:[#allocation2 + $0x10] sm:$0xff] %v345
        %348 = vst [vmem:[#allocation2 + $0x18] sm:$0xff] %v346
        %v349 = vld [vmem:[#allocation2 + $0x20] sm:$0xff]
        %v350 = vld [vmem:[#allocation2 + $0x28] sm:$0xff]
        %v351 = vadd.f32 %v349, %v335
        %v352 = vadd.f32 %v350, %v336
        %353 = vst [vmem:[#allocation2 + $0x20] sm:$0xff] %v351
        %354 = vst [vmem:[#allocation2 + $0x28] sm:$0xff] %v352
        %v355 = vld [vmem:[#allocation2 + $0x30] sm:$0xff]
        %v356 = vld [vmem:[#allocation2 + $0x38] sm:$0xff]
        %v357 = vmax.f32 %v355, %v335
        %v358 = vmax.f32 %v356, %v336
        %359 = vst [vmem:[#allocation2 + $0x30] sm:$0xff] %v357
        %360 = vst [vmem:[#allocation2 + $0x38] sm:$0xff] %v358
        %v361 = vld [vmem:[%s225 + $0x30] sm:$0xff]
        %v362 = vld [vmem:[%s225 + $0x38] sm:$0xff]
        %v363 = vld [vmem:[%s234 + $0x30] sm:$0xff]
        %v364 = vld [vmem:[%s234 + $0x38] sm:$0xff]
        %v365 = vld [vmem:[#allocation2] sm:$0xff]
        %v366 = vld [vmem:[#allocation2 + $0x8] sm:$0xff]
        %v367 = vadd.f32 %v365, %v361
        %v368 = vadd.f32 %v366, %v362
        %369 = vst [vmem:[#allocation2] sm:$0xff] %v367
        %370 = vst [vmem:[#allocation2 + $0x8] sm:$0xff] %v368
        %v371 = vld [vmem:[#allocation2 + $0x10] sm:$0xff]
        %v372 = vld [vmem:[#allocation2 + $0x18] sm:$0xff]
        %v373 = vmax.f32 %v371, %v361
        %v374 = vmax.f32 %v372, %v362
        %375 = vst [vmem:[#allocation2 + $0x10] sm:$0xff] %v373
        %376 = vst [vmem:[#allocation2 + $0x18] sm:$0xff] %v374
        %v377 = vld [vmem:[#allocation2 + $0x20] sm:$0xff]
        %v378 = vld [vmem:[#allocation2 + $0x28] sm:$0xff]
        %v379 = vadd.f32 %v377, %v363
        %v380 = vadd.f32 %v378, %v364
        %381 = vst [vmem:[#allocation2 + $0x20] sm:$0xff] %v379
        %382 = vst [vmem:[#allocation2 + $0x28] sm:$0xff] %v380
        %v383 = vld [vmem:[#allocation2 + $0x30] sm:$0xff]
        %v384 = vld [vmem:[#allocation2 + $0x38] sm:$0xff]
        %v385 = vmax.f32 %v383, %v363
        %v386 = vmax.f32 %v384, %v364
        %387 = vst [vmem:[#allocation2 + $0x30] sm:$0xff] %v385
        %388 = vst [vmem:[#allocation2 + $0x38] sm:$0xff] %v386
        // Predicated region
        $region49: #{tpu_custom_call.1} parent=31 // pred_check
          %p389 = pneg %p265
        $region50: #{tpu_custom_call.1} parent=31 // pred_check_branch
          %391 = sbr.rel (%p389) target = $region52
        $region51: #{tpu_custom_call.1} parent=31 // pred_region
          %v392 = vld [vmem:[#allocation2] sm:$0xff]
          %v393 = vld [vmem:[#allocation2 + $0x8] sm:$0xff]
          %v394 = vrot.slane %v392, 4
          %v395 = vadd.f32 %v392, %v394
          %v396 = vrot.slane %v395, 2
          %v397 = vadd.f32 %v395, %v396
          %v398 = vrot.slane %v397, 1
          %v399 = vadd.f32 %v397, %v398
          %v400 = vrot.slane %v393, 4
          %v401 = vadd.f32 %v393, %v400
          %v402 = vrot.slane %v401, 2
          %v403 = vadd.f32 %v401, %v402
          %v404 = vrot.slane %v403, 1
          %v405 = vadd.f32 %v403, %v404
          %v406 = vld [vmem:[#allocation2 + $0x10] sm:$0xff]
          %v407 = vld [vmem:[#allocation2 + $0x18] sm:$0xff]
          %v408 = vrot.slane %v406, 4
          %v409 = vmax.f32 %v406, %v408
          %v410 = vrot.slane %v409, 2
          %v411 = vmax.f32 %v409, %v410
          %v412 = vrot.slane %v411, 1
          %v413 = vmax.f32 %v411, %v412
          %v414 = vrot.slane %v407, 4
          %v415 = vmax.f32 %v407, %v414
          %v416 = vrot.slane %v415, 2
          %v417 = vmax.f32 %v415, %v416
          %v418 = vrot.slane %v417, 1
          %v419 = vmax.f32 %v417, %v418
          %v420 = vld [vmem:[#allocation2 + $0x20] sm:$0xff]
          %v421 = vld [vmem:[#allocation2 + $0x28] sm:$0xff]
          %v422 = vrot.slane %v420, 4
          %v423 = vadd.f32 %v420, %v422
          %v424 = vrot.slane %v423, 2
          %v425 = vadd.f32 %v423, %v424
          %v426 = vrot.slane %v425, 1
          %v427 = vadd.f32 %v425, %v426
          %v428 = vrot.slane %v421, 4
          %v429 = vadd.f32 %v421, %v428
          %v430 = vrot.slane %v429, 2
          %v431 = vadd.f32 %v429, %v430
          %v432 = vrot.slane %v431, 1
          %v433 = vadd.f32 %v431, %v432
          %v434 = vld [vmem:[#allocation2 + $0x30] sm:$0xff]
          %v435 = vld [vmem:[#allocation2 + $0x38] sm:$0xff]
          %v436 = vrot.slane %v434, 4
          %v437 = vmax.f32 %v434, %v436
          %v438 = vrot.slane %v437, 2
          %v439 = vmax.f32 %v437, %v438
          %v440 = vrot.slane %v439, 1
          %v441 = vmax.f32 %v439, %v440
          %v442 = vrot.slane %v435, 4
          %v443 = vmax.f32 %v435, %v442
          %v444 = vrot.slane %v443, 2
          %v445 = vmax.f32 %v443, %v444
          %v446 = vrot.slane %v445, 1
          %v447 = vmax.f32 %v445, %v446
          %v448 = vlaneseq
          %v449 = vand.u32 %v448, 127
          %v450 = vadd.s32 %v449, 128
          %v451 = vcvt.s32.f32 %v449
          %v452 = vcvt.s32.f32 %v450
          %v453 = vmul.f32 %v451, 0.0625
          %v454 = vmul.f32 %v452, 0.0625
          %v455 = vfloor.f32 %v453
          %v456 = vfloor.f32 %v454
          %v457 = vcvt.f32.s32.to.zero.pseudo %v455
          %v458 = vcvt.f32.s32.to.zero.pseudo %v456
          %v459 = vmul.u32 %v457, 16
          %v460 = vmul.u32 %v458, 16
          %v461 = vsub.s32 %v449, %v459
          %v462 = vsub.s32 %v450, %v460
          %vm463 = vcmp.lt.s32.totalorder %v461, 0
          %vm464 = vcmp.lt.s32.totalorder %v462, 0
          %v465 = vadd.s32 %v461, 16
          %v466 = vadd.s32 %v462, 16
          %v467 = vsel %vm463, %v465, %v461
          %v468 = vsel %vm464, %v466, %v462
          %vm469 = vcmp.ge.s32.totalorder %v467, 16
          %vm470 = vcmp.ge.s32.totalorder %v468, 16
          %v471 = vsub.s32 %v467, 16
          %v472 = vsub.s32 %v468, 16
          %v473 = vsel %vm469, %v471, %v467
          %v474 = vsel %vm470, %v472, %v468
          %vm475 = vcmp.ge.s32.totalorder %v473, 3
          %vm476 = vcmp.ge.s32.totalorder %v474, 3
          %vm477 = vcmp.lt.s32.totalorder %v473, 19
          %vm478 = vcmp.lt.s32.totalorder %v474, 19
          %vm479 = vmand %vm475, %vm477
          %vm480 = vmand %vm476, %vm478
          %vm481 = vcmp.ge.s32.totalorder %v473, 2
          %vm482 = vcmp.ge.s32.totalorder %v474, 2
          %vm483 = vcmp.lt.s32.totalorder %v473, 18
          %vm484 = vcmp.lt.s32.totalorder %v474, 18
          %vm485 = vmand %vm481, %vm483
          %vm486 = vmand %vm482, %vm484
          %vm487 = vcmp.ge.s32.totalorder %v473, 1
          %vm488 = vcmp.ge.s32.totalorder %v474, 1
          %vm489 = vcmp.lt.s32.totalorder %v473, 17
          %vm490 = vcmp.lt.s32.totalorder %v474, 17
          %vm491 = vmand %vm487, %vm489
          %vm492 = vmand %vm488, %vm490
          %vm493 = vcmp.ge.s32.totalorder %v473, 0
          %vm494 = vcmp.ge.s32.totalorder %v474, 0
          %vm495 = vcmp.lt.s32.totalorder %v473, 16
          %vm496 = vcmp.lt.s32.totalorder %v474, 16
          %vm497 = vmand %vm493, %vm495
          %vm498 = vmand %vm494, %vm496
          %vm499 = vcmp.ge.s32.totalorder %v473, 4294967295
          %vm500 = vcmp.ge.s32.totalorder %v474, 4294967295
          %vm501 = vcmp.lt.s32.totalorder %v473, 15
          %vm502 = vcmp.lt.s32.totalorder %v474, 15
          %vm503 = vmand %vm499, %vm501
          %vm504 = vmand %vm500, %vm502
          %vm505 = vcmp.ge.s32.totalorder %v473, 4294967294
          %vm506 = vcmp.ge.s32.totalorder %v474, 4294967294
          %vm507 = vcmp.lt.s32.totalorder %v473, 14
          %vm508 = vcmp.lt.s32.totalorder %v474, 14
          %vm509 = vmand %vm505, %vm507
          %vm510 = vmand %vm506, %vm508
          %vm511 = vcmp.ge.s32.totalorder %v473, 4294967293
          %vm512 = vcmp.ge.s32.totalorder %v474, 4294967293
          %vm513 = vcmp.lt.s32.totalorder %v473, 13
          %vm514 = vcmp.lt.s32.totalorder %v474, 13
          %vm515 = vmand %vm511, %vm513
          %vm516 = vmand %vm512, %vm514
          %v517 = vlaneseq
          %vm518 = vcmp.ge.s32.totalorder %v517, 0
          %vm519 = vcmp.lt.s32.totalorder %v517, 51
          %vm520 = vmand %vm518, %vm519
          %521 = vst.msk [vmem:[#allocation3] sm:$0x1] %vm520, 0.0
          %vm522 = vcmp.ge.s32.totalorder %v517, 51
          %vm523 = vcmp.lt.s32.totalorder %v517, 102
          %vm524 = vmand %vm522, %vm523
          %525 = vst.msk [vmem:[#allocation3 + $0x2] sm:$0x1] %vm524, 0.0
          %vm526 = vcmp.lt.s32.totalorder %v517, 256
          %vm527 = vmand %vm518, %vm526
          %528 = vst.msk [vmem:[#allocation4] sm:$0x3] %vm527, 0.0
          %v531 = vcombine.low %v399, %v405
          %v533 = vunpack.c.l.s4 1966171168
          %v534 = vunpack.c.0.s8 %v533
          %v535 = vlaneseq
          %v536 = vshrl.u32 %v535, 7
          %v537 = vsub.s32 %v534, %v536
          %v538 = vrot.slane %v531, %v537
          %v540 = vunpack.c.l.s4 1966171168
          %v541 = vunpack.c.0.s8 %v540
          %v542 = vlaneseq
          %v543 = vshrl.u32 %v542, 7
          %v544 = vsub.s32 %v541, %v543
          %v545 = vrot.slane %v538, %v544
          %546 = vrot.lane.b32.xlu0 %v545, 51
          %v547 = vpop.permute.xlu0 %546
          %v548 = vrot.slane %v547, 7
          %vm549 = vcmask 416768
          %v550 = vsel %vm549, %v548, %v547
          %vm552 = vcmp.lt.s32.totalorder %v517, 307
          %vm553 = vmand %vm522, %vm552
          %554 = vst.msk [vmem:[#allocation3] sm:$0x7] %vm553, %v550
          %s555 = sld [smem:[#allocation5]]
          %v556 = vld [vmem:[#allocation3] sm:$0x3]
          %v557 = vstv %s555
          %v558 = vmul.f32 %v557, %v556
          %s559 = sld [smem:[#allocation5 + $0x7]]
          %v560 = vld [vmem:[#allocation3] sm:$0x7]
          %v561 = vstv %s559
          %v562 = vmul.f32 %v561, %v560
          %564 = vrot.lane.b32.xlu0 %v562, 112
          %v565 = vpop.permute.xlu0 %564
          %v566 = vrot.slane %v565, 1
          %vm567 = vcmask 916480
          %v568 = vsel %vm567, %v565, %v566
          %v570 = vadd.f32 %v558, %v568
          %s571 = sld [smem:[#allocation5 + $0xe]]
          %v572 = vstv %s571
          %v573 = vmul.f32 %v572, %v560
          %575 = vrot.lane.b32.xlu0 %v573, 96
          %v576 = vpop.permute.xlu0 %575
          %v577 = vrot.slane %v576, 1
          %vm578 = vcmask 785408
          %v579 = vsel %vm578, %v576, %v577
          %v581 = vadd.f32 %v570, %v579
          %s582 = sld [smem:[#allocation5 + $0x15]]
          %v583 = vstv %s582
          %v584 = vmul.f32 %v583, %v560
          %586 = vrot.lane.b32.xlu0 %v584, 80
          %v587 = vpop.permute.xlu0 %586
          %v588 = vrot.slane %v587, 1
          %vm589 = vcmask 654336
          %v590 = vsel %vm589, %v587, %v588
          %v592 = vadd.f32 %v581, %v590
          %s593 = sld [smem:[#allocation5 + $0x1c]]
          %v594 = vstv %s593
          %v595 = vmul.f32 %v594, %v560
          %597 = vrot.lane.b32.xlu0 %v595, 64
          %v598 = vpop.permute.xlu0 %597
          %v599 = vrot.slane %v598, 1
          %vm600 = vcmask 523264
          %v601 = vsel %vm600, %v598, %v599
          %v603 = vadd.f32 %v592, %v601
          %s604 = sld [smem:[#allocation5 + $0x23]]
          %v605 = vstv %s604
          %v606 = vmul.f32 %v605, %v560
          %608 = vrot.lane.b32.xlu0 %v606, 48
          %v609 = vpop.permute.xlu0 %608
          %v610 = vrot.slane %v609, 1
          %vm611 = vcmask 392192
          %v612 = vsel %vm611, %v609, %v610
          %v614 = vadd.f32 %v603, %v612
          %s615 = sld [smem:[#allocation5 + $0x2a]]
          %v616 = vstv %s615
          %v617 = vmul.f32 %v616, %v560
          %619 = vrot.lane.b32.xlu0 %v617, 32
          %v620 = vpop.permute.xlu0 %619
          %v621 = vrot.slane %v620, 1
          %vm622 = vcmask 261120
          %v623 = vsel %vm622, %v620, %v621
          %v625 = vadd.f32 %v614, %v623
          %v626 = vld [vmem:[#allocation4] sm:$0x3]
          %v628 = vlaneseq
          %v629 = vshrl.u32 %v628, 7
          %v630 = vsub.s32 0, %v629
          %v631 = vrot.slane %v625, %v630
          %v632 = vlaneseq
          %v633 = vshrl.u32 %v632, 7
          %v634 = vsub.s32 1, %v633
          %v635 = vrot.slane %v625, %v634
          %v638 = vsel %vm479, %v631, 0.0
          %v639 = vsel %vm480, %v635, 0.0
          %v642 = vcombine.low %v638, %v639
          %v644 = vunpack.c.l.s4 1966171168
          %v645 = vunpack.c.0.s8 %v644
          %v646 = vlaneseq
          %v647 = vshrl.u32 %v646, 7
          %v648 = vsub.s32 %v645, %v647
          %v649 = vrot.slane %v642, %v648
          %v651 = vunpack.c.l.s4 1966171168
          %v652 = vunpack.c.0.s8 %v651
          %v653 = vlaneseq
          %v654 = vshrl.u32 %v653, 7
          %v655 = vsub.s32 %v652, %v654
          %v656 = vrot.slane %v649, %v655
          %v658 = vadd.f32 %v626, %v656
          %659 = vst.msk [vmem:[#allocation4] sm:$0x3] %vm527, %v658
          %s660 = sld [smem:[#allocation5 + $0x1]]
          %v661 = vld [vmem:[#allocation3] sm:$0x7]
          %v662 = vstv %s660
          %v663 = vmul.f32 %v662, %v661
          %s664 = sld [smem:[#allocation5 + $0x8]]
          %v665 = vstv %s664
          %v666 = vmul.f32 %v665, %v661
          %668 = vrot.lane.b32.xlu0 %v666, 112
          %v669 = vpop.permute.xlu0 %668
          %v670 = vrot.slane %v669, 1
          %v671 = vsel %vm567, %v669, %v670
          %v673 = vadd.f32 %v663, %v671
          %s674 = sld [smem:[#allocation5 + $0xf]]
          %v675 = vstv %s674
          %v676 = vmul.f32 %v675, %v661
          %678 = vrot.lane.b32.xlu0 %v676, 96
          %v679 = vpop.permute.xlu0 %678
          %v680 = vrot.slane %v679, 1
          %v681 = vsel %vm578, %v679, %v680
          %v683 = vadd.f32 %v673, %v681
          %s684 = sld [smem:[#allocation5 + $0x16]]
          %v685 = vstv %s684
          %v686 = vmul.f32 %v685, %v661
          %688 = vrot.lane.b32.xlu0 %v686, 80
          %v689 = vpop.permute.xlu0 %688
          %v690 = vrot.slane %v689, 1
          %v691 = vsel %vm589, %v689, %v690
          %v693 = vadd.f32 %v683, %v691
          %s694 = sld [smem:[#allocation5 + $0x1d]]
          %v695 = vstv %s694
          %v696 = vmul.f32 %v695, %v661
          %698 = vrot.lane.b32.xlu0 %v696, 64
          %v699 = vpop.permute.xlu0 %698
          %v700 = vrot.slane %v699, 1
          %v701 = vsel %vm600, %v699, %v700
          %v703 = vadd.f32 %v693, %v701
          %s704 = sld [smem:[#allocation5 + $0x24]]
          %v705 = vstv %s704
          %v706 = vmul.f32 %v705, %v661
          %708 = vrot.lane.b32.xlu0 %v706, 48
          %v709 = vpop.permute.xlu0 %708
          %v710 = vrot.slane %v709, 1
          %v711 = vsel %vm611, %v709, %v710
          %v713 = vadd.f32 %v703, %v711
          %s714 = sld [smem:[#allocation5 + $0x2b]]
          %v715 = vstv %s714
          %v716 = vmul.f32 %v715, %v661
          %718 = vrot.lane.b32.xlu0 %v716, 32
          %v719 = vpop.permute.xlu0 %718
          %v720 = vrot.slane %v719, 1
          %v721 = vsel %vm622, %v719, %v720
          %v723 = vadd.f32 %v713, %v721
          %v724 = vld [vmem:[#allocation4] sm:$0x3]
          %v726 = vlaneseq
          %v727 = vshrl.u32 %v726, 7
          %v728 = vsub.s32 0, %v727
          %v729 = vrot.slane %v723, %v728
          %v730 = vlaneseq
          %v731 = vshrl.u32 %v730, 7
          %v732 = vsub.s32 1, %v731
          %v733 = vrot.slane %v723, %v732
          %v734 = vlaneseq
          %v735 = vshrl.u32 %v734, 7
          %v736 = vsub.s32 2, %v735
          %v737 = vrot.slane %v723, %v736
          %738 = vrot.lane.b32.xlu0 %v729, 127
          %v739 = vpop.permute.xlu0 %738
          %740 = vrot.lane.b32.xlu0 %v733, 127
          %v741 = vpop.permute.xlu0 %740
          %742 = vrot.lane.b32.xlu0 %v737, 127
          %v743 = vpop.permute.xlu0 %742
          %vm744 = vcmask 1039360
          %v745 = vsel %vm744, %v739, %v741
          %v746 = vsel %vm744, %v741, %v743
          %v749 = vsel %vm485, %v745, 0.0
          %v750 = vsel %vm486, %v746, 0.0
          %v753 = vcombine.low %v749, %v750
          %v755 = vunpack.c.l.s4 1966171168
          %v756 = vunpack.c.0.s8 %v755
          %v757 = vlaneseq
          %v758 = vshrl.u32 %v757, 7
          %v759 = vsub.s32 %v756, %v758
          %v760 = vrot.slane %v753, %v759
          %v762 = vunpack.c.l.s4 1966171168
          %v763 = vunpack.c.0.s8 %v762
          %v764 = vlaneseq
          %v765 = vshrl.u32 %v764, 7
          %v766 = vsub.s32 %v763, %v765
          %v767 = vrot.slane %v760, %v766
          %v769 = vadd.f32 %v724, %v767
          %770 = vst.msk [vmem:[#allocation4] sm:$0x3] %vm527, %v769
          %s771 = sld [smem:[#allocation5 + $0x2]]
          %v772 = vld [vmem:[#allocation3] sm:$0x7]
          %v773 = vstv %s771
          %v774 = vmul.f32 %v773, %v772
          %s775 = sld [smem:[#allocation5 + $0x9]]
          %v776 = vstv %s775
          %v777 = vmul.f32 %v776, %v772
          %779 = vrot.lane.b32.xlu0 %v777, 112
          %v780 = vpop.permute.xlu0 %779
          %v781 = vrot.slane %v780, 1
          %v782 = vsel %vm567, %v780, %v781
          %v784 = vadd.f32 %v774, %v782
          %s785 = sld [smem:[#allocation5 + $0x10]]
          %v786 = vstv %s785
          %v787 = vmul.f32 %v786, %v772
          %789 = vrot.lane.b32.xlu0 %v787, 96
          %v790 = vpop.permute.xlu0 %789
          %v791 = vrot.slane %v790, 1
          %v792 = vsel %vm578, %v790, %v791
          %v794 = vadd.f32 %v784, %v792
          %s795 = sld [smem:[#allocation5 + $0x17]]
          %v796 = vstv %s795
          %v797 = vmul.f32 %v796, %v772
          %799 = vrot.lane.b32.xlu0 %v797, 80
          %v800 = vpop.permute.xlu0 %799
          %v801 = vrot.slane %v800, 1
          %v802 = vsel %vm589, %v800, %v801
          %v804 = vadd.f32 %v794, %v802
          %s805 = sld [smem:[#allocation5 + $0x1e]]
          %v806 = vstv %s805
          %v807 = vmul.f32 %v806, %v772
          %809 = vrot.lane.b32.xlu0 %v807, 64
          %v810 = vpop.permute.xlu0 %809
          %v811 = vrot.slane %v810, 1
          %v812 = vsel %vm600, %v810, %v811
          %v814 = vadd.f32 %v804, %v812
          %s815 = sld [smem:[#allocation5 + $0x25]]
          %v816 = vstv %s815
          %v817 = vmul.f32 %v816, %v772
          %819 = vrot.lane.b32.xlu0 %v817, 48
          %v820 = vpop.permute.xlu0 %819
          %v821 = vrot.slane %v820, 1
          %v822 = vsel %vm611, %v820, %v821
          %v824 = vadd.f32 %v814, %v822
          %s825 = sld [smem:[#allocation5 + $0x2c]]
          %v826 = vstv %s825
          %v827 = vmul.f32 %v826, %v772
          %829 = vrot.lane.b32.xlu0 %v827, 32
          %v830 = vpop.permute.xlu0 %829
          %v831 = vrot.slane %v830, 1
          %v832 = vsel %vm622, %v830, %v831
          %v834 = vadd.f32 %v824, %v832
          %v835 = vld [vmem:[#allocation4] sm:$0x3]
          %v837 = vlaneseq
          %v838 = vshrl.u32 %v837, 7
          %v839 = vsub.s32 0, %v838
          %v840 = vrot.slane %v834, %v839
          %v841 = vlaneseq
          %v842 = vshrl.u32 %v841, 7
          %v843 = vsub.s32 1, %v842
          %v844 = vrot.slane %v834, %v843
          %v845 = vlaneseq
          %v846 = vshrl.u32 %v845, 7
          %v847 = vsub.s32 2, %v846
          %v848 = vrot.slane %v834, %v847
          %849 = vrot.lane.b32.xlu0 %v840, 126
          %v850 = vpop.permute.xlu0 %849
          %851 = vrot.lane.b32.xlu0 %v844, 126
          %v852 = vpop.permute.xlu0 %851
          %853 = vrot.lane.b32.xlu0 %v848, 126
          %v854 = vpop.permute.xlu0 %853
          %vm855 = vcmask 1031168
          %v856 = vsel %vm855, %v850, %v852
          %v857 = vsel %vm855, %v852, %v854
          %v860 = vsel %vm491, %v856, 0.0
          %v861 = vsel %vm492, %v857, 0.0
          %v864 = vcombine.low %v860, %v861
          %v866 = vunpack.c.l.s4 1966171168
          %v867 = vunpack.c.0.s8 %v866
          %v868 = vlaneseq
          %v869 = vshrl.u32 %v868, 7
          %v870 = vsub.s32 %v867, %v869
          %v871 = vrot.slane %v864, %v870
          %v873 = vunpack.c.l.s4 1966171168
          %v874 = vunpack.c.0.s8 %v873
          %v875 = vlaneseq
          %v876 = vshrl.u32 %v875, 7
          %v877 = vsub.s32 %v874, %v876
          %v878 = vrot.slane %v871, %v877
          %v880 = vadd.f32 %v835, %v878
          %881 = vst.msk [vmem:[#allocation4] sm:$0x3] %vm527, %v880
          %s882 = sld [smem:[#allocation5 + $0x3]]
          %v883 = vld [vmem:[#allocation3] sm:$0x7]
          %v884 = vstv %s882
          %v885 = vmul.f32 %v884, %v883
          %s886 = sld [smem:[#allocation5 + $0xa]]
          %v887 = vstv %s886
          %v888 = vmul.f32 %v887, %v883
          %890 = vrot.lane.b32.xlu0 %v888, 112
          %v891 = vpop.permute.xlu0 %890
          %v892 = vrot.slane %v891, 1
          %v893 = vsel %vm567, %v891, %v892
          %v895 = vadd.f32 %v885, %v893
          %s896 = sld [smem:[#allocation5 + $0x11]]
          %v897 = vstv %s896
          %v898 = vmul.f32 %v897, %v883
          %900 = vrot.lane.b32.xlu0 %v898, 96
          %v901 = vpop.permute.xlu0 %900
          %v902 = vrot.slane %v901, 1
          %v903 = vsel %vm578, %v901, %v902
          %v905 = vadd.f32 %v895, %v903
          %s906 = sld [smem:[#allocation5 + $0x18]]
          %v907 = vstv %s906
          %v908 = vmul.f32 %v907, %v883
          %910 = vrot.lane.b32.xlu0 %v908, 80
          %v911 = vpop.permute.xlu0 %910
          %v912 = vrot.slane %v911, 1
          %v913 = vsel %vm589, %v911, %v912
          %v915 = vadd.f32 %v905, %v913
          %s916 = sld [smem:[#allocation5 + $0x1f]]
          %v917 = vstv %s916
          %v918 = vmul.f32 %v917, %v883
          %920 = vrot.lane.b32.xlu0 %v918, 64
          %v921 = vpop.permute.xlu0 %920
          %v922 = vrot.slane %v921, 1
          %v923 = vsel %vm600, %v921, %v922
          %v925 = vadd.f32 %v915, %v923
          %s926 = sld [smem:[#allocation5 + $0x26]]
          %v927 = vstv %s926
          %v928 = vmul.f32 %v927, %v883
          %930 = vrot.lane.b32.xlu0 %v928, 48
          %v931 = vpop.permute.xlu0 %930
          %v932 = vrot.slane %v931, 1
          %v933 = vsel %vm611, %v931, %v932
          %v935 = vadd.f32 %v925, %v933
          %s936 = sld [smem:[#allocation5 + $0x2d]]
          %v937 = vstv %s936
          %v938 = vmul.f32 %v937, %v883
          %940 = vrot.lane.b32.xlu0 %v938, 32
          %v941 = vpop.permute.xlu0 %940
          %v942 = vrot.slane %v941, 1
          %v943 = vsel %vm622, %v941, %v942
          %v945 = vadd.f32 %v935, %v943
          %v946 = vld [vmem:[#allocation4] sm:$0x3]
          %v948 = vlaneseq
          %v949 = vshrl.u32 %v948, 7
          %v950 = vsub.s32 0, %v949
          %v951 = vrot.slane %v945, %v950
          %v952 = vlaneseq
          %v953 = vshrl.u32 %v952, 7
          %v954 = vsub.s32 1, %v953
          %v955 = vrot.slane %v945, %v954
          %v956 = vlaneseq
          %v957 = vshrl.u32 %v956, 7
          %v958 = vsub.s32 2, %v957
          %v959 = vrot.slane %v945, %v958
          %960 = vrot.lane.b32.xlu0 %v951, 125
          %v961 = vpop.permute.xlu0 %960
          %962 = vrot.lane.b32.xlu0 %v955, 125
          %v963 = vpop.permute.xlu0 %962
          %964 = vrot.lane.b32.xlu0 %v959, 125
          %v965 = vpop.permute.xlu0 %964
          %vm966 = vcmask 1022976
          %v967 = vsel %vm966, %v961, %v963
          %v968 = vsel %vm966, %v963, %v965
          %v971 = vsel %vm497, %v967, 0.0
          %v972 = vsel %vm498, %v968, 0.0
          %v975 = vcombine.low %v971, %v972
          %v977 = vunpack.c.l.s4 1966171168
          %v978 = vunpack.c.0.s8 %v977
          %v979 = vlaneseq
          %v980 = vshrl.u32 %v979, 7
          %v981 = vsub.s32 %v978, %v980
          %v982 = vrot.slane %v975, %v981
          %v984 = vunpack.c.l.s4 1966171168
          %v985 = vunpack.c.0.s8 %v984
          %v986 = vlaneseq
          %v987 = vshrl.u32 %v986, 7
          %v988 = vsub.s32 %v985, %v987
          %v989 = vrot.slane %v982, %v988
          %v991 = vadd.f32 %v946, %v989
          %992 = vst.msk [vmem:[#allocation4] sm:$0x3] %vm527, %v991
          %s993 = sld [smem:[#allocation5 + $0x4]]
          %v994 = vld [vmem:[#allocation3] sm:$0x7]
          %v995 = vstv %s993
          %v996 = vmul.f32 %v995, %v994
          %s997 = sld [smem:[#allocation5 + $0xb]]
          %v998 = vstv %s997
          %v999 = vmul.f32 %v998, %v994
          %1001 = vrot.lane.b32.xlu0 %v999, 112
          %v1002 = vpop.permute.xlu0 %1001
          %v1003 = vrot.slane %v1002, 1
          %v1004 = vsel %vm567, %v1002, %v1003
          %v1006 = vadd.f32 %v996, %v1004
          %s1007 = sld [smem:[#allocation5 + $0x12]]
          %v1008 = vstv %s1007
          %v1009 = vmul.f32 %v1008, %v994
          %1011 = vrot.lane.b32.xlu0 %v1009, 96
          %v1012 = vpop.permute.xlu0 %1011
          %v1013 = vrot.slane %v1012, 1
          %v1014 = vsel %vm578, %v1012, %v1013
          %v1016 = vadd.f32 %v1006, %v1014
          %s1017 = sld [smem:[#allocation5 + $0x19]]
          %v1018 = vstv %s1017
          %v1019 = vmul.f32 %v1018, %v994
          %1021 = vrot.lane.b32.xlu0 %v1019, 80
          %v1022 = vpop.permute.xlu0 %1021
          %v1023 = vrot.slane %v1022, 1
          %v1024 = vsel %vm589, %v1022, %v1023
          %v1026 = vadd.f32 %v1016, %v1024
          %s1027 = sld [smem:[#allocation5 + $0x20]]
          %v1028 = vstv %s1027
          %v1029 = vmul.f32 %v1028, %v994
          %1031 = vrot.lane.b32.xlu0 %v1029, 64
          %v1032 = vpop.permute.xlu0 %1031
          %v1033 = vrot.slane %v1032, 1
          %v1034 = vsel %vm600, %v1032, %v1033
          %v1036 = vadd.f32 %v1026, %v1034
          %s1037 = sld [smem:[#allocation5 + $0x27]]
          %v1038 = vstv %s1037
          %v1039 = vmul.f32 %v1038, %v994
          %1041 = vrot.lane.b32.xlu0 %v1039, 48
          %v1042 = vpop.permute.xlu0 %1041
          %v1043 = vrot.slane %v1042, 1
          %v1044 = vsel %vm611, %v1042, %v1043
          %v1046 = vadd.f32 %v1036, %v1044
          %s1047 = sld [smem:[#allocation5 + $0x2e]]
          %v1048 = vstv %s1047
          %v1049 = vmul.f32 %v1048, %v994
          %1051 = vrot.lane.b32.xlu0 %v1049, 32
          %v1052 = vpop.permute.xlu0 %1051
          %v1053 = vrot.slane %v1052, 1
          %v1054 = vsel %vm622, %v1052, %v1053
          %v1056 = vadd.f32 %v1046, %v1054
          %v1057 = vld [vmem:[#allocation4] sm:$0x3]
          %v1059 = vlaneseq
          %v1060 = vshrl.u32 %v1059, 7
          %v1061 = vsub.s32 0, %v1060
          %v1062 = vrot.slane %v1056, %v1061
          %v1063 = vlaneseq
          %v1064 = vshrl.u32 %v1063, 7
          %v1065 = vsub.s32 1, %v1064
          %v1066 = vrot.slane %v1056, %v1065
          %v1067 = vlaneseq
          %v1068 = vshrl.u32 %v1067, 7
          %v1069 = vsub.s32 2, %v1068
          %v1070 = vrot.slane %v1056, %v1069
          %1071 = vrot.lane.b32.xlu0 %v1062, 124
          %v1072 = vpop.permute.xlu0 %1071
          %1073 = vrot.lane.b32.xlu0 %v1066, 124
          %v1074 = vpop.permute.xlu0 %1073
          %1075 = vrot.lane.b32.xlu0 %v1070, 124
          %v1076 = vpop.permute.xlu0 %1075
          %vm1077 = vcmask 1014784
          %v1078 = vsel %vm1077, %v1072, %v1074
          %v1079 = vsel %vm1077, %v1074, %v1076
          %v1082 = vsel %vm503, %v1078, 0.0
          %v1083 = vsel %vm504, %v1079, 0.0
          %v1086 = vcombine.low %v1082, %v1083
          %v1088 = vunpack.c.l.s4 1966171168
          %v1089 = vunpack.c.0.s8 %v1088
          %v1090 = vlaneseq
          %v1091 = vshrl.u32 %v1090, 7
          %v1092 = vsub.s32 %v1089, %v1091
          %v1093 = vrot.slane %v1086, %v1092
          %v1095 = vunpack.c.l.s4 1966171168
          %v1096 = vunpack.c.0.s8 %v1095
          %v1097 = vlaneseq
          %v1098 = vshrl.u32 %v1097, 7
          %v1099 = vsub.s32 %v1096, %v1098
          %v1100 = vrot.slane %v1093, %v1099
          %v1102 = vadd.f32 %v1057, %v1100
          %1103 = vst.msk [vmem:[#allocation4] sm:$0x3] %vm527, %v1102
          %s1104 = sld [smem:[#allocation5 + $0x5]]
          %v1105 = vld [vmem:[#allocation3] sm:$0x7]
          %v1106 = vstv %s1104
          %v1107 = vmul.f32 %v1106, %v1105
          %s1108 = sld [smem:[#allocation5 + $0xc]]
          %v1109 = vstv %s1108
          %v1110 = vmul.f32 %v1109, %v1105
          %1112 = vrot.lane.b32.xlu0 %v1110, 112
          %v1113 = vpop.permute.xlu0 %1112
          %v1114 = vrot.slane %v1113, 1
          %v1115 = vsel %vm567, %v1113, %v1114
          %v1117 = vadd.f32 %v1107, %v1115
          %s1118 = sld [smem:[#allocation5 + $0x13]]
          %v1119 = vstv %s1118
          %v1120 = vmul.f32 %v1119, %v1105
          %1122 = vrot.lane.b32.xlu0 %v1120, 96
          %v1123 = vpop.permute.xlu0 %1122
          %v1124 = vrot.slane %v1123, 1
          %v1125 = vsel %vm578, %v1123, %v1124
          %v1127 = vadd.f32 %v1117, %v1125
          %s1128 = sld [smem:[#allocation5 + $0x1a]]
          %v1129 = vstv %s1128
          %v1130 = vmul.f32 %v1129, %v1105
          %1132 = vrot.lane.b32.xlu0 %v1130, 80
          %v1133 = vpop.permute.xlu0 %1132
          %v1134 = vrot.slane %v1133, 1
          %v1135 = vsel %vm589, %v1133, %v1134
          %v1137 = vadd.f32 %v1127, %v1135
          %s1138 = sld [smem:[#allocation5 + $0x21]]
          %v1139 = vstv %s1138
          %v1140 = vmul.f32 %v1139, %v1105
          %1142 = vrot.lane.b32.xlu0 %v1140, 64
          %v1143 = vpop.permute.xlu0 %1142
          %v1144 = vrot.slane %v1143, 1
          %v1145 = vsel %vm600, %v1143, %v1144
          %v1147 = vadd.f32 %v1137, %v1145
          %s1148 = sld [smem:[#allocation5 + $0x28]]
          %v1149 = vstv %s1148
          %v1150 = vmul.f32 %v1149, %v1105
          %1152 = vrot.lane.b32.xlu0 %v1150, 48
          %v1153 = vpop.permute.xlu0 %1152
          %v1154 = vrot.slane %v1153, 1
          %v1155 = vsel %vm611, %v1153, %v1154
          %v1157 = vadd.f32 %v1147, %v1155
          %s1158 = sld [smem:[#allocation5 + $0x2f]]
          %v1159 = vstv %s1158
          %v1160 = vmul.f32 %v1159, %v1105
          %1162 = vrot.lane.b32.xlu0 %v1160, 32
          %v1163 = vpop.permute.xlu0 %1162
          %v1164 = vrot.slane %v1163, 1
          %v1165 = vsel %vm622, %v1163, %v1164
          %v1167 = vadd.f32 %v1157, %v1165
          %v1168 = vld [vmem:[#allocation4] sm:$0x3]
          %v1170 = vlaneseq
          %v1171 = vshrl.u32 %v1170, 7
          %v1172 = vsub.s32 0, %v1171
          %v1173 = vrot.slane %v1167, %v1172
          %v1174 = vlaneseq
          %v1175 = vshrl.u32 %v1174, 7
          %v1176 = vsub.s32 1, %v1175
          %v1177 = vrot.slane %v1167, %v1176
          %v1178 = vlaneseq
          %v1179 = vshrl.u32 %v1178, 7
          %v1180 = vsub.s32 2, %v1179
          %v1181 = vrot.slane %v1167, %v1180
          %1182 = vrot.lane.b32.xlu0 %v1173, 123
          %v1183 = vpop.permute.xlu0 %1182
          %1184 = vrot.lane.b32.xlu0 %v1177, 123
          %v1185 = vpop.permute.xlu0 %1184
          %1186 = vrot.lane.b32.xlu0 %v1181, 123
          %v1187 = vpop.permute.xlu0 %1186
          %vm1188 = vcmask 1006592
          %v1189 = vsel %vm1188, %v1183, %v1185
          %v1190 = vsel %vm1188, %v1185, %v1187
          %v1193 = vsel %vm509, %v1189, 0.0
          %v1194 = vsel %vm510, %v1190, 0.0
          %v1197 = vcombine.low %v1193, %v1194
          %v1199 = vunpack.c.l.s4 1966171168
          %v1200 = vunpack.c.0.s8 %v1199
          %v1201 = vlaneseq
          %v1202 = vshrl.u32 %v1201, 7
          %v1203 = vsub.s32 %v1200, %v1202
          %v1204 = vrot.slane %v1197, %v1203
          %v1206 = vunpack.c.l.s4 1966171168
          %v1207 = vunpack.c.0.s8 %v1206
          %v1208 = vlaneseq
          %v1209 = vshrl.u32 %v1208, 7
          %v1210 = vsub.s32 %v1207, %v1209
          %v1211 = vrot.slane %v1204, %v1210
          %v1213 = vadd.f32 %v1168, %v1211
          %1214 = vst.msk [vmem:[#allocation4] sm:$0x3] %vm527, %v1213
          %s1215 = sld [smem:[#allocation5 + $0x6]]
          %v1216 = vld [vmem:[#allocation3] sm:$0x7]
          %v1217 = vstv %s1215
          %v1218 = vmul.f32 %v1217, %v1216
          %s1219 = sld [smem:[#allocation5 + $0xd]]
          %v1220 = vstv %s1219
          %v1221 = vmul.f32 %v1220, %v1216
          %1223 = vrot.lane.b32.xlu0 %v1221, 112
          %v1224 = vpop.permute.xlu0 %1223
          %v1225 = vrot.slane %v1224, 1
          %v1226 = vsel %vm567, %v1224, %v1225
          %v1228 = vadd.f32 %v1218, %v1226
          %s1229 = sld [smem:[#allocation5 + $0x14]]
          %v1230 = vstv %s1229
          %v1231 = vmul.f32 %v1230, %v1216
          %1233 = vrot.lane.b32.xlu0 %v1231, 96
          %v1234 = vpop.permute.xlu0 %1233
          %v1235 = vrot.slane %v1234, 1
          %v1236 = vsel %vm578, %v1234, %v1235
          %v1238 = vadd.f32 %v1228, %v1236
          %s1239 = sld [smem:[#allocation5 + $0x1b]]
          %v1240 = vstv %s1239
          %v1241 = vmul.f32 %v1240, %v1216
          %1243 = vrot.lane.b32.xlu0 %v1241, 80
          %v1244 = vpop.permute.xlu0 %1243
          %v1245 = vrot.slane %v1244, 1
          %v1246 = vsel %vm589, %v1244, %v1245
          %v1248 = vadd.f32 %v1238, %v1246
          %s1249 = sld [smem:[#allocation5 + $0x22]]
          %v1250 = vstv %s1249
          %v1251 = vmul.f32 %v1250, %v1216
          %1253 = vrot.lane.b32.xlu0 %v1251, 64
          %v1254 = vpop.permute.xlu0 %1253
          %v1255 = vrot.slane %v1254, 1
          %v1256 = vsel %vm600, %v1254, %v1255
          %v1258 = vadd.f32 %v1248, %v1256
          %s1259 = sld [smem:[#allocation5 + $0x29]]
          %v1260 = vstv %s1259
          %v1261 = vmul.f32 %v1260, %v1216
          %1263 = vrot.lane.b32.xlu0 %v1261, 48
          %v1264 = vpop.permute.xlu0 %1263
          %v1265 = vrot.slane %v1264, 1
          %v1266 = vsel %vm611, %v1264, %v1265
          %v1268 = vadd.f32 %v1258, %v1266
          %s1269 = sld [smem:[#allocation5 + $0x30]]
          %v1270 = vstv %s1269
          %v1271 = vmul.f32 %v1270, %v1216
          %1273 = vrot.lane.b32.xlu0 %v1271, 32
          %v1274 = vpop.permute.xlu0 %1273
          %v1275 = vrot.slane %v1274, 1
          %v1276 = vsel %vm622, %v1274, %v1275
          %v1278 = vadd.f32 %v1268, %v1276
          %v1279 = vld [vmem:[#allocation4] sm:$0x3]
          %v1281 = vlaneseq
          %v1282 = vshrl.u32 %v1281, 7
          %v1283 = vsub.s32 0, %v1282
          %v1284 = vrot.slane %v1278, %v1283
          %v1285 = vlaneseq
          %v1286 = vshrl.u32 %v1285, 7
          %v1287 = vsub.s32 1, %v1286
          %v1288 = vrot.slane %v1278, %v1287
          %v1289 = vlaneseq
          %v1290 = vshrl.u32 %v1289, 7
          %v1291 = vsub.s32 2, %v1290
          %v1292 = vrot.slane %v1278, %v1291
          %1293 = vrot.lane.b32.xlu0 %v1284, 122
          %v1294 = vpop.permute.xlu0 %1293
          %1295 = vrot.lane.b32.xlu0 %v1288, 122
          %v1296 = vpop.permute.xlu0 %1295
          %1297 = vrot.lane.b32.xlu0 %v1292, 122
          %v1298 = vpop.permute.xlu0 %1297
          %vm1299 = vcmask 998400
          %v1300 = vsel %vm1299, %v1294, %v1296
          %v1301 = vsel %vm1299, %v1296, %v1298
          %v1304 = vsel %vm515, %v1300, 0.0
          %v1305 = vsel %vm516, %v1301, 0.0
          %v1308 = vcombine.low %v1304, %v1305
          %v1310 = vunpack.c.l.s4 1966171168
          %v1311 = vunpack.c.0.s8 %v1310
          %v1312 = vlaneseq
          %v1313 = vshrl.u32 %v1312, 7
          %v1314 = vsub.s32 %v1311, %v1313
          %v1315 = vrot.slane %v1308, %v1314
          %v1317 = vunpack.c.l.s4 1966171168
          %v1318 = vunpack.c.0.s8 %v1317
          %v1319 = vlaneseq
          %v1320 = vshrl.u32 %v1319, 7
          %v1321 = vsub.s32 %v1318, %v1320
          %v1322 = vrot.slane %v1315, %v1321
          %v1324 = vadd.f32 %v1279, %v1322
          %1325 = vst.msk [vmem:[#allocation4] sm:$0x3] %vm527, %v1324
          %v1328 = vcombine.low %v413, %v419
          %v1330 = vunpack.c.l.s4 1966171168
          %v1331 = vunpack.c.0.s8 %v1330
          %v1332 = vlaneseq
          %v1333 = vshrl.u32 %v1332, 7
          %v1334 = vsub.s32 %v1331, %v1333
          %v1335 = vrot.slane %v1328, %v1334
          %v1337 = vunpack.c.l.s4 1966171168
          %v1338 = vunpack.c.0.s8 %v1337
          %v1339 = vlaneseq
          %v1340 = vshrl.u32 %v1339, 7
          %v1341 = vsub.s32 %v1338, %v1340
          %v1342 = vrot.slane %v1335, %v1341
          %1343 = vrot.lane.b32.xlu0 %v1342, 51
          %v1344 = vpop.permute.xlu0 %1343
          %v1345 = vrot.slane %v1344, 7
          %v1346 = vsel %vm549, %v1345, %v1344
          %1348 = vst.msk [vmem:[#allocation3] sm:$0x7] %vm553, %v1346
          %s1349 = sld [smem:[#allocation5 + $0x31]]
          %v1350 = vld [vmem:[#allocation3] sm:$0x3]
          %v1351 = vstv %s1349
          %v1352 = vmul.f32 %v1351, %v1350
          %s1353 = sld [smem:[#allocation5 + $0x38]]
          %v1354 = vld [vmem:[#allocation3] sm:$0x7]
          %v1355 = vstv %s1353
          %v1356 = vmul.f32 %v1355, %v1354
          %1358 = vrot.lane.b32.xlu0 %v1356, 112
          %v1359 = vpop.permute.xlu0 %1358
          %v1360 = vrot.slane %v1359, 1
          %v1361 = vsel %vm567, %v1359, %v1360
          %v1363 = vadd.f32 %v1352, %v1361
          %s1364 = sld [smem:[#allocation5 + $0x3f]]
          %v1365 = vstv %s1364
          %v1366 = vmul.f32 %v1365, %v1354
          %1368 = vrot.lane.b32.xlu0 %v1366, 96
          %v1369 = vpop.permute.xlu0 %1368
          %v1370 = vrot.slane %v1369, 1
          %v1371 = vsel %vm578, %v1369, %v1370
          %v1373 = vadd.f32 %v1363, %v1371
          %s1374 = sld [smem:[#allocation5 + $0x46]]
          %v1375 = vstv %s1374
          %v1376 = vmul.f32 %v1375, %v1354
          %1378 = vrot.lane.b32.xlu0 %v1376, 80
          %v1379 = vpop.permute.xlu0 %1378
          %v1380 = vrot.slane %v1379, 1
          %v1381 = vsel %vm589, %v1379, %v1380
          %v1383 = vadd.f32 %v1373, %v1381
          %s1384 = sld [smem:[#allocation5 + $0x4d]]
          %v1385 = vstv %s1384
          %v1386 = vmul.f32 %v1385, %v1354
          %1388 = vrot.lane.b32.xlu0 %v1386, 64
          %v1389 = vpop.permute.xlu0 %1388
          %v1390 = vrot.slane %v1389, 1
          %v1391 = vsel %vm600, %v1389, %v1390
          %v1393 = vadd.f32 %v1383, %v1391
          %s1394 = sld [smem:[#allocation5 + $0x54]]
          %v1395 = vstv %s1394
          %v1396 = vmul.f32 %v1395, %v1354
          %1398 = vrot.lane.b32.xlu0 %v1396, 48
          %v1399 = vpop.permute.xlu0 %1398
          %v1400 = vrot.slane %v1399, 1
          %v1401 = vsel %vm611, %v1399, %v1400
          %v1403 = vadd.f32 %v1393, %v1401
          %s1404 = sld [smem:[#allocation5 + $0x5b]]
          %v1405 = vstv %s1404
          %v1406 = vmul.f32 %v1405, %v1354
          %1408 = vrot.lane.b32.xlu0 %v1406, 32
          %v1409 = vpop.permute.xlu0 %1408
          %v1410 = vrot.slane %v1409, 1
          %v1411 = vsel %vm622, %v1409, %v1410
          %v1413 = vadd.f32 %v1403, %v1411
          %v1414 = vld [vmem:[#allocation4] sm:$0x3]
          %v1416 = vlaneseq
          %v1417 = vshrl.u32 %v1416, 7
          %v1418 = vsub.s32 0, %v1417
          %v1419 = vrot.slane %v1413, %v1418
          %v1420 = vlaneseq
          %v1421 = vshrl.u32 %v1420, 7
          %v1422 = vsub.s32 1, %v1421
          %v1423 = vrot.slane %v1413, %v1422
          %v1426 = vsel %vm479, %v1419, 0.0
          %v1427 = vsel %vm480, %v1423, 0.0
          %v1430 = vcombine.low %v1426, %v1427
          %v1432 = vunpack.c.l.s4 1966171168
          %v1433 = vunpack.c.0.s8 %v1432
          %v1434 = vlaneseq
          %v1435 = vshrl.u32 %v1434, 7
          %v1436 = vsub.s32 %v1433, %v1435
          %v1437 = vrot.slane %v1430, %v1436
          %v1439 = vunpack.c.l.s4 1966171168
          %v1440 = vunpack.c.0.s8 %v1439
          %v1441 = vlaneseq
          %v1442 = vshrl.u32 %v1441, 7
          %v1443 = vsub.s32 %v1440, %v1442
          %v1444 = vrot.slane %v1437, %v1443
          %v1446 = vadd.f32 %v1414, %v1444
          %1447 = vst.msk [vmem:[#allocation4] sm:$0x3] %vm527, %v1446
          %s1448 = sld [smem:[#allocation5 + $0x32]]
          %v1449 = vld [vmem:[#allocation3] sm:$0x7]
          %v1450 = vstv %s1448
          %v1451 = vmul.f32 %v1450, %v1449
          %s1452 = sld [smem:[#allocation5 + $0x39]]
          %v1453 = vstv %s1452
          %v1454 = vmul.f32 %v1453, %v1449
          %1456 = vrot.lane.b32.xlu0 %v1454, 112
          %v1457 = vpop.permute.xlu0 %1456
          %v1458 = vrot.slane %v1457, 1
          %v1459 = vsel %vm567, %v1457, %v1458
          %v1461 = vadd.f32 %v1451, %v1459
          %s1462 = sld [smem:[#allocation5 + $0x40]]
          %v1463 = vstv %s1462
          %v1464 = vmul.f32 %v1463, %v1449
          %1466 = vrot.lane.b32.xlu0 %v1464, 96
          %v1467 = vpop.permute.xlu0 %1466
          %v1468 = vrot.slane %v1467, 1
          %v1469 = vsel %vm578, %v1467, %v1468
          %v1471 = vadd.f32 %v1461, %v1469
          %s1472 = sld [smem:[#allocation5 + $0x47]]
          %v1473 = vstv %s1472
          %v1474 = vmul.f32 %v1473, %v1449
          %1476 = vrot.lane.b32.xlu0 %v1474, 80
          %v1477 = vpop.permute.xlu0 %1476
          %v1478 = vrot.slane %v1477, 1
          %v1479 = vsel %vm589, %v1477, %v1478
          %v1481 = vadd.f32 %v1471, %v1479
          %s1482 = sld [smem:[#allocation5 + $0x4e]]
          %v1483 = vstv %s1482
          %v1484 = vmul.f32 %v1483, %v1449
          %1486 = vrot.lane.b32.xlu0 %v1484, 64
          %v1487 = vpop.permute.xlu0 %1486
          %v1488 = vrot.slane %v1487, 1
          %v1489 = vsel %vm600, %v1487, %v1488
          %v1491 = vadd.f32 %v1481, %v1489
          %s1492 = sld [smem:[#allocation5 + $0x55]]
          %v1493 = vstv %s1492
          %v1494 = vmul.f32 %v1493, %v1449
          %1496 = vrot.lane.b32.xlu0 %v1494, 48
          %v1497 = vpop.permute.xlu0 %1496
          %v1498 = vrot.slane %v1497, 1
          %v1499 = vsel %vm611, %v1497, %v1498
          %v1501 = vadd.f32 %v1491, %v1499
          %s1502 = sld [smem:[#allocation5 + $0x5c]]
          %v1503 = vstv %s1502
          %v1504 = vmul.f32 %v1503, %v1449
          %1506 = vrot.lane.b32.xlu0 %v1504, 32
          %v1507 = vpop.permute.xlu0 %1506
          %v1508 = vrot.slane %v1507, 1
          %v1509 = vsel %vm622, %v1507, %v1508
          %v1511 = vadd.f32 %v1501, %v1509
          %v1512 = vld [vmem:[#allocation4] sm:$0x3]
          %v1514 = vlaneseq
          %v1515 = vshrl.u32 %v1514, 7
          %v1516 = vsub.s32 0, %v1515
          %v1517 = vrot.slane %v1511, %v1516
          %v1518 = vlaneseq
          %v1519 = vshrl.u32 %v1518, 7
          %v1520 = vsub.s32 1, %v1519
          %v1521 = vrot.slane %v1511, %v1520
          %v1522 = vlaneseq
          %v1523 = vshrl.u32 %v1522, 7
          %v1524 = vsub.s32 2, %v1523
          %v1525 = vrot.slane %v1511, %v1524
          %1526 = vrot.lane.b32.xlu0 %v1517, 127
          %v1527 = vpop.permute.xlu0 %1526
          %1528 = vrot.lane.b32.xlu0 %v1521, 127
          %v1529 = vpop.permute.xlu0 %1528
          %1530 = vrot.lane.b32.xlu0 %v1525, 127
          %v1531 = vpop.permute.xlu0 %1530
          %v1532 = vsel %vm744, %v1527, %v1529
          %v1533 = vsel %vm744, %v1529, %v1531
          %v1536 = vsel %vm485, %v1532, 0.0
          %v1537 = vsel %vm486, %v1533, 0.0
          %v1540 = vcombine.low %v1536, %v1537
          %v1542 = vunpack.c.l.s4 1966171168
          %v1543 = vunpack.c.0.s8 %v1542
          %v1544 = vlaneseq
          %v1545 = vshrl.u32 %v1544, 7
          %v1546 = vsub.s32 %v1543, %v1545
          %v1547 = vrot.slane %v1540, %v1546
          %v1549 = vunpack.c.l.s4 1966171168
          %v1550 = vunpack.c.0.s8 %v1549
          %v1551 = vlaneseq
          %v1552 = vshrl.u32 %v1551, 7
          %v1553 = vsub.s32 %v1550, %v1552
          %v1554 = vrot.slane %v1547, %v1553
          %v1556 = vadd.f32 %v1512, %v1554
          %1557 = vst.msk [vmem:[#allocation4] sm:$0x3] %vm527, %v1556
          %s1558 = sld [smem:[#allocation5 + $0x33]]
          %v1559 = vld [vmem:[#allocation3] sm:$0x7]
          %v1560 = vstv %s1558
          %v1561 = vmul.f32 %v1560, %v1559
          %s1562 = sld [smem:[#allocation5 + $0x3a]]
          %v1563 = vstv %s1562
          %v1564 = vmul.f32 %v1563, %v1559
          %1566 = vrot.lane.b32.xlu0 %v1564, 112
          %v1567 = vpop.permute.xlu0 %1566
          %v1568 = vrot.slane %v1567, 1
          %v1569 = vsel %vm567, %v1567, %v1568
          %v1571 = vadd.f32 %v1561, %v1569
          %s1572 = sld [smem:[#allocation5 + $0x41]]
          %v1573 = vstv %s1572
          %v1574 = vmul.f32 %v1573, %v1559
          %1576 = vrot.lane.b32.xlu0 %v1574, 96
          %v1577 = vpop.permute.xlu0 %1576
          %v1578 = vrot.slane %v1577, 1
          %v1579 = vsel %vm578, %v1577, %v1578
          %v1581 = vadd.f32 %v1571, %v1579
          %s1582 = sld [smem:[#allocation5 + $0x48]]
          %v1583 = vstv %s1582
          %v1584 = vmul.f32 %v1583, %v1559
          %1586 = vrot.lane.b32.xlu0 %v1584, 80
          %v1587 = vpop.permute.xlu0 %1586
          %v1588 = vrot.slane %v1587, 1
          %v1589 = vsel %vm589, %v1587, %v1588
          %v1591 = vadd.f32 %v1581, %v1589
          %s1592 = sld [smem:[#allocation5 + $0x4f]]
          %v1593 = vstv %s1592
          %v1594 = vmul.f32 %v1593, %v1559
          %1596 = vrot.lane.b32.xlu0 %v1594, 64
          %v1597 = vpop.permute.xlu0 %1596
          %v1598 = vrot.slane %v1597, 1
          %v1599 = vsel %vm600, %v1597, %v1598
          %v1601 = vadd.f32 %v1591, %v1599
          %s1602 = sld [smem:[#allocation5 + $0x56]]
          %v1603 = vstv %s1602
          %v1604 = vmul.f32 %v1603, %v1559
          %1606 = vrot.lane.b32.xlu0 %v1604, 48
          %v1607 = vpop.permute.xlu0 %1606
          %v1608 = vrot.slane %v1607, 1
          %v1609 = vsel %vm611, %v1607, %v1608
          %v1611 = vadd.f32 %v1601, %v1609
          %s1612 = sld [smem:[#allocation5 + $0x5d]]
          %v1613 = vstv %s1612
          %v1614 = vmul.f32 %v1613, %v1559
          %1616 = vrot.lane.b32.xlu0 %v1614, 32
          %v1617 = vpop.permute.xlu0 %1616
          %v1618 = vrot.slane %v1617, 1
          %v1619 = vsel %vm622, %v1617, %v1618
          %v1621 = vadd.f32 %v1611, %v1619
          %v1622 = vld [vmem:[#allocation4] sm:$0x3]
          %v1624 = vlaneseq
          %v1625 = vshrl.u32 %v1624, 7
          %v1626 = vsub.s32 0, %v1625
          %v1627 = vrot.slane %v1621, %v1626
          %v1628 = vlaneseq
          %v1629 = vshrl.u32 %v1628, 7
          %v1630 = vsub.s32 1, %v1629
          %v1631 = vrot.slane %v1621, %v1630
          %v1632 = vlaneseq
          %v1633 = vshrl.u32 %v1632, 7
          %v1634 = vsub.s32 2, %v1633
          %v1635 = vrot.slane %v1621, %v1634
          %1636 = vrot.lane.b32.xlu0 %v1627, 126
          %v1637 = vpop.permute.xlu0 %1636
          %1638 = vrot.lane.b32.xlu0 %v1631, 126
          %v1639 = vpop.permute.xlu0 %1638
          %1640 = vrot.lane.b32.xlu0 %v1635, 126
          %v1641 = vpop.permute.xlu0 %1640
          %v1642 = vsel %vm855, %v1637, %v1639
          %v1643 = vsel %vm855, %v1639, %v1641
          %v1646 = vsel %vm491, %v1642, 0.0
          %v1647 = vsel %vm492, %v1643, 0.0
          %v1650 = vcombine.low %v1646, %v1647
          %v1652 = vunpack.c.l.s4 1966171168
          %v1653 = vunpack.c.0.s8 %v1652
          %v1654 = vlaneseq
          %v1655 = vshrl.u32 %v1654, 7
          %v1656 = vsub.s32 %v1653, %v1655
          %v1657 = vrot.slane %v1650, %v1656
          %v1659 = vunpack.c.l.s4 1966171168
          %v1660 = vunpack.c.0.s8 %v1659
          %v1661 = vlaneseq
          %v1662 = vshrl.u32 %v1661, 7
          %v1663 = vsub.s32 %v1660, %v1662
          %v1664 = vrot.slane %v1657, %v1663
          %v1666 = vadd.f32 %v1622, %v1664
          %1667 = vst.msk [vmem:[#allocation4] sm:$0x3] %vm527, %v1666
          %s1668 = sld [smem:[#allocation5 + $0x34]]
          %v1669 = vld [vmem:[#allocation3] sm:$0x7]
          %v1670 = vstv %s1668
          %v1671 = vmul.f32 %v1670, %v1669
          %s1672 = sld [smem:[#allocation5 + $0x3b]]
          %v1673 = vstv %s1672
          %v1674 = vmul.f32 %v1673, %v1669
          %1676 = vrot.lane.b32.xlu0 %v1674, 112
          %v1677 = vpop.permute.xlu0 %1676
          %v1678 = vrot.slane %v1677, 1
          %v1679 = vsel %vm567, %v1677, %v1678
          %v1681 = vadd.f32 %v1671, %v1679
          %s1682 = sld [smem:[#allocation5 + $0x42]]
          %v1683 = vstv %s1682
          %v1684 = vmul.f32 %v1683, %v1669
          %1686 = vrot.lane.b32.xlu0 %v1684, 96
          %v1687 = vpop.permute.xlu0 %1686
          %v1688 = vrot.slane %v1687, 1
          %v1689 = vsel %vm578, %v1687, %v1688
          %v1691 = vadd.f32 %v1681, %v1689
          %s1692 = sld [smem:[#allocation5 + $0x49]]
          %v1693 = vstv %s1692
          %v1694 = vmul.f32 %v1693, %v1669
          %1696 = vrot.lane.b32.xlu0 %v1694, 80
          %v1697 = vpop.permute.xlu0 %1696
          %v1698 = vrot.slane %v1697, 1
          %v1699 = vsel %vm589, %v1697, %v1698
          %v1701 = vadd.f32 %v1691, %v1699
          %s1702 = sld [smem:[#allocation5 + $0x50]]
          %v1703 = vstv %s1702
          %v1704 = vmul.f32 %v1703, %v1669
          %1706 = vrot.lane.b32.xlu0 %v1704, 64
          %v1707 = vpop.permute.xlu0 %1706
          %v1708 = vrot.slane %v1707, 1
          %v1709 = vsel %vm600, %v1707, %v1708
          %v1711 = vadd.f32 %v1701, %v1709
          %s1712 = sld [smem:[#allocation5 + $0x57]]
          %v1713 = vstv %s1712
          %v1714 = vmul.f32 %v1713, %v1669
          %1716 = vrot.lane.b32.xlu0 %v1714, 48
          %v1717 = vpop.permute.xlu0 %1716
          %v1718 = vrot.slane %v1717, 1
          %v1719 = vsel %vm611, %v1717, %v1718
          %v1721 = vadd.f32 %v1711, %v1719
          %s1722 = sld [smem:[#allocation5 + $0x5e]]
          %v1723 = vstv %s1722
          %v1724 = vmul.f32 %v1723, %v1669
          %1726 = vrot.lane.b32.xlu0 %v1724, 32
          %v1727 = vpop.permute.xlu0 %1726
          %v1728 = vrot.slane %v1727, 1
          %v1729 = vsel %vm622, %v1727, %v1728
          %v1731 = vadd.f32 %v1721, %v1729
          %v1732 = vld [vmem:[#allocation4] sm:$0x3]
          %v1734 = vlaneseq
          %v1735 = vshrl.u32 %v1734, 7
          %v1736 = vsub.s32 0, %v1735
          %v1737 = vrot.slane %v1731, %v1736
          %v1738 = vlaneseq
          %v1739 = vshrl.u32 %v1738, 7
          %v1740 = vsub.s32 1, %v1739
          %v1741 = vrot.slane %v1731, %v1740
          %v1742 = vlaneseq
          %v1743 = vshrl.u32 %v1742, 7
          %v1744 = vsub.s32 2, %v1743
          %v1745 = vrot.slane %v1731, %v1744
          %1746 = vrot.lane.b32.xlu0 %v1737, 125
          %v1747 = vpop.permute.xlu0 %1746
          %1748 = vrot.lane.b32.xlu0 %v1741, 125
          %v1749 = vpop.permute.xlu0 %1748
          %1750 = vrot.lane.b32.xlu0 %v1745, 125
          %v1751 = vpop.permute.xlu0 %1750
          %v1752 = vsel %vm966, %v1747, %v1749
          %v1753 = vsel %vm966, %v1749, %v1751
          %v1756 = vsel %vm497, %v1752, 0.0
          %v1757 = vsel %vm498, %v1753, 0.0
          %v1760 = vcombine.low %v1756, %v1757
          %v1762 = vunpack.c.l.s4 1966171168
          %v1763 = vunpack.c.0.s8 %v1762
          %v1764 = vlaneseq
          %v1765 = vshrl.u32 %v1764, 7
          %v1766 = vsub.s32 %v1763, %v1765
          %v1767 = vrot.slane %v1760, %v1766
          %v1769 = vunpack.c.l.s4 1966171168
          %v1770 = vunpack.c.0.s8 %v1769
          %v1771 = vlaneseq
          %v1772 = vshrl.u32 %v1771, 7
          %v1773 = vsub.s32 %v1770, %v1772
          %v1774 = vrot.slane %v1767, %v1773
          %v1776 = vadd.f32 %v1732, %v1774
          %1777 = vst.msk [vmem:[#allocation4] sm:$0x3] %vm527, %v1776
          %s1778 = sld [smem:[#allocation5 + $0x35]]
          %v1779 = vld [vmem:[#allocation3] sm:$0x7]
          %v1780 = vstv %s1778
          %v1781 = vmul.f32 %v1780, %v1779
          %s1782 = sld [smem:[#allocation5 + $0x3c]]
          %v1783 = vstv %s1782
          %v1784 = vmul.f32 %v1783, %v1779
          %1786 = vrot.lane.b32.xlu0 %v1784, 112
          %v1787 = vpop.permute.xlu0 %1786
          %v1788 = vrot.slane %v1787, 1
          %v1789 = vsel %vm567, %v1787, %v1788
          %v1791 = vadd.f32 %v1781, %v1789
          %s1792 = sld [smem:[#allocation5 + $0x43]]
          %v1793 = vstv %s1792
          %v1794 = vmul.f32 %v1793, %v1779
          %1796 = vrot.lane.b32.xlu0 %v1794, 96
          %v1797 = vpop.permute.xlu0 %1796
          %v1798 = vrot.slane %v1797, 1
          %v1799 = vsel %vm578, %v1797, %v1798
          %v1801 = vadd.f32 %v1791, %v1799
          %s1802 = sld [smem:[#allocation5 + $0x4a]]
          %v1803 = vstv %s1802
          %v1804 = vmul.f32 %v1803, %v1779
          %1806 = vrot.lane.b32.xlu0 %v1804, 80
          %v1807 = vpop.permute.xlu0 %1806
          %v1808 = vrot.slane %v1807, 1
          %v1809 = vsel %vm589, %v1807, %v1808
          %v1811 = vadd.f32 %v1801, %v1809
          %s1812 = sld [smem:[#allocation5 + $0x51]]
          %v1813 = vstv %s1812
          %v1814 = vmul.f32 %v1813, %v1779
          %1816 = vrot.lane.b32.xlu0 %v1814, 64
          %v1817 = vpop.permute.xlu0 %1816
          %v1818 = vrot.slane %v1817, 1
          %v1819 = vsel %vm600, %v1817, %v1818
          %v1821 = vadd.f32 %v1811, %v1819
          %s1822 = sld [smem:[#allocation5 + $0x58]]
          %v1823 = vstv %s1822
          %v1824 = vmul.f32 %v1823, %v1779
          %1826 = vrot.lane.b32.xlu0 %v1824, 48
          %v1827 = vpop.permute.xlu0 %1826
          %v1828 = vrot.slane %v1827, 1
          %v1829 = vsel %vm611, %v1827, %v1828
          %v1831 = vadd.f32 %v1821, %v1829
          %s1832 = sld [smem:[#allocation5 + $0x5f]]
          %v1833 = vstv %s1832
          %v1834 = vmul.f32 %v1833, %v1779
          %1836 = vrot.lane.b32.xlu0 %v1834, 32
          %v1837 = vpop.permute.xlu0 %1836
          %v1838 = vrot.slane %v1837, 1
          %v1839 = vsel %vm622, %v1837, %v1838
          %v1841 = vadd.f32 %v1831, %v1839
          %v1842 = vld [vmem:[#allocation4] sm:$0x3]
          %v1844 = vlaneseq
          %v1845 = vshrl.u32 %v1844, 7
          %v1846 = vsub.s32 0, %v1845
          %v1847 = vrot.slane %v1841, %v1846
          %v1848 = vlaneseq
          %v1849 = vshrl.u32 %v1848, 7
          %v1850 = vsub.s32 1, %v1849
          %v1851 = vrot.slane %v1841, %v1850
          %v1852 = vlaneseq
          %v1853 = vshrl.u32 %v1852, 7
          %v1854 = vsub.s32 2, %v1853
          %v1855 = vrot.slane %v1841, %v1854
          %1856 = vrot.lane.b32.xlu0 %v1847, 124
          %v1857 = vpop.permute.xlu0 %1856
          %1858 = vrot.lane.b32.xlu0 %v1851, 124
          %v1859 = vpop.permute.xlu0 %1858
          %1860 = vrot.lane.b32.xlu0 %v1855, 124
          %v1861 = vpop.permute.xlu0 %1860
          %v1862 = vsel %vm1077, %v1857, %v1859
          %v1863 = vsel %vm1077, %v1859, %v1861
          %v1866 = vsel %vm503, %v1862, 0.0
          %v1867 = vsel %vm504, %v1863, 0.0
          %v1870 = vcombine.low %v1866, %v1867
          %v1872 = vunpack.c.l.s4 1966171168
          %v1873 = vunpack.c.0.s8 %v1872
          %v1874 = vlaneseq
          %v1875 = vshrl.u32 %v1874, 7
          %v1876 = vsub.s32 %v1873, %v1875
          %v1877 = vrot.slane %v1870, %v1876
          %v1879 = vunpack.c.l.s4 1966171168
          %v1880 = vunpack.c.0.s8 %v1879
          %v1881 = vlaneseq
          %v1882 = vshrl.u32 %v1881, 7
          %v1883 = vsub.s32 %v1880, %v1882
          %v1884 = vrot.slane %v1877, %v1883
          %v1886 = vadd.f32 %v1842, %v1884
          %1887 = vst.msk [vmem:[#allocation4] sm:$0x3] %vm527, %v1886
          %s1888 = sld [smem:[#allocation5 + $0x36]]
          %v1889 = vld [vmem:[#allocation3] sm:$0x7]
          %v1890 = vstv %s1888
          %v1891 = vmul.f32 %v1890, %v1889
          %s1892 = sld [smem:[#allocation5 + $0x3d]]
          %v1893 = vstv %s1892
          %v1894 = vmul.f32 %v1893, %v1889
          %1896 = vrot.lane.b32.xlu0 %v1894, 112
          %v1897 = vpop.permute.xlu0 %1896
          %v1898 = vrot.slane %v1897, 1
          %v1899 = vsel %vm567, %v1897, %v1898
          %v1901 = vadd.f32 %v1891, %v1899
          %s1902 = sld [smem:[#allocation5 + $0x44]]
          %v1903 = vstv %s1902
          %v1904 = vmul.f32 %v1903, %v1889
          %1906 = vrot.lane.b32.xlu0 %v1904, 96
          %v1907 = vpop.permute.xlu0 %1906
          %v1908 = vrot.slane %v1907, 1
          %v1909 = vsel %vm578, %v1907, %v1908
          %v1911 = vadd.f32 %v1901, %v1909
          %s1912 = sld [smem:[#allocation5 + $0x4b]]
          %v1913 = vstv %s1912
          %v1914 = vmul.f32 %v1913, %v1889
          %1916 = vrot.lane.b32.xlu0 %v1914, 80
          %v1917 = vpop.permute.xlu0 %1916
          %v1918 = vrot.slane %v1917, 1
          %v1919 = vsel %vm589, %v1917, %v1918
          %v1921 = vadd.f32 %v1911, %v1919
          %s1922 = sld [smem:[#allocation5 + $0x52]]
          %v1923 = vstv %s1922
          %v1924 = vmul.f32 %v1923, %v1889
          %1926 = vrot.lane.b32.xlu0 %v1924, 64
          %v1927 = vpop.permute.xlu0 %1926
          %v1928 = vrot.slane %v1927, 1
          %v1929 = vsel %vm600, %v1927, %v1928
          %v1931 = vadd.f32 %v1921, %v1929
          %s1932 = sld [smem:[#allocation5 + $0x59]]
          %v1933 = vstv %s1932
          %v1934 = vmul.f32 %v1933, %v1889
          %1936 = vrot.lane.b32.xlu0 %v1934, 48
          %v1937 = vpop.permute.xlu0 %1936
          %v1938 = vrot.slane %v1937, 1
          %v1939 = vsel %vm611, %v1937, %v1938
          %v1941 = vadd.f32 %v1931, %v1939
          %s1942 = sld [smem:[#allocation5 + $0x60]]
          %v1943 = vstv %s1942
          %v1944 = vmul.f32 %v1943, %v1889
          %1946 = vrot.lane.b32.xlu0 %v1944, 32
          %v1947 = vpop.permute.xlu0 %1946
          %v1948 = vrot.slane %v1947, 1
          %v1949 = vsel %vm622, %v1947, %v1948
          %v1951 = vadd.f32 %v1941, %v1949
          %v1952 = vld [vmem:[#allocation4] sm:$0x3]
          %v1954 = vlaneseq
          %v1955 = vshrl.u32 %v1954, 7
          %v1956 = vsub.s32 0, %v1955
          %v1957 = vrot.slane %v1951, %v1956
          %v1958 = vlaneseq
          %v1959 = vshrl.u32 %v1958, 7
          %v1960 = vsub.s32 1, %v1959
          %v1961 = vrot.slane %v1951, %v1960
          %v1962 = vlaneseq
          %v1963 = vshrl.u32 %v1962, 7
          %v1964 = vsub.s32 2, %v1963
          %v1965 = vrot.slane %v1951, %v1964
          %1966 = vrot.lane.b32.xlu0 %v1957, 123
          %v1967 = vpop.permute.xlu0 %1966
          %1968 = vrot.lane.b32.xlu0 %v1961, 123
          %v1969 = vpop.permute.xlu0 %1968
          %1970 = vrot.lane.b32.xlu0 %v1965, 123
          %v1971 = vpop.permute.xlu0 %1970
          %v1972 = vsel %vm1188, %v1967, %v1969
          %v1973 = vsel %vm1188, %v1969, %v1971
          %v1976 = vsel %vm509, %v1972, 0.0
          %v1977 = vsel %vm510, %v1973, 0.0
          %v1980 = vcombine.low %v1976, %v1977
          %v1982 = vunpack.c.l.s4 1966171168
          %v1983 = vunpack.c.0.s8 %v1982
          %v1984 = vlaneseq
          %v1985 = vshrl.u32 %v1984, 7
          %v1986 = vsub.s32 %v1983, %v1985
          %v1987 = vrot.slane %v1980, %v1986
          %v1989 = vunpack.c.l.s4 1966171168
          %v1990 = vunpack.c.0.s8 %v1989
          %v1991 = vlaneseq
          %v1992 = vshrl.u32 %v1991, 7
          %v1993 = vsub.s32 %v1990, %v1992
          %v1994 = vrot.slane %v1987, %v1993
          %v1996 = vadd.f32 %v1952, %v1994
          %1997 = vst.msk [vmem:[#allocation4] sm:$0x3] %vm527, %v1996
          %s1998 = sld [smem:[#allocation5 + $0x37]]
          %v1999 = vld [vmem:[#allocation3] sm:$0x7]
          %v2000 = vstv %s1998
          %v2001 = vmul.f32 %v2000, %v1999
          %s2002 = sld [smem:[#allocation5 + $0x3e]]
          %v2003 = vstv %s2002
          %v2004 = vmul.f32 %v2003, %v1999
          %2006 = vrot.lane.b32.xlu0 %v2004, 112
          %v2007 = vpop.permute.xlu0 %2006
          %v2008 = vrot.slane %v2007, 1
          %v2009 = vsel %vm567, %v2007, %v2008
          %v2011 = vadd.f32 %v2001, %v2009
          %s2012 = sld [smem:[#allocation5 + $0x45]]
          %v2013 = vstv %s2012
          %v2014 = vmul.f32 %v2013, %v1999
          %2016 = vrot.lane.b32.xlu0 %v2014, 96
          %v2017 = vpop.permute.xlu0 %2016
          %v2018 = vrot.slane %v2017, 1
          %v2019 = vsel %vm578, %v2017, %v2018
          %v2021 = vadd.f32 %v2011, %v2019
          %s2022 = sld [smem:[#allocation5 + $0x4c]]
          %v2023 = vstv %s2022
          %v2024 = vmul.f32 %v2023, %v1999
          %2026 = vrot.lane.b32.xlu0 %v2024, 80
          %v2027 = vpop.permute.xlu0 %2026
          %v2028 = vrot.slane %v2027, 1
          %v2029 = vsel %vm589, %v2027, %v2028
          %v2031 = vadd.f32 %v2021, %v2029
          %s2032 = sld [smem:[#allocation5 + $0x53]]
          %v2033 = vstv %s2032
          %v2034 = vmul.f32 %v2033, %v1999
          %2036 = vrot.lane.b32.xlu0 %v2034, 64
          %v2037 = vpop.permute.xlu0 %2036
          %v2038 = vrot.slane %v2037, 1
          %v2039 = vsel %vm600, %v2037, %v2038
          %v2041 = vadd.f32 %v2031, %v2039
          %s2042 = sld [smem:[#allocation5 + $0x5a]]
          %v2043 = vstv %s2042
          %v2044 = vmul.f32 %v2043, %v1999
          %2046 = vrot.lane.b32.xlu0 %v2044, 48
          %v2047 = vpop.permute.xlu0 %2046
          %v2048 = vrot.slane %v2047, 1
          %v2049 = vsel %vm611, %v2047, %v2048
          %v2051 = vadd.f32 %v2041, %v2049
          %s2052 = sld [smem:[#allocation5 + $0x61]]
          %v2053 = vstv %s2052
          %v2054 = vmul.f32 %v2053, %v1999
          %2056 = vrot.lane.b32.xlu0 %v2054, 32
          %v2057 = vpop.permute.xlu0 %2056
          %v2058 = vrot.slane %v2057, 1
          %v2059 = vsel %vm622, %v2057, %v2058
          %v2061 = vadd.f32 %v2051, %v2059
          %v2062 = vld [vmem:[#allocation4] sm:$0x3]
          %v2064 = vlaneseq
          %v2065 = vshrl.u32 %v2064, 7
          %v2066 = vsub.s32 0, %v2065
          %v2067 = vrot.slane %v2061, %v2066
          %v2068 = vlaneseq
          %v2069 = vshrl.u32 %v2068, 7
          %v2070 = vsub.s32 1, %v2069
          %v2071 = vrot.slane %v2061, %v2070
          %v2072 = vlaneseq
          %v2073 = vshrl.u32 %v2072, 7
          %v2074 = vsub.s32 2, %v2073
          %v2075 = vrot.slane %v2061, %v2074
          %2076 = vrot.lane.b32.xlu0 %v2067, 122
          %v2077 = vpop.permute.xlu0 %2076
          %2078 = vrot.lane.b32.xlu0 %v2071, 122
          %v2079 = vpop.permute.xlu0 %2078
          %2080 = vrot.lane.b32.xlu0 %v2075, 122
          %v2081 = vpop.permute.xlu0 %2080
          %v2082 = vsel %vm1299, %v2077, %v2079
          %v2083 = vsel %vm1299, %v2079, %v2081
          %v2086 = vsel %vm515, %v2082, 0.0
          %v2087 = vsel %vm516, %v2083, 0.0
          %v2090 = vcombine.low %v2086, %v2087
          %v2092 = vunpack.c.l.s4 1966171168
          %v2093 = vunpack.c.0.s8 %v2092
          %v2094 = vlaneseq
          %v2095 = vshrl.u32 %v2094, 7
          %v2096 = vsub.s32 %v2093, %v2095
          %v2097 = vrot.slane %v2090, %v2096
          %v2099 = vunpack.c.l.s4 1966171168
          %v2100 = vunpack.c.0.s8 %v2099
          %v2101 = vlaneseq
          %v2102 = vshrl.u32 %v2101, 7
          %v2103 = vsub.s32 %v2100, %v2102
          %v2104 = vrot.slane %v2097, %v2103
          %v2106 = vadd.f32 %v2062, %v2104
          %2107 = vst.msk [vmem:[#allocation4] sm:$0x3] %vm527, %v2106
          %v2110 = vcombine.low %v427, %v433
          %v2112 = vunpack.c.l.s4 1966171168
          %v2113 = vunpack.c.0.s8 %v2112
          %v2114 = vlaneseq
          %v2115 = vshrl.u32 %v2114, 7
          %v2116 = vsub.s32 %v2113, %v2115
          %v2117 = vrot.slane %v2110, %v2116
          %v2119 = vunpack.c.l.s4 1966171168
          %v2120 = vunpack.c.0.s8 %v2119
          %v2121 = vlaneseq
          %v2122 = vshrl.u32 %v2121, 7
          %v2123 = vsub.s32 %v2120, %v2122
          %v2124 = vrot.slane %v2117, %v2123
          %2125 = vrot.lane.b32.xlu0 %v2124, 51
          %v2126 = vpop.permute.xlu0 %2125
          %v2127 = vrot.slane %v2126, 7
          %v2128 = vsel %vm549, %v2127, %v2126
          %2130 = vst.msk [vmem:[#allocation3] sm:$0x7] %vm553, %v2128
          %s2131 = sld [smem:[#allocation5 + $0x62]]
          %v2132 = vld [vmem:[#allocation3] sm:$0x3]
          %v2133 = vstv %s2131
          %v2134 = vmul.f32 %v2133, %v2132
          %s2135 = sld [smem:[#allocation5 + $0x69]]
          %v2136 = vld [vmem:[#allocation3] sm:$0x7]
          %v2137 = vstv %s2135
          %v2138 = vmul.f32 %v2137, %v2136
          %2140 = vrot.lane.b32.xlu0 %v2138, 112
          %v2141 = vpop.permute.xlu0 %2140
          %v2142 = vrot.slane %v2141, 1
          %v2143 = vsel %vm567, %v2141, %v2142
          %v2145 = vadd.f32 %v2134, %v2143
          %s2146 = sld [smem:[#allocation5 + $0x70]]
          %v2147 = vstv %s2146
          %v2148 = vmul.f32 %v2147, %v2136
          %2150 = vrot.lane.b32.xlu0 %v2148, 96
          %v2151 = vpop.permute.xlu0 %2150
          %v2152 = vrot.slane %v2151, 1
          %v2153 = vsel %vm578, %v2151, %v2152
          %v2155 = vadd.f32 %v2145, %v2153
          %s2156 = sld [smem:[#allocation5 + $0x77]]
          %v2157 = vstv %s2156
          %v2158 = vmul.f32 %v2157, %v2136
          %2160 = vrot.lane.b32.xlu0 %v2158, 80
          %v2161 = vpop.permute.xlu0 %2160
          %v2162 = vrot.slane %v2161, 1
          %v2163 = vsel %vm589, %v2161, %v2162
          %v2165 = vadd.f32 %v2155, %v2163
          %s2166 = sld [smem:[#allocation5 + $0x7e]]
          %v2167 = vstv %s2166
          %v2168 = vmul.f32 %v2167, %v2136
          %2170 = vrot.lane.b32.xlu0 %v2168, 64
          %v2171 = vpop.permute.xlu0 %2170
          %v2172 = vrot.slane %v2171, 1
          %v2173 = vsel %vm600, %v2171, %v2172
          %v2175 = vadd.f32 %v2165, %v2173
          %s2176 = sld [smem:[#allocation5 + $0x85]]
          %v2177 = vstv %s2176
          %v2178 = vmul.f32 %v2177, %v2136
          %2180 = vrot.lane.b32.xlu0 %v2178, 48
          %v2181 = vpop.permute.xlu0 %2180
          %v2182 = vrot.slane %v2181, 1
          %v2183 = vsel %vm611, %v2181, %v2182
          %v2185 = vadd.f32 %v2175, %v2183
          %s2186 = sld [smem:[#allocation5 + $0x8c]]
          %v2187 = vstv %s2186
          %v2188 = vmul.f32 %v2187, %v2136
          %2190 = vrot.lane.b32.xlu0 %v2188, 32
          %v2191 = vpop.permute.xlu0 %2190
          %v2192 = vrot.slane %v2191, 1
          %v2193 = vsel %vm622, %v2191, %v2192
          %v2195 = vadd.f32 %v2185, %v2193
          %v2196 = vld [vmem:[#allocation4] sm:$0x3]
          %v2198 = vlaneseq
          %v2199 = vshrl.u32 %v2198, 7
          %v2200 = vsub.s32 0, %v2199
          %v2201 = vrot.slane %v2195, %v2200
          %v2202 = vlaneseq
          %v2203 = vshrl.u32 %v2202, 7
          %v2204 = vsub.s32 1, %v2203
          %v2205 = vrot.slane %v2195, %v2204
          %v2208 = vsel %vm479, %v2201, 0.0
          %v2209 = vsel %vm480, %v2205, 0.0
          %v2212 = vcombine.low %v2208, %v2209
          %v2214 = vunpack.c.l.s4 1966171168
          %v2215 = vunpack.c.0.s8 %v2214
          %v2216 = vlaneseq
          %v2217 = vshrl.u32 %v2216, 7
          %v2218 = vsub.s32 %v2215, %v2217
          %v2219 = vrot.slane %v2212, %v2218
          %v2221 = vunpack.c.l.s4 1966171168
          %v2222 = vunpack.c.0.s8 %v2221
          %v2223 = vlaneseq
          %v2224 = vshrl.u32 %v2223, 7
          %v2225 = vsub.s32 %v2222, %v2224
          %v2226 = vrot.slane %v2219, %v2225
          %v2228 = vadd.f32 %v2196, %v2226
          %2229 = vst.msk [vmem:[#allocation4] sm:$0x3] %vm527, %v2228
          %s2230 = sld [smem:[#allocation5 + $0x63]]
          %v2231 = vld [vmem:[#allocation3] sm:$0x7]
          %v2232 = vstv %s2230
          %v2233 = vmul.f32 %v2232, %v2231
          %s2234 = sld [smem:[#allocation5 + $0x6a]]
          %v2235 = vstv %s2234
          %v2236 = vmul.f32 %v2235, %v2231
          %2238 = vrot.lane.b32.xlu0 %v2236, 112
          %v2239 = vpop.permute.xlu0 %2238
          %v2240 = vrot.slane %v2239, 1
          %v2241 = vsel %vm567, %v2239, %v2240
          %v2243 = vadd.f32 %v2233, %v2241
          %s2244 = sld [smem:[#allocation5 + $0x71]]
          %v2245 = vstv %s2244
          %v2246 = vmul.f32 %v2245, %v2231
          %2248 = vrot.lane.b32.xlu0 %v2246, 96
          %v2249 = vpop.permute.xlu0 %2248
          %v2250 = vrot.slane %v2249, 1
          %v2251 = vsel %vm578, %v2249, %v2250
          %v2253 = vadd.f32 %v2243, %v2251
          %s2254 = sld [smem:[#allocation5 + $0x78]]
          %v2255 = vstv %s2254
          %v2256 = vmul.f32 %v2255, %v2231
          %2258 = vrot.lane.b32.xlu0 %v2256, 80
          %v2259 = vpop.permute.xlu0 %2258
          %v2260 = vrot.slane %v2259, 1
          %v2261 = vsel %vm589, %v2259, %v2260
          %v2263 = vadd.f32 %v2253, %v2261
          %s2264 = sld [smem:[#allocation5 + $0x7f]]
          %v2265 = vstv %s2264
          %v2266 = vmul.f32 %v2265, %v2231
          %2268 = vrot.lane.b32.xlu0 %v2266, 64
          %v2269 = vpop.permute.xlu0 %2268
          %v2270 = vrot.slane %v2269, 1
          %v2271 = vsel %vm600, %v2269, %v2270
          %v2273 = vadd.f32 %v2263, %v2271
          %s2274 = sld [smem:[#allocation5 + $0x86]]
          %v2275 = vstv %s2274
          %v2276 = vmul.f32 %v2275, %v2231
          %2278 = vrot.lane.b32.xlu0 %v2276, 48
          %v2279 = vpop.permute.xlu0 %2278
          %v2280 = vrot.slane %v2279, 1
          %v2281 = vsel %vm611, %v2279, %v2280
          %v2283 = vadd.f32 %v2273, %v2281
          %s2284 = sld [smem:[#allocation5 + $0x8d]]
          %v2285 = vstv %s2284
          %v2286 = vmul.f32 %v2285, %v2231
          %2288 = vrot.lane.b32.xlu0 %v2286, 32
          %v2289 = vpop.permute.xlu0 %2288
          %v2290 = vrot.slane %v2289, 1
          %v2291 = vsel %vm622, %v2289, %v2290
          %v2293 = vadd.f32 %v2283, %v2291
          %v2294 = vld [vmem:[#allocation4] sm:$0x3]
          %v2296 = vlaneseq
          %v2297 = vshrl.u32 %v2296, 7
          %v2298 = vsub.s32 0, %v2297
          %v2299 = vrot.slane %v2293, %v2298
          %v2300 = vlaneseq
          %v2301 = vshrl.u32 %v2300, 7
          %v2302 = vsub.s32 1, %v2301
          %v2303 = vrot.slane %v2293, %v2302
          %v2304 = vlaneseq
          %v2305 = vshrl.u32 %v2304, 7
          %v2306 = vsub.s32 2, %v2305
          %v2307 = vrot.slane %v2293, %v2306
          %2308 = vrot.lane.b32.xlu0 %v2299, 127
          %v2309 = vpop.permute.xlu0 %2308
          %2310 = vrot.lane.b32.xlu0 %v2303, 127
          %v2311 = vpop.permute.xlu0 %2310
          %2312 = vrot.lane.b32.xlu0 %v2307, 127
          %v2313 = vpop.permute.xlu0 %2312
          %v2314 = vsel %vm744, %v2309, %v2311
          %v2315 = vsel %vm744, %v2311, %v2313
          %v2318 = vsel %vm485, %v2314, 0.0
          %v2319 = vsel %vm486, %v2315, 0.0
          %v2322 = vcombine.low %v2318, %v2319
          %v2324 = vunpack.c.l.s4 1966171168
          %v2325 = vunpack.c.0.s8 %v2324
          %v2326 = vlaneseq
          %v2327 = vshrl.u32 %v2326, 7
          %v2328 = vsub.s32 %v2325, %v2327
          %v2329 = vrot.slane %v2322, %v2328
          %v2331 = vunpack.c.l.s4 1966171168
          %v2332 = vunpack.c.0.s8 %v2331
          %v2333 = vlaneseq
          %v2334 = vshrl.u32 %v2333, 7
          %v2335 = vsub.s32 %v2332, %v2334
          %v2336 = vrot.slane %v2329, %v2335
          %v2338 = vadd.f32 %v2294, %v2336
          %2339 = vst.msk [vmem:[#allocation4] sm:$0x3] %vm527, %v2338
          %s2340 = sld [smem:[#allocation5 + $0x64]]
          %v2341 = vld [vmem:[#allocation3] sm:$0x7]
          %v2342 = vstv %s2340
          %v2343 = vmul.f32 %v2342, %v2341
          %s2344 = sld [smem:[#allocation5 + $0x6b]]
          %v2345 = vstv %s2344
          %v2346 = vmul.f32 %v2345, %v2341
          %2348 = vrot.lane.b32.xlu0 %v2346, 112
          %v2349 = vpop.permute.xlu0 %2348
          %v2350 = vrot.slane %v2349, 1
          %v2351 = vsel %vm567, %v2349, %v2350
          %v2353 = vadd.f32 %v2343, %v2351
          %s2354 = sld [smem:[#allocation5 + $0x72]]
          %v2355 = vstv %s2354
          %v2356 = vmul.f32 %v2355, %v2341
          %2358 = vrot.lane.b32.xlu0 %v2356, 96
          %v2359 = vpop.permute.xlu0 %2358
          %v2360 = vrot.slane %v2359, 1
          %v2361 = vsel %vm578, %v2359, %v2360
          %v2363 = vadd.f32 %v2353, %v2361
          %s2364 = sld [smem:[#allocation5 + $0x79]]
          %v2365 = vstv %s2364
          %v2366 = vmul.f32 %v2365, %v2341
          %2368 = vrot.lane.b32.xlu0 %v2366, 80
          %v2369 = vpop.permute.xlu0 %2368
          %v2370 = vrot.slane %v2369, 1
          %v2371 = vsel %vm589, %v2369, %v2370
          %v2373 = vadd.f32 %v2363, %v2371
          %s2374 = sld [smem:[#allocation5 + $0x80]]
          %v2375 = vstv %s2374
          %v2376 = vmul.f32 %v2375, %v2341
          %2378 = vrot.lane.b32.xlu0 %v2376, 64
          %v2379 = vpop.permute.xlu0 %2378
          %v2380 = vrot.slane %v2379, 1
          %v2381 = vsel %vm600, %v2379, %v2380
          %v2383 = vadd.f32 %v2373, %v2381
          %s2384 = sld [smem:[#allocation5 + $0x87]]
          %v2385 = vstv %s2384
          %v2386 = vmul.f32 %v2385, %v2341
          %2388 = vrot.lane.b32.xlu0 %v2386, 48
          %v2389 = vpop.permute.xlu0 %2388
          %v2390 = vrot.slane %v2389, 1
          %v2391 = vsel %vm611, %v2389, %v2390
          %v2393 = vadd.f32 %v2383, %v2391
          %s2394 = sld [smem:[#allocation5 + $0x8e]]
          %v2395 = vstv %s2394
          %v2396 = vmul.f32 %v2395, %v2341
          %2398 = vrot.lane.b32.xlu0 %v2396, 32
          %v2399 = vpop.permute.xlu0 %2398
          %v2400 = vrot.slane %v2399, 1
          %v2401 = vsel %vm622, %v2399, %v2400
          %v2403 = vadd.f32 %v2393, %v2401
          %v2404 = vld [vmem:[#allocation4] sm:$0x3]
          %v2406 = vlaneseq
          %v2407 = vshrl.u32 %v2406, 7
          %v2408 = vsub.s32 0, %v2407
          %v2409 = vrot.slane %v2403, %v2408
          %v2410 = vlaneseq
          %v2411 = vshrl.u32 %v2410, 7
          %v2412 = vsub.s32 1, %v2411
          %v2413 = vrot.slane %v2403, %v2412
          %v2414 = vlaneseq
          %v2415 = vshrl.u32 %v2414, 7
          %v2416 = vsub.s32 2, %v2415
          %v2417 = vrot.slane %v2403, %v2416
          %2418 = vrot.lane.b32.xlu0 %v2409, 126
          %v2419 = vpop.permute.xlu0 %2418
          %2420 = vrot.lane.b32.xlu0 %v2413, 126
          %v2421 = vpop.permute.xlu0 %2420
          %2422 = vrot.lane.b32.xlu0 %v2417, 126
          %v2423 = vpop.permute.xlu0 %2422
          %v2424 = vsel %vm855, %v2419, %v2421
          %v2425 = vsel %vm855, %v2421, %v2423
          %v2428 = vsel %vm491, %v2424, 0.0
          %v2429 = vsel %vm492, %v2425, 0.0
          %v2432 = vcombine.low %v2428, %v2429
          %v2434 = vunpack.c.l.s4 1966171168
          %v2435 = vunpack.c.0.s8 %v2434
          %v2436 = vlaneseq
          %v2437 = vshrl.u32 %v2436, 7
          %v2438 = vsub.s32 %v2435, %v2437
          %v2439 = vrot.slane %v2432, %v2438
          %v2441 = vunpack.c.l.s4 1966171168
          %v2442 = vunpack.c.0.s8 %v2441
          %v2443 = vlaneseq
          %v2444 = vshrl.u32 %v2443, 7
          %v2445 = vsub.s32 %v2442, %v2444
          %v2446 = vrot.slane %v2439, %v2445
          %v2448 = vadd.f32 %v2404, %v2446
          %2449 = vst.msk [vmem:[#allocation4] sm:$0x3] %vm527, %v2448
          %s2450 = sld [smem:[#allocation5 + $0x65]]
          %v2451 = vld [vmem:[#allocation3] sm:$0x7]
          %v2452 = vstv %s2450
          %v2453 = vmul.f32 %v2452, %v2451
          %s2454 = sld [smem:[#allocation5 + $0x6c]]
          %v2455 = vstv %s2454
          %v2456 = vmul.f32 %v2455, %v2451
          %2458 = vrot.lane.b32.xlu0 %v2456, 112
          %v2459 = vpop.permute.xlu0 %2458
          %v2460 = vrot.slane %v2459, 1
          %v2461 = vsel %vm567, %v2459, %v2460
          %v2463 = vadd.f32 %v2453, %v2461
          %s2464 = sld [smem:[#allocation5 + $0x73]]
          %v2465 = vstv %s2464
          %v2466 = vmul.f32 %v2465, %v2451
          %2468 = vrot.lane.b32.xlu0 %v2466, 96
          %v2469 = vpop.permute.xlu0 %2468
          %v2470 = vrot.slane %v2469, 1
          %v2471 = vsel %vm578, %v2469, %v2470
          %v2473 = vadd.f32 %v2463, %v2471
          %s2474 = sld [smem:[#allocation5 + $0x7a]]
          %v2475 = vstv %s2474
          %v2476 = vmul.f32 %v2475, %v2451
          %2478 = vrot.lane.b32.xlu0 %v2476, 80
          %v2479 = vpop.permute.xlu0 %2478
          %v2480 = vrot.slane %v2479, 1
          %v2481 = vsel %vm589, %v2479, %v2480
          %v2483 = vadd.f32 %v2473, %v2481
          %s2484 = sld [smem:[#allocation5 + $0x81]]
          %v2485 = vstv %s2484
          %v2486 = vmul.f32 %v2485, %v2451
          %2488 = vrot.lane.b32.xlu0 %v2486, 64
          %v2489 = vpop.permute.xlu0 %2488
          %v2490 = vrot.slane %v2489, 1
          %v2491 = vsel %vm600, %v2489, %v2490
          %v2493 = vadd.f32 %v2483, %v2491
          %s2494 = sld [smem:[#allocation5 + $0x88]]
          %v2495 = vstv %s2494
          %v2496 = vmul.f32 %v2495, %v2451
          %2498 = vrot.lane.b32.xlu0 %v2496, 48
          %v2499 = vpop.permute.xlu0 %2498
          %v2500 = vrot.slane %v2499, 1
          %v2501 = vsel %vm611, %v2499, %v2500
          %v2503 = vadd.f32 %v2493, %v2501
          %s2504 = sld [smem:[#allocation5 + $0x8f]]
          %v2505 = vstv %s2504
          %v2506 = vmul.f32 %v2505, %v2451
          %2508 = vrot.lane.b32.xlu0 %v2506, 32
          %v2509 = vpop.permute.xlu0 %2508
          %v2510 = vrot.slane %v2509, 1
          %v2511 = vsel %vm622, %v2509, %v2510
          %v2513 = vadd.f32 %v2503, %v2511
          %v2514 = vld [vmem:[#allocation4] sm:$0x3]
          %v2516 = vlaneseq
          %v2517 = vshrl.u32 %v2516, 7
          %v2518 = vsub.s32 0, %v2517
          %v2519 = vrot.slane %v2513, %v2518
          %v2520 = vlaneseq
          %v2521 = vshrl.u32 %v2520, 7
          %v2522 = vsub.s32 1, %v2521
          %v2523 = vrot.slane %v2513, %v2522
          %v2524 = vlaneseq
          %v2525 = vshrl.u32 %v2524, 7
          %v2526 = vsub.s32 2, %v2525
          %v2527 = vrot.slane %v2513, %v2526
          %2528 = vrot.lane.b32.xlu0 %v2519, 125
          %v2529 = vpop.permute.xlu0 %2528
          %2530 = vrot.lane.b32.xlu0 %v2523, 125
          %v2531 = vpop.permute.xlu0 %2530
          %2532 = vrot.lane.b32.xlu0 %v2527, 125
          %v2533 = vpop.permute.xlu0 %2532
          %v2534 = vsel %vm966, %v2529, %v2531
          %v2535 = vsel %vm966, %v2531, %v2533
          %v2538 = vsel %vm497, %v2534, 0.0
          %v2539 = vsel %vm498, %v2535, 0.0
          %v2542 = vcombine.low %v2538, %v2539
          %v2544 = vunpack.c.l.s4 1966171168
          %v2545 = vunpack.c.0.s8 %v2544
          %v2546 = vlaneseq
          %v2547 = vshrl.u32 %v2546, 7
          %v2548 = vsub.s32 %v2545, %v2547
          %v2549 = vrot.slane %v2542, %v2548
          %v2551 = vunpack.c.l.s4 1966171168
          %v2552 = vunpack.c.0.s8 %v2551
          %v2553 = vlaneseq
          %v2554 = vshrl.u32 %v2553, 7
          %v2555 = vsub.s32 %v2552, %v2554
          %v2556 = vrot.slane %v2549, %v2555
          %v2558 = vadd.f32 %v2514, %v2556
          %2559 = vst.msk [vmem:[#allocation4] sm:$0x3] %vm527, %v2558
          %s2560 = sld [smem:[#allocation5 + $0x66]]
          %v2561 = vld [vmem:[#allocation3] sm:$0x7]
          %v2562 = vstv %s2560
          %v2563 = vmul.f32 %v2562, %v2561
          %s2564 = sld [smem:[#allocation5 + $0x6d]]
          %v2565 = vstv %s2564
          %v2566 = vmul.f32 %v2565, %v2561
          %2568 = vrot.lane.b32.xlu0 %v2566, 112
          %v2569 = vpop.permute.xlu0 %2568
          %v2570 = vrot.slane %v2569, 1
          %v2571 = vsel %vm567, %v2569, %v2570
          %v2573 = vadd.f32 %v2563, %v2571
          %s2574 = sld [smem:[#allocation5 + $0x74]]
          %v2575 = vstv %s2574
          %v2576 = vmul.f32 %v2575, %v2561
          %2578 = vrot.lane.b32.xlu0 %v2576, 96
          %v2579 = vpop.permute.xlu0 %2578
          %v2580 = vrot.slane %v2579, 1
          %v2581 = vsel %vm578, %v2579, %v2580
          %v2583 = vadd.f32 %v2573, %v2581
          %s2584 = sld [smem:[#allocation5 + $0x7b]]
          %v2585 = vstv %s2584
          %v2586 = vmul.f32 %v2585, %v2561
          %2588 = vrot.lane.b32.xlu0 %v2586, 80
          %v2589 = vpop.permute.xlu0 %2588
          %v2590 = vrot.slane %v2589, 1
          %v2591 = vsel %vm589, %v2589, %v2590
          %v2593 = vadd.f32 %v2583, %v2591
          %s2594 = sld [smem:[#allocation5 + $0x82]]
          %v2595 = vstv %s2594
          %v2596 = vmul.f32 %v2595, %v2561
          %2598 = vrot.lane.b32.xlu0 %v2596, 64
          %v2599 = vpop.permute.xlu0 %2598
          %v2600 = vrot.slane %v2599, 1
          %v2601 = vsel %vm600, %v2599, %v2600
          %v2603 = vadd.f32 %v2593, %v2601
          %s2604 = sld [smem:[#allocation5 + $0x89]]
          %v2605 = vstv %s2604
          %v2606 = vmul.f32 %v2605, %v2561
          %2608 = vrot.lane.b32.xlu0 %v2606, 48
          %v2609 = vpop.permute.xlu0 %2608
          %v2610 = vrot.slane %v2609, 1
          %v2611 = vsel %vm611, %v2609, %v2610
          %v2613 = vadd.f32 %v2603, %v2611
          %s2614 = sld [smem:[#allocation5 + $0x90]]
          %v2615 = vstv %s2614
          %v2616 = vmul.f32 %v2615, %v2561
          %2618 = vrot.lane.b32.xlu0 %v2616, 32
          %v2619 = vpop.permute.xlu0 %2618
          %v2620 = vrot.slane %v2619, 1
          %v2621 = vsel %vm622, %v2619, %v2620
          %v2623 = vadd.f32 %v2613, %v2621
          %v2624 = vld [vmem:[#allocation4] sm:$0x3]
          %v2626 = vlaneseq
          %v2627 = vshrl.u32 %v2626, 7
          %v2628 = vsub.s32 0, %v2627
          %v2629 = vrot.slane %v2623, %v2628
          %v2630 = vlaneseq
          %v2631 = vshrl.u32 %v2630, 7
          %v2632 = vsub.s32 1, %v2631
          %v2633 = vrot.slane %v2623, %v2632
          %v2634 = vlaneseq
          %v2635 = vshrl.u32 %v2634, 7
          %v2636 = vsub.s32 2, %v2635
          %v2637 = vrot.slane %v2623, %v2636
          %2638 = vrot.lane.b32.xlu0 %v2629, 124
          %v2639 = vpop.permute.xlu0 %2638
          %2640 = vrot.lane.b32.xlu0 %v2633, 124
          %v2641 = vpop.permute.xlu0 %2640
          %2642 = vrot.lane.b32.xlu0 %v2637, 124
          %v2643 = vpop.permute.xlu0 %2642
          %v2644 = vsel %vm1077, %v2639, %v2641
          %v2645 = vsel %vm1077, %v2641, %v2643
          %v2648 = vsel %vm503, %v2644, 0.0
          %v2649 = vsel %vm504, %v2645, 0.0
          %v2652 = vcombine.low %v2648, %v2649
          %v2654 = vunpack.c.l.s4 1966171168
          %v2655 = vunpack.c.0.s8 %v2654
          %v2656 = vlaneseq
          %v2657 = vshrl.u32 %v2656, 7
          %v2658 = vsub.s32 %v2655, %v2657
          %v2659 = vrot.slane %v2652, %v2658
          %v2661 = vunpack.c.l.s4 1966171168
          %v2662 = vunpack.c.0.s8 %v2661
          %v2663 = vlaneseq
          %v2664 = vshrl.u32 %v2663, 7
          %v2665 = vsub.s32 %v2662, %v2664
          %v2666 = vrot.slane %v2659, %v2665
          %v2668 = vadd.f32 %v2624, %v2666
          %2669 = vst.msk [vmem:[#allocation4] sm:$0x3] %vm527, %v2668
          %s2670 = sld [smem:[#allocation5 + $0x67]]
          %v2671 = vld [vmem:[#allocation3] sm:$0x7]
          %v2672 = vstv %s2670
          %v2673 = vmul.f32 %v2672, %v2671
          %s2674 = sld [smem:[#allocation5 + $0x6e]]
          %v2675 = vstv %s2674
          %v2676 = vmul.f32 %v2675, %v2671
          %2678 = vrot.lane.b32.xlu0 %v2676, 112
          %v2679 = vpop.permute.xlu0 %2678
          %v2680 = vrot.slane %v2679, 1
          %v2681 = vsel %vm567, %v2679, %v2680
          %v2683 = vadd.f32 %v2673, %v2681
          %s2684 = sld [smem:[#allocation5 + $0x75]]
          %v2685 = vstv %s2684
          %v2686 = vmul.f32 %v2685, %v2671
          %2688 = vrot.lane.b32.xlu0 %v2686, 96
          %v2689 = vpop.permute.xlu0 %2688
          %v2690 = vrot.slane %v2689, 1
          %v2691 = vsel %vm578, %v2689, %v2690
          %v2693 = vadd.f32 %v2683, %v2691
          %s2694 = sld [smem:[#allocation5 + $0x7c]]
          %v2695 = vstv %s2694
          %v2696 = vmul.f32 %v2695, %v2671
          %2698 = vrot.lane.b32.xlu0 %v2696, 80
          %v2699 = vpop.permute.xlu0 %2698
          %v2700 = vrot.slane %v2699, 1
          %v2701 = vsel %vm589, %v2699, %v2700
          %v2703 = vadd.f32 %v2693, %v2701
          %s2704 = sld [smem:[#allocation5 + $0x83]]
          %v2705 = vstv %s2704
          %v2706 = vmul.f32 %v2705, %v2671
          %2708 = vrot.lane.b32.xlu0 %v2706, 64
          %v2709 = vpop.permute.xlu0 %2708
          %v2710 = vrot.slane %v2709, 1
          %v2711 = vsel %vm600, %v2709, %v2710
          %v2713 = vadd.f32 %v2703, %v2711
          %s2714 = sld [smem:[#allocation5 + $0x8a]]
          %v2715 = vstv %s2714
          %v2716 = vmul.f32 %v2715, %v2671
          %2718 = vrot.lane.b32.xlu0 %v2716, 48
          %v2719 = vpop.permute.xlu0 %2718
          %v2720 = vrot.slane %v2719, 1
          %v2721 = vsel %vm611, %v2719, %v2720
          %v2723 = vadd.f32 %v2713, %v2721
          %s2724 = sld [smem:[#allocation5 + $0x91]]
          %v2725 = vstv %s2724
          %v2726 = vmul.f32 %v2725, %v2671
          %2728 = vrot.lane.b32.xlu0 %v2726, 32
          %v2729 = vpop.permute.xlu0 %2728
          %v2730 = vrot.slane %v2729, 1
          %v2731 = vsel %vm622, %v2729, %v2730
          %v2733 = vadd.f32 %v2723, %v2731
          %v2734 = vld [vmem:[#allocation4] sm:$0x3]
          %v2736 = vlaneseq
          %v2737 = vshrl.u32 %v2736, 7
          %v2738 = vsub.s32 0, %v2737
          %v2739 = vrot.slane %v2733, %v2738
          %v2740 = vlaneseq
          %v2741 = vshrl.u32 %v2740, 7
          %v2742 = vsub.s32 1, %v2741
          %v2743 = vrot.slane %v2733, %v2742
          %v2744 = vlaneseq
          %v2745 = vshrl.u32 %v2744, 7
          %v2746 = vsub.s32 2, %v2745
          %v2747 = vrot.slane %v2733, %v2746
          %2748 = vrot.lane.b32.xlu0 %v2739, 123
          %v2749 = vpop.permute.xlu0 %2748
          %2750 = vrot.lane.b32.xlu0 %v2743, 123
          %v2751 = vpop.permute.xlu0 %2750
          %2752 = vrot.lane.b32.xlu0 %v2747, 123
          %v2753 = vpop.permute.xlu0 %2752
          %v2754 = vsel %vm1188, %v2749, %v2751
          %v2755 = vsel %vm1188, %v2751, %v2753
          %v2758 = vsel %vm509, %v2754, 0.0
          %v2759 = vsel %vm510, %v2755, 0.0
          %v2762 = vcombine.low %v2758, %v2759
          %v2764 = vunpack.c.l.s4 1966171168
          %v2765 = vunpack.c.0.s8 %v2764
          %v2766 = vlaneseq
          %v2767 = vshrl.u32 %v2766, 7
          %v2768 = vsub.s32 %v2765, %v2767
          %v2769 = vrot.slane %v2762, %v2768
          %v2771 = vunpack.c.l.s4 1966171168
          %v2772 = vunpack.c.0.s8 %v2771
          %v2773 = vlaneseq
          %v2774 = vshrl.u32 %v2773, 7
          %v2775 = vsub.s32 %v2772, %v2774
          %v2776 = vrot.slane %v2769, %v2775
          %v2778 = vadd.f32 %v2734, %v2776
          %2779 = vst.msk [vmem:[#allocation4] sm:$0x3] %vm527, %v2778
          %s2780 = sld [smem:[#allocation5 + $0x68]]
          %v2781 = vld [vmem:[#allocation3] sm:$0x7]
          %v2782 = vstv %s2780
          %v2783 = vmul.f32 %v2782, %v2781
          %s2784 = sld [smem:[#allocation5 + $0x6f]]
          %v2785 = vstv %s2784
          %v2786 = vmul.f32 %v2785, %v2781
          %2788 = vrot.lane.b32.xlu0 %v2786, 112
          %v2789 = vpop.permute.xlu0 %2788
          %v2790 = vrot.slane %v2789, 1
          %v2791 = vsel %vm567, %v2789, %v2790
          %v2793 = vadd.f32 %v2783, %v2791
          %s2794 = sld [smem:[#allocation5 + $0x76]]
          %v2795 = vstv %s2794
          %v2796 = vmul.f32 %v2795, %v2781
          %2798 = vrot.lane.b32.xlu0 %v2796, 96
          %v2799 = vpop.permute.xlu0 %2798
          %v2800 = vrot.slane %v2799, 1
          %v2801 = vsel %vm578, %v2799, %v2800
          %v2803 = vadd.f32 %v2793, %v2801
          %s2804 = sld [smem:[#allocation5 + $0x7d]]
          %v2805 = vstv %s2804
          %v2806 = vmul.f32 %v2805, %v2781
          %2808 = vrot.lane.b32.xlu0 %v2806, 80
          %v2809 = vpop.permute.xlu0 %2808
          %v2810 = vrot.slane %v2809, 1
          %v2811 = vsel %vm589, %v2809, %v2810
          %v2813 = vadd.f32 %v2803, %v2811
          %s2814 = sld [smem:[#allocation5 + $0x84]]
          %v2815 = vstv %s2814
          %v2816 = vmul.f32 %v2815, %v2781
          %2818 = vrot.lane.b32.xlu0 %v2816, 64
          %v2819 = vpop.permute.xlu0 %2818
          %v2820 = vrot.slane %v2819, 1
          %v2821 = vsel %vm600, %v2819, %v2820
          %v2823 = vadd.f32 %v2813, %v2821
          %s2824 = sld [smem:[#allocation5 + $0x8b]]
          %v2825 = vstv %s2824
          %v2826 = vmul.f32 %v2825, %v2781
          %2828 = vrot.lane.b32.xlu0 %v2826, 48
          %v2829 = vpop.permute.xlu0 %2828
          %v2830 = vrot.slane %v2829, 1
          %v2831 = vsel %vm611, %v2829, %v2830
          %v2833 = vadd.f32 %v2823, %v2831
          %s2834 = sld [smem:[#allocation5 + $0x92]]
          %v2835 = vstv %s2834
          %v2836 = vmul.f32 %v2835, %v2781
          %2838 = vrot.lane.b32.xlu0 %v2836, 32
          %v2839 = vpop.permute.xlu0 %2838
          %v2840 = vrot.slane %v2839, 1
          %v2841 = vsel %vm622, %v2839, %v2840
          %v2843 = vadd.f32 %v2833, %v2841
          %v2844 = vld [vmem:[#allocation4] sm:$0x3]
          %v2846 = vlaneseq
          %v2847 = vshrl.u32 %v2846, 7
          %v2848 = vsub.s32 0, %v2847
          %v2849 = vrot.slane %v2843, %v2848
          %v2850 = vlaneseq
          %v2851 = vshrl.u32 %v2850, 7
          %v2852 = vsub.s32 1, %v2851
          %v2853 = vrot.slane %v2843, %v2852
          %v2854 = vlaneseq
          %v2855 = vshrl.u32 %v2854, 7
          %v2856 = vsub.s32 2, %v2855
          %v2857 = vrot.slane %v2843, %v2856
          %2858 = vrot.lane.b32.xlu0 %v2849, 122
          %v2859 = vpop.permute.xlu0 %2858
          %2860 = vrot.lane.b32.xlu0 %v2853, 122
          %v2861 = vpop.permute.xlu0 %2860
          %2862 = vrot.lane.b32.xlu0 %v2857, 122
          %v2863 = vpop.permute.xlu0 %2862
          %v2864 = vsel %vm1299, %v2859, %v2861
          %v2865 = vsel %vm1299, %v2861, %v2863
          %v2868 = vsel %vm515, %v2864, 0.0
          %v2869 = vsel %vm516, %v2865, 0.0
          %v2872 = vcombine.low %v2868, %v2869
          %v2874 = vunpack.c.l.s4 1966171168
          %v2875 = vunpack.c.0.s8 %v2874
          %v2876 = vlaneseq
          %v2877 = vshrl.u32 %v2876, 7
          %v2878 = vsub.s32 %v2875, %v2877
          %v2879 = vrot.slane %v2872, %v2878
          %v2881 = vunpack.c.l.s4 1966171168
          %v2882 = vunpack.c.0.s8 %v2881
          %v2883 = vlaneseq
          %v2884 = vshrl.u32 %v2883, 7
          %v2885 = vsub.s32 %v2882, %v2884
          %v2886 = vrot.slane %v2879, %v2885
          %v2888 = vadd.f32 %v2844, %v2886
          %2889 = vst.msk [vmem:[#allocation4] sm:$0x3] %vm527, %v2888
          %v2892 = vcombine.low %v441, %v447
          %v2894 = vunpack.c.l.s4 1966171168
          %v2895 = vunpack.c.0.s8 %v2894
          %v2896 = vlaneseq
          %v2897 = vshrl.u32 %v2896, 7
          %v2898 = vsub.s32 %v2895, %v2897
          %v2899 = vrot.slane %v2892, %v2898
          %v2901 = vunpack.c.l.s4 1966171168
          %v2902 = vunpack.c.0.s8 %v2901
          %v2903 = vlaneseq
          %v2904 = vshrl.u32 %v2903, 7
          %v2905 = vsub.s32 %v2902, %v2904
          %v2906 = vrot.slane %v2899, %v2905
          %2907 = vrot.lane.b32.xlu0 %v2906, 51
          %v2908 = vpop.permute.xlu0 %2907
          %v2909 = vrot.slane %v2908, 7
          %v2910 = vsel %vm549, %v2909, %v2908
          %2912 = vst.msk [vmem:[#allocation3] sm:$0x7] %vm553, %v2910
          %s2913 = sld [smem:[#allocation5 + $0x93]]
          %v2914 = vld [vmem:[#allocation3] sm:$0x3]
          %v2915 = vstv %s2913
          %v2916 = vmul.f32 %v2915, %v2914
          %s2917 = sld [smem:[#allocation5 + $0x9a]]
          %v2918 = vld [vmem:[#allocation3] sm:$0x7]
          %v2919 = vstv %s2917
          %v2920 = vmul.f32 %v2919, %v2918
          %2922 = vrot.lane.b32.xlu0 %v2920, 112
          %v2923 = vpop.permute.xlu0 %2922
          %v2924 = vrot.slane %v2923, 1
          %v2925 = vsel %vm567, %v2923, %v2924
          %v2927 = vadd.f32 %v2916, %v2925
          %s2928 = sld [smem:[#allocation5 + $0xa1]]
          %v2929 = vstv %s2928
          %v2930 = vmul.f32 %v2929, %v2918
          %2932 = vrot.lane.b32.xlu0 %v2930, 96
          %v2933 = vpop.permute.xlu0 %2932
          %v2934 = vrot.slane %v2933, 1
          %v2935 = vsel %vm578, %v2933, %v2934
          %v2937 = vadd.f32 %v2927, %v2935
          %s2938 = sld [smem:[#allocation5 + $0xa8]]
          %v2939 = vstv %s2938
          %v2940 = vmul.f32 %v2939, %v2918
          %2942 = vrot.lane.b32.xlu0 %v2940, 80
          %v2943 = vpop.permute.xlu0 %2942
          %v2944 = vrot.slane %v2943, 1
          %v2945 = vsel %vm589, %v2943, %v2944
          %v2947 = vadd.f32 %v2937, %v2945
          %s2948 = sld [smem:[#allocation5 + $0xaf]]
          %v2949 = vstv %s2948
          %v2950 = vmul.f32 %v2949, %v2918
          %2952 = vrot.lane.b32.xlu0 %v2950, 64
          %v2953 = vpop.permute.xlu0 %2952
          %v2954 = vrot.slane %v2953, 1
          %v2955 = vsel %vm600, %v2953, %v2954
          %v2957 = vadd.f32 %v2947, %v2955
          %s2958 = sld [smem:[#allocation5 + $0xb6]]
          %v2959 = vstv %s2958
          %v2960 = vmul.f32 %v2959, %v2918
          %2962 = vrot.lane.b32.xlu0 %v2960, 48
          %v2963 = vpop.permute.xlu0 %2962
          %v2964 = vrot.slane %v2963, 1
          %v2965 = vsel %vm611, %v2963, %v2964
          %v2967 = vadd.f32 %v2957, %v2965
          %s2968 = sld [smem:[#allocation5 + $0xbd]]
          %v2969 = vstv %s2968
          %v2970 = vmul.f32 %v2969, %v2918
          %2972 = vrot.lane.b32.xlu0 %v2970, 32
          %v2973 = vpop.permute.xlu0 %2972
          %v2974 = vrot.slane %v2973, 1
          %v2975 = vsel %vm622, %v2973, %v2974
          %v2977 = vadd.f32 %v2967, %v2975
          %v2978 = vld [vmem:[#allocation4] sm:$0x3]
          %v2980 = vlaneseq
          %v2981 = vshrl.u32 %v2980, 7
          %v2982 = vsub.s32 0, %v2981
          %v2983 = vrot.slane %v2977, %v2982
          %v2984 = vlaneseq
          %v2985 = vshrl.u32 %v2984, 7
          %v2986 = vsub.s32 1, %v2985
          %v2987 = vrot.slane %v2977, %v2986
          %v2990 = vsel %vm479, %v2983, 0.0
          %v2991 = vsel %vm480, %v2987, 0.0
          %v2994 = vcombine.low %v2990, %v2991
          %v2996 = vunpack.c.l.s4 1966171168
          %v2997 = vunpack.c.0.s8 %v2996
          %v2998 = vlaneseq
          %v2999 = vshrl.u32 %v2998, 7
          %v3000 = vsub.s32 %v2997, %v2999
          %v3001 = vrot.slane %v2994, %v3000
          %v3003 = vunpack.c.l.s4 1966171168
          %v3004 = vunpack.c.0.s8 %v3003
          %v3005 = vlaneseq
          %v3006 = vshrl.u32 %v3005, 7
          %v3007 = vsub.s32 %v3004, %v3006
          %v3008 = vrot.slane %v3001, %v3007
          %v3010 = vadd.f32 %v2978, %v3008
          %3011 = vst.msk [vmem:[#allocation4] sm:$0x3] %vm527, %v3010
          %s3012 = sld [smem:[#allocation5 + $0x94]]
          %v3013 = vld [vmem:[#allocation3] sm:$0x7]
          %v3014 = vstv %s3012
          %v3015 = vmul.f32 %v3014, %v3013
          %s3016 = sld [smem:[#allocation5 + $0x9b]]
          %v3017 = vstv %s3016
          %v3018 = vmul.f32 %v3017, %v3013
          %3020 = vrot.lane.b32.xlu0 %v3018, 112
          %v3021 = vpop.permute.xlu0 %3020
          %v3022 = vrot.slane %v3021, 1
          %v3023 = vsel %vm567, %v3021, %v3022
          %v3025 = vadd.f32 %v3015, %v3023
          %s3026 = sld [smem:[#allocation5 + $0xa2]]
          %v3027 = vstv %s3026
          %v3028 = vmul.f32 %v3027, %v3013
          %3030 = vrot.lane.b32.xlu0 %v3028, 96
          %v3031 = vpop.permute.xlu0 %3030
          %v3032 = vrot.slane %v3031, 1
          %v3033 = vsel %vm578, %v3031, %v3032
          %v3035 = vadd.f32 %v3025, %v3033
          %s3036 = sld [smem:[#allocation5 + $0xa9]]
          %v3037 = vstv %s3036
          %v3038 = vmul.f32 %v3037, %v3013
          %3040 = vrot.lane.b32.xlu0 %v3038, 80
          %v3041 = vpop.permute.xlu0 %3040
          %v3042 = vrot.slane %v3041, 1
          %v3043 = vsel %vm589, %v3041, %v3042
          %v3045 = vadd.f32 %v3035, %v3043
          %s3046 = sld [smem:[#allocation5 + $0xb0]]
          %v3047 = vstv %s3046
          %v3048 = vmul.f32 %v3047, %v3013
          %3050 = vrot.lane.b32.xlu0 %v3048, 64
          %v3051 = vpop.permute.xlu0 %3050
          %v3052 = vrot.slane %v3051, 1
          %v3053 = vsel %vm600, %v3051, %v3052
          %v3055 = vadd.f32 %v3045, %v3053
          %s3056 = sld [smem:[#allocation5 + $0xb7]]
          %v3057 = vstv %s3056
          %v3058 = vmul.f32 %v3057, %v3013
          %3060 = vrot.lane.b32.xlu0 %v3058, 48
          %v3061 = vpop.permute.xlu0 %3060
          %v3062 = vrot.slane %v3061, 1
          %v3063 = vsel %vm611, %v3061, %v3062
          %v3065 = vadd.f32 %v3055, %v3063
          %s3066 = sld [smem:[#allocation5 + $0xbe]]
          %v3067 = vstv %s3066
          %v3068 = vmul.f32 %v3067, %v3013
          %3070 = vrot.lane.b32.xlu0 %v3068, 32
          %v3071 = vpop.permute.xlu0 %3070
          %v3072 = vrot.slane %v3071, 1
          %v3073 = vsel %vm622, %v3071, %v3072
          %v3075 = vadd.f32 %v3065, %v3073
          %v3076 = vld [vmem:[#allocation4] sm:$0x3]
          %v3078 = vlaneseq
          %v3079 = vshrl.u32 %v3078, 7
          %v3080 = vsub.s32 0, %v3079
          %v3081 = vrot.slane %v3075, %v3080
          %v3082 = vlaneseq
          %v3083 = vshrl.u32 %v3082, 7
          %v3084 = vsub.s32 1, %v3083
          %v3085 = vrot.slane %v3075, %v3084
          %v3086 = vlaneseq
          %v3087 = vshrl.u32 %v3086, 7
          %v3088 = vsub.s32 2, %v3087
          %v3089 = vrot.slane %v3075, %v3088
          %3090 = vrot.lane.b32.xlu0 %v3081, 127
          %v3091 = vpop.permute.xlu0 %3090
          %3092 = vrot.lane.b32.xlu0 %v3085, 127
          %v3093 = vpop.permute.xlu0 %3092
          %3094 = vrot.lane.b32.xlu0 %v3089, 127
          %v3095 = vpop.permute.xlu0 %3094
          %v3096 = vsel %vm744, %v3091, %v3093
          %v3097 = vsel %vm744, %v3093, %v3095
          %v3100 = vsel %vm485, %v3096, 0.0
          %v3101 = vsel %vm486, %v3097, 0.0
          %v3104 = vcombine.low %v3100, %v3101
          %v3106 = vunpack.c.l.s4 1966171168
          %v3107 = vunpack.c.0.s8 %v3106
          %v3108 = vlaneseq
          %v3109 = vshrl.u32 %v3108, 7
          %v3110 = vsub.s32 %v3107, %v3109
          %v3111 = vrot.slane %v3104, %v3110
          %v3113 = vunpack.c.l.s4 1966171168
          %v3114 = vunpack.c.0.s8 %v3113
          %v3115 = vlaneseq
          %v3116 = vshrl.u32 %v3115, 7
          %v3117 = vsub.s32 %v3114, %v3116
          %v3118 = vrot.slane %v3111, %v3117
          %v3120 = vadd.f32 %v3076, %v3118
          %3121 = vst.msk [vmem:[#allocation4] sm:$0x3] %vm527, %v3120
          %s3122 = sld [smem:[#allocation5 + $0x95]]
          %v3123 = vld [vmem:[#allocation3] sm:$0x7]
          %v3124 = vstv %s3122
          %v3125 = vmul.f32 %v3124, %v3123
          %s3126 = sld [smem:[#allocation5 + $0x9c]]
          %v3127 = vstv %s3126
          %v3128 = vmul.f32 %v3127, %v3123
          %3130 = vrot.lane.b32.xlu0 %v3128, 112
          %v3131 = vpop.permute.xlu0 %3130
          %v3132 = vrot.slane %v3131, 1
          %v3133 = vsel %vm567, %v3131, %v3132
          %v3135 = vadd.f32 %v3125, %v3133
          %s3136 = sld [smem:[#allocation5 + $0xa3]]
          %v3137 = vstv %s3136
          %v3138 = vmul.f32 %v3137, %v3123
          %3140 = vrot.lane.b32.xlu0 %v3138, 96
          %v3141 = vpop.permute.xlu0 %3140
          %v3142 = vrot.slane %v3141, 1
          %v3143 = vsel %vm578, %v3141, %v3142
          %v3145 = vadd.f32 %v3135, %v3143
          %s3146 = sld [smem:[#allocation5 + $0xaa]]
          %v3147 = vstv %s3146
          %v3148 = vmul.f32 %v3147, %v3123
          %3150 = vrot.lane.b32.xlu0 %v3148, 80
          %v3151 = vpop.permute.xlu0 %3150
          %v3152 = vrot.slane %v3151, 1
          %v3153 = vsel %vm589, %v3151, %v3152
          %v3155 = vadd.f32 %v3145, %v3153
          %s3156 = sld [smem:[#allocation5 + $0xb1]]
          %v3157 = vstv %s3156
          %v3158 = vmul.f32 %v3157, %v3123
          %3160 = vrot.lane.b32.xlu0 %v3158, 64
          %v3161 = vpop.permute.xlu0 %3160
          %v3162 = vrot.slane %v3161, 1
          %v3163 = vsel %vm600, %v3161, %v3162
          %v3165 = vadd.f32 %v3155, %v3163
          %s3166 = sld [smem:[#allocation5 + $0xb8]]
          %v3167 = vstv %s3166
          %v3168 = vmul.f32 %v3167, %v3123
          %3170 = vrot.lane.b32.xlu0 %v3168, 48
          %v3171 = vpop.permute.xlu0 %3170
          %v3172 = vrot.slane %v3171, 1
          %v3173 = vsel %vm611, %v3171, %v3172
          %v3175 = vadd.f32 %v3165, %v3173
          %s3176 = sld [smem:[#allocation5 + $0xbf]]
          %v3177 = vstv %s3176
          %v3178 = vmul.f32 %v3177, %v3123
          %3180 = vrot.lane.b32.xlu0 %v3178, 32
          %v3181 = vpop.permute.xlu0 %3180
          %v3182 = vrot.slane %v3181, 1
          %v3183 = vsel %vm622, %v3181, %v3182
          %v3185 = vadd.f32 %v3175, %v3183
          %v3186 = vld [vmem:[#allocation4] sm:$0x3]
          %v3188 = vlaneseq
          %v3189 = vshrl.u32 %v3188, 7
          %v3190 = vsub.s32 0, %v3189
          %v3191 = vrot.slane %v3185, %v3190
          %v3192 = vlaneseq
          %v3193 = vshrl.u32 %v3192, 7
          %v3194 = vsub.s32 1, %v3193
          %v3195 = vrot.slane %v3185, %v3194
          %v3196 = vlaneseq
          %v3197 = vshrl.u32 %v3196, 7
          %v3198 = vsub.s32 2, %v3197
          %v3199 = vrot.slane %v3185, %v3198
          %3200 = vrot.lane.b32.xlu0 %v3191, 126
          %v3201 = vpop.permute.xlu0 %3200
          %3202 = vrot.lane.b32.xlu0 %v3195, 126
          %v3203 = vpop.permute.xlu0 %3202
          %3204 = vrot.lane.b32.xlu0 %v3199, 126
          %v3205 = vpop.permute.xlu0 %3204
          %v3206 = vsel %vm855, %v3201, %v3203
          %v3207 = vsel %vm855, %v3203, %v3205
          %v3210 = vsel %vm491, %v3206, 0.0
          %v3211 = vsel %vm492, %v3207, 0.0
          %v3214 = vcombine.low %v3210, %v3211
          %v3216 = vunpack.c.l.s4 1966171168
          %v3217 = vunpack.c.0.s8 %v3216
          %v3218 = vlaneseq
          %v3219 = vshrl.u32 %v3218, 7
          %v3220 = vsub.s32 %v3217, %v3219
          %v3221 = vrot.slane %v3214, %v3220
          %v3223 = vunpack.c.l.s4 1966171168
          %v3224 = vunpack.c.0.s8 %v3223
          %v3225 = vlaneseq
          %v3226 = vshrl.u32 %v3225, 7
          %v3227 = vsub.s32 %v3224, %v3226
          %v3228 = vrot.slane %v3221, %v3227
          %v3230 = vadd.f32 %v3186, %v3228
          %3231 = vst.msk [vmem:[#allocation4] sm:$0x3] %vm527, %v3230
          %s3232 = sld [smem:[#allocation5 + $0x96]]
          %v3233 = vld [vmem:[#allocation3] sm:$0x7]
          %v3234 = vstv %s3232
          %v3235 = vmul.f32 %v3234, %v3233
          %s3236 = sld [smem:[#allocation5 + $0x9d]]
          %v3237 = vstv %s3236
          %v3238 = vmul.f32 %v3237, %v3233
          %3240 = vrot.lane.b32.xlu0 %v3238, 112
          %v3241 = vpop.permute.xlu0 %3240
          %v3242 = vrot.slane %v3241, 1
          %v3243 = vsel %vm567, %v3241, %v3242
          %v3245 = vadd.f32 %v3235, %v3243
          %s3246 = sld [smem:[#allocation5 + $0xa4]]
          %v3247 = vstv %s3246
          %v3248 = vmul.f32 %v3247, %v3233
          %3250 = vrot.lane.b32.xlu0 %v3248, 96
          %v3251 = vpop.permute.xlu0 %3250
          %v3252 = vrot.slane %v3251, 1
          %v3253 = vsel %vm578, %v3251, %v3252
          %v3255 = vadd.f32 %v3245, %v3253
          %s3256 = sld [smem:[#allocation5 + $0xab]]
          %v3257 = vstv %s3256
          %v3258 = vmul.f32 %v3257, %v3233
          %3260 = vrot.lane.b32.xlu0 %v3258, 80
          %v3261 = vpop.permute.xlu0 %3260
          %v3262 = vrot.slane %v3261, 1
          %v3263 = vsel %vm589, %v3261, %v3262
          %v3265 = vadd.f32 %v3255, %v3263
          %s3266 = sld [smem:[#allocation5 + $0xb2]]
          %v3267 = vstv %s3266
          %v3268 = vmul.f32 %v3267, %v3233
          %3270 = vrot.lane.b32.xlu0 %v3268, 64
          %v3271 = vpop.permute.xlu0 %3270
          %v3272 = vrot.slane %v3271, 1
          %v3273 = vsel %vm600, %v3271, %v3272
          %v3275 = vadd.f32 %v3265, %v3273
          %s3276 = sld [smem:[#allocation5 + $0xb9]]
          %v3277 = vstv %s3276
          %v3278 = vmul.f32 %v3277, %v3233
          %3280 = vrot.lane.b32.xlu0 %v3278, 48
          %v3281 = vpop.permute.xlu0 %3280
          %v3282 = vrot.slane %v3281, 1
          %v3283 = vsel %vm611, %v3281, %v3282
          %v3285 = vadd.f32 %v3275, %v3283
          %s3286 = sld [smem:[#allocation5 + $0xc0]]
          %v3287 = vstv %s3286
          %v3288 = vmul.f32 %v3287, %v3233
          %3290 = vrot.lane.b32.xlu0 %v3288, 32
          %v3291 = vpop.permute.xlu0 %3290
          %v3292 = vrot.slane %v3291, 1
          %v3293 = vsel %vm622, %v3291, %v3292
          %v3295 = vadd.f32 %v3285, %v3293
          %v3296 = vld [vmem:[#allocation4] sm:$0x3]
          %v3298 = vlaneseq
          %v3299 = vshrl.u32 %v3298, 7
          %v3300 = vsub.s32 0, %v3299
          %v3301 = vrot.slane %v3295, %v3300
          %v3302 = vlaneseq
          %v3303 = vshrl.u32 %v3302, 7
          %v3304 = vsub.s32 1, %v3303
          %v3305 = vrot.slane %v3295, %v3304
          %v3306 = vlaneseq
          %v3307 = vshrl.u32 %v3306, 7
          %v3308 = vsub.s32 2, %v3307
          %v3309 = vrot.slane %v3295, %v3308
          %3310 = vrot.lane.b32.xlu0 %v3301, 125
          %v3311 = vpop.permute.xlu0 %3310
          %3312 = vrot.lane.b32.xlu0 %v3305, 125
          %v3313 = vpop.permute.xlu0 %3312
          %3314 = vrot.lane.b32.xlu0 %v3309, 125
          %v3315 = vpop.permute.xlu0 %3314
          %v3316 = vsel %vm966, %v3311, %v3313
          %v3317 = vsel %vm966, %v3313, %v3315
          %v3320 = vsel %vm497, %v3316, 0.0
          %v3321 = vsel %vm498, %v3317, 0.0
          %v3324 = vcombine.low %v3320, %v3321
          %v3326 = vunpack.c.l.s4 1966171168
          %v3327 = vunpack.c.0.s8 %v3326
          %v3328 = vlaneseq
          %v3329 = vshrl.u32 %v3328, 7
          %v3330 = vsub.s32 %v3327, %v3329
          %v3331 = vrot.slane %v3324, %v3330
          %v3333 = vunpack.c.l.s4 1966171168
          %v3334 = vunpack.c.0.s8 %v3333
          %v3335 = vlaneseq
          %v3336 = vshrl.u32 %v3335, 7
          %v3337 = vsub.s32 %v3334, %v3336
          %v3338 = vrot.slane %v3331, %v3337
          %v3340 = vadd.f32 %v3296, %v3338
          %3341 = vst.msk [vmem:[#allocation4] sm:$0x3] %vm527, %v3340
          %s3342 = sld [smem:[#allocation5 + $0x97]]
          %v3343 = vld [vmem:[#allocation3] sm:$0x7]
          %v3344 = vstv %s3342
          %v3345 = vmul.f32 %v3344, %v3343
          %s3346 = sld [smem:[#allocation5 + $0x9e]]
          %v3347 = vstv %s3346
          %v3348 = vmul.f32 %v3347, %v3343
          %3350 = vrot.lane.b32.xlu0 %v3348, 112
          %v3351 = vpop.permute.xlu0 %3350
          %v3352 = vrot.slane %v3351, 1
          %v3353 = vsel %vm567, %v3351, %v3352
          %v3355 = vadd.f32 %v3345, %v3353
          %s3356 = sld [smem:[#allocation5 + $0xa5]]
          %v3357 = vstv %s3356
          %v3358 = vmul.f32 %v3357, %v3343
          %3360 = vrot.lane.b32.xlu0 %v3358, 96
          %v3361 = vpop.permute.xlu0 %3360
          %v3362 = vrot.slane %v3361, 1
          %v3363 = vsel %vm578, %v3361, %v3362
          %v3365 = vadd.f32 %v3355, %v3363
          %s3366 = sld [smem:[#allocation5 + $0xac]]
          %v3367 = vstv %s3366
          %v3368 = vmul.f32 %v3367, %v3343
          %3370 = vrot.lane.b32.xlu0 %v3368, 80
          %v3371 = vpop.permute.xlu0 %3370
          %v3372 = vrot.slane %v3371, 1
          %v3373 = vsel %vm589, %v3371, %v3372
          %v3375 = vadd.f32 %v3365, %v3373
          %s3376 = sld [smem:[#allocation5 + $0xb3]]
          %v3377 = vstv %s3376
          %v3378 = vmul.f32 %v3377, %v3343
          %3380 = vrot.lane.b32.xlu0 %v3378, 64
          %v3381 = vpop.permute.xlu0 %3380
          %v3382 = vrot.slane %v3381, 1
          %v3383 = vsel %vm600, %v3381, %v3382
          %v3385 = vadd.f32 %v3375, %v3383
          %s3386 = sld [smem:[#allocation5 + $0xba]]
          %v3387 = vstv %s3386
          %v3388 = vmul.f32 %v3387, %v3343
          %3390 = vrot.lane.b32.xlu0 %v3388, 48
          %v3391 = vpop.permute.xlu0 %3390
          %v3392 = vrot.slane %v3391, 1
          %v3393 = vsel %vm611, %v3391, %v3392
          %v3395 = vadd.f32 %v3385, %v3393
          %s3396 = sld [smem:[#allocation5 + $0xc1]]
          %v3397 = vstv %s3396
          %v3398 = vmul.f32 %v3397, %v3343
          %3400 = vrot.lane.b32.xlu0 %v3398, 32
          %v3401 = vpop.permute.xlu0 %3400
          %v3402 = vrot.slane %v3401, 1
          %v3403 = vsel %vm622, %v3401, %v3402
          %v3405 = vadd.f32 %v3395, %v3403
          %v3406 = vld [vmem:[#allocation4] sm:$0x3]
          %v3408 = vlaneseq
          %v3409 = vshrl.u32 %v3408, 7
          %v3410 = vsub.s32 0, %v3409
          %v3411 = vrot.slane %v3405, %v3410
          %v3412 = vlaneseq
          %v3413 = vshrl.u32 %v3412, 7
          %v3414 = vsub.s32 1, %v3413
          %v3415 = vrot.slane %v3405, %v3414
          %v3416 = vlaneseq
          %v3417 = vshrl.u32 %v3416, 7
          %v3418 = vsub.s32 2, %v3417
          %v3419 = vrot.slane %v3405, %v3418
          %3420 = vrot.lane.b32.xlu0 %v3411, 124
          %v3421 = vpop.permute.xlu0 %3420
          %3422 = vrot.lane.b32.xlu0 %v3415, 124
          %v3423 = vpop.permute.xlu0 %3422
          %3424 = vrot.lane.b32.xlu0 %v3419, 124
          %v3425 = vpop.permute.xlu0 %3424
          %v3426 = vsel %vm1077, %v3421, %v3423
          %v3427 = vsel %vm1077, %v3423, %v3425
          %v3430 = vsel %vm503, %v3426, 0.0
          %v3431 = vsel %vm504, %v3427, 0.0
          %v3434 = vcombine.low %v3430, %v3431
          %v3436 = vunpack.c.l.s4 1966171168
          %v3437 = vunpack.c.0.s8 %v3436
          %v3438 = vlaneseq
          %v3439 = vshrl.u32 %v3438, 7
          %v3440 = vsub.s32 %v3437, %v3439
          %v3441 = vrot.slane %v3434, %v3440
          %v3443 = vunpack.c.l.s4 1966171168
          %v3444 = vunpack.c.0.s8 %v3443
          %v3445 = vlaneseq
          %v3446 = vshrl.u32 %v3445, 7
          %v3447 = vsub.s32 %v3444, %v3446
          %v3448 = vrot.slane %v3441, %v3447
          %v3450 = vadd.f32 %v3406, %v3448
          %3451 = vst.msk [vmem:[#allocation4] sm:$0x3] %vm527, %v3450
          %s3452 = sld [smem:[#allocation5 + $0x98]]
          %v3453 = vld [vmem:[#allocation3] sm:$0x7]
          %v3454 = vstv %s3452
          %v3455 = vmul.f32 %v3454, %v3453
          %s3456 = sld [smem:[#allocation5 + $0x9f]]
          %v3457 = vstv %s3456
          %v3458 = vmul.f32 %v3457, %v3453
          %3460 = vrot.lane.b32.xlu0 %v3458, 112
          %v3461 = vpop.permute.xlu0 %3460
          %v3462 = vrot.slane %v3461, 1
          %v3463 = vsel %vm567, %v3461, %v3462
          %v3465 = vadd.f32 %v3455, %v3463
          %s3466 = sld [smem:[#allocation5 + $0xa6]]
          %v3467 = vstv %s3466
          %v3468 = vmul.f32 %v3467, %v3453
          %3470 = vrot.lane.b32.xlu0 %v3468, 96
          %v3471 = vpop.permute.xlu0 %3470
          %v3472 = vrot.slane %v3471, 1
          %v3473 = vsel %vm578, %v3471, %v3472
          %v3475 = vadd.f32 %v3465, %v3473
          %s3476 = sld [smem:[#allocation5 + $0xad]]
          %v3477 = vstv %s3476
          %v3478 = vmul.f32 %v3477, %v3453
          %3480 = vrot.lane.b32.xlu0 %v3478, 80
          %v3481 = vpop.permute.xlu0 %3480
          %v3482 = vrot.slane %v3481, 1
          %v3483 = vsel %vm589, %v3481, %v3482
          %v3485 = vadd.f32 %v3475, %v3483
          %s3486 = sld [smem:[#allocation5 + $0xb4]]
          %v3487 = vstv %s3486
          %v3488 = vmul.f32 %v3487, %v3453
          %3490 = vrot.lane.b32.xlu0 %v3488, 64
          %v3491 = vpop.permute.xlu0 %3490
          %v3492 = vrot.slane %v3491, 1
          %v3493 = vsel %vm600, %v3491, %v3492
          %v3495 = vadd.f32 %v3485, %v3493
          %s3496 = sld [smem:[#allocation5 + $0xbb]]
          %v3497 = vstv %s3496
          %v3498 = vmul.f32 %v3497, %v3453
          %3500 = vrot.lane.b32.xlu0 %v3498, 48
          %v3501 = vpop.permute.xlu0 %3500
          %v3502 = vrot.slane %v3501, 1
          %v3503 = vsel %vm611, %v3501, %v3502
          %v3505 = vadd.f32 %v3495, %v3503
          %s3506 = sld [smem:[#allocation5 + $0xc2]]
          %v3507 = vstv %s3506
          %v3508 = vmul.f32 %v3507, %v3453
          %3510 = vrot.lane.b32.xlu0 %v3508, 32
          %v3511 = vpop.permute.xlu0 %3510
          %v3512 = vrot.slane %v3511, 1
          %v3513 = vsel %vm622, %v3511, %v3512
          %v3515 = vadd.f32 %v3505, %v3513
          %v3516 = vld [vmem:[#allocation4] sm:$0x3]
          %v3518 = vlaneseq
          %v3519 = vshrl.u32 %v3518, 7
          %v3520 = vsub.s32 0, %v3519
          %v3521 = vrot.slane %v3515, %v3520
          %v3522 = vlaneseq
          %v3523 = vshrl.u32 %v3522, 7
          %v3524 = vsub.s32 1, %v3523
          %v3525 = vrot.slane %v3515, %v3524
          %v3526 = vlaneseq
          %v3527 = vshrl.u32 %v3526, 7
          %v3528 = vsub.s32 2, %v3527
          %v3529 = vrot.slane %v3515, %v3528
          %3530 = vrot.lane.b32.xlu0 %v3521, 123
          %v3531 = vpop.permute.xlu0 %3530
          %3532 = vrot.lane.b32.xlu0 %v3525, 123
          %v3533 = vpop.permute.xlu0 %3532
          %3534 = vrot.lane.b32.xlu0 %v3529, 123
          %v3535 = vpop.permute.xlu0 %3534
          %v3536 = vsel %vm1188, %v3531, %v3533
          %v3537 = vsel %vm1188, %v3533, %v3535
          %v3540 = vsel %vm509, %v3536, 0.0
          %v3541 = vsel %vm510, %v3537, 0.0
          %v3544 = vcombine.low %v3540, %v3541
          %v3546 = vunpack.c.l.s4 1966171168
          %v3547 = vunpack.c.0.s8 %v3546
          %v3548 = vlaneseq
          %v3549 = vshrl.u32 %v3548, 7
          %v3550 = vsub.s32 %v3547, %v3549
          %v3551 = vrot.slane %v3544, %v3550
          %v3553 = vunpack.c.l.s4 1966171168
          %v3554 = vunpack.c.0.s8 %v3553
          %v3555 = vlaneseq
          %v3556 = vshrl.u32 %v3555, 7
          %v3557 = vsub.s32 %v3554, %v3556
          %v3558 = vrot.slane %v3551, %v3557
          %v3560 = vadd.f32 %v3516, %v3558
          %3561 = vst.msk [vmem:[#allocation4] sm:$0x3] %vm527, %v3560
          %s3562 = sld [smem:[#allocation5 + $0x99]]
          %v3563 = vld [vmem:[#allocation3] sm:$0x7]
          %v3564 = vstv %s3562
          %v3565 = vmul.f32 %v3564, %v3563
          %s3566 = sld [smem:[#allocation5 + $0xa0]]
          %v3567 = vstv %s3566
          %v3568 = vmul.f32 %v3567, %v3563
          %3570 = vrot.lane.b32.xlu0 %v3568, 112
          %v3571 = vpop.permute.xlu0 %3570
          %v3572 = vrot.slane %v3571, 1
          %v3573 = vsel %vm567, %v3571, %v3572
          %v3575 = vadd.f32 %v3565, %v3573
          %s3576 = sld [smem:[#allocation5 + $0xa7]]
          %v3577 = vstv %s3576
          %v3578 = vmul.f32 %v3577, %v3563
          %3580 = vrot.lane.b32.xlu0 %v3578, 96
          %v3581 = vpop.permute.xlu0 %3580
          %v3582 = vrot.slane %v3581, 1
          %v3583 = vsel %vm578, %v3581, %v3582
          %v3585 = vadd.f32 %v3575, %v3583
          %s3586 = sld [smem:[#allocation5 + $0xae]]
          %v3587 = vstv %s3586
          %v3588 = vmul.f32 %v3587, %v3563
          %3590 = vrot.lane.b32.xlu0 %v3588, 80
          %v3591 = vpop.permute.xlu0 %3590
          %v3592 = vrot.slane %v3591, 1
          %v3593 = vsel %vm589, %v3591, %v3592
          %v3595 = vadd.f32 %v3585, %v3593
          %s3596 = sld [smem:[#allocation5 + $0xb5]]
          %v3597 = vstv %s3596
          %v3598 = vmul.f32 %v3597, %v3563
          %3600 = vrot.lane.b32.xlu0 %v3598, 64
          %v3601 = vpop.permute.xlu0 %3600
          %v3602 = vrot.slane %v3601, 1
          %v3603 = vsel %vm600, %v3601, %v3602
          %v3605 = vadd.f32 %v3595, %v3603
          %s3606 = sld [smem:[#allocation5 + $0xbc]]
          %v3607 = vstv %s3606
          %v3608 = vmul.f32 %v3607, %v3563
          %3610 = vrot.lane.b32.xlu0 %v3608, 48
          %v3611 = vpop.permute.xlu0 %3610
          %v3612 = vrot.slane %v3611, 1
          %v3613 = vsel %vm611, %v3611, %v3612
          %v3615 = vadd.f32 %v3605, %v3613
          %s3616 = sld [smem:[#allocation5 + $0xc3]]
          %v3617 = vstv %s3616
          %v3618 = vmul.f32 %v3617, %v3563
          %3620 = vrot.lane.b32.xlu0 %v3618, 32
          %v3621 = vpop.permute.xlu0 %3620
          %v3622 = vrot.slane %v3621, 1
          %v3623 = vsel %vm622, %v3621, %v3622
          %v3625 = vadd.f32 %v3615, %v3623
          %v3626 = vld [vmem:[#allocation4] sm:$0x3]
          %v3628 = vlaneseq
          %v3629 = vshrl.u32 %v3628, 7
          %v3630 = vsub.s32 0, %v3629
          %v3631 = vrot.slane %v3625, %v3630
          %v3632 = vlaneseq
          %v3633 = vshrl.u32 %v3632, 7
          %v3634 = vsub.s32 1, %v3633
          %v3635 = vrot.slane %v3625, %v3634
          %v3636 = vlaneseq
          %v3637 = vshrl.u32 %v3636, 7
          %v3638 = vsub.s32 2, %v3637
          %v3639 = vrot.slane %v3625, %v3638
          %3640 = vrot.lane.b32.xlu0 %v3631, 122
          %v3641 = vpop.permute.xlu0 %3640
          %3642 = vrot.lane.b32.xlu0 %v3635, 122
          %v3643 = vpop.permute.xlu0 %3642
          %3644 = vrot.lane.b32.xlu0 %v3639, 122
          %v3645 = vpop.permute.xlu0 %3644
          %v3646 = vsel %vm1299, %v3641, %v3643
          %v3647 = vsel %vm1299, %v3643, %v3645
          %v3650 = vsel %vm515, %v3646, 0.0
          %v3651 = vsel %vm516, %v3647, 0.0
          %v3654 = vcombine.low %v3650, %v3651
          %v3656 = vunpack.c.l.s4 1966171168
          %v3657 = vunpack.c.0.s8 %v3656
          %v3658 = vlaneseq
          %v3659 = vshrl.u32 %v3658, 7
          %v3660 = vsub.s32 %v3657, %v3659
          %v3661 = vrot.slane %v3654, %v3660
          %v3663 = vunpack.c.l.s4 1966171168
          %v3664 = vunpack.c.0.s8 %v3663
          %v3665 = vlaneseq
          %v3666 = vshrl.u32 %v3665, 7
          %v3667 = vsub.s32 %v3664, %v3666
          %v3668 = vrot.slane %v3661, %v3667
          %v3670 = vadd.f32 %v3626, %v3668
          %3671 = vst.msk [vmem:[#allocation4] sm:$0x3] %vm527, %v3670
          %v3672 = vld [vmem:[#allocation4] sm:$0x3]
          %v3673 = vxor.u32 %v3672, 2147483648
          %v3674 = vmul.f32 %v3673, 1.442695
          %v3675 = vpow.pop %v3674
          %v3676 = vadd.f32 %v3675, 1.0
          %v3677 = vrcp.pop %v3676
          %v3678 = vmul.f32 1.0, %v3677
          %3679 = vst.msk [vmem:[%s262] sm:$0x3] %vm527, %v3678
        $region52: #{tpu_custom_call.1} parent=31 // pred_fallthru
          _
        %s3680 = sand.u32 %s121, 1
        %s3681 = scalar_lea.sflag [#allocation7], %s3680
        %s3682 = sand.u32 %s121, 1
        %s3683 = smul.addr %s3682, 2
        %s3684 = scalar_lea.vmem [#allocation12], %s3683
        // Predicated region
        $region53: #{tpu_custom_call.1} parent=31 // pred_check
          %p3685 = pneg %p131
        $region54: #{tpu_custom_call.1} parent=31 // pred_check_branch
          %3687 = sbr.rel (%p3685) target = $region56
        $region55: #{tpu_custom_call.1} parent=31 // pred_region
          %s3689 = ssub.s32 32, 32
          %3690 = vsyncadd %s3681, %s3689
          %s3691 = smul.addr %s28, 2
          %s3692 = smul.addr %s3691, 16
          %s3693 = scalar_lea.hbm %s3, %s3692
          %s3695 = sshll.u32 %s3684, 4
          %s3696 = int_to_ptr.vmem [resolvable:$true] %s3695
          %3698 = dma.vmem_to_hbm [thread:$0]  %s3696, 32, %s3693, %s3681
        $region56: #{tpu_custom_call.1} parent=31 // pred_fallthru
          _
      $region32: #{tpu_custom_call.1} parent=5 // pred_fallthru
        _
      %p3699 = scmp.le.s32.totalorder 2, %s19
      // Predicated region
      $region57: #{tpu_custom_call.1} parent=5 // pred_check
        %p3700 = pneg %p3699
      $region58: #{tpu_custom_call.1} parent=5 // pred_check_branch
        %3702 = sbr.rel (%p3700) target = $region60
      $region59: #{tpu_custom_call.1} parent=5 // pred_region
        %s3703 = ssub.s32 %s19, 2
        // Predicated region
        $region61: #{tpu_custom_call.1} parent=59 // pred_check
          %p3704 = pneg %p137
        $region62: #{tpu_custom_call.1} parent=59 // pred_check_branch
          %3706 = sbr.rel (%p3704) target = $region64
        $region63: #{tpu_custom_call.1} parent=59 // pred_region
          %s3707 = sand.u32 %s122, 1
          %s3708 = scalar_lea.sflag [#allocation7], %s3707
          %s3709 = sand.u32 %s122, 1
          %s3710 = smul.addr %s3709, 2
          %s3711 = scalar_lea.vmem [#allocation12], %s3710
          %3712 = dma.done %s3708, 32
        $region64: #{tpu_custom_call.1} parent=59 // pred_fallthru
          _
      $region60: #{tpu_custom_call.1} parent=5 // pred_fallthru
        _
    $region6: #{tpu_custom_call.1} parent=1 // loop_footer
      %s23 = sadd.s32 1, %s19
    $region7: #{tpu_custom_call.1} parent=1 // loop_footer_branch
      %18 = sbr.rel target = $region3
    $region8: #{tpu_custom_call.1} parent=1 // loop_exit
      _
    %3713 = vsyncpa [#allocation6], 1
    %s3714 = scalar_lea.sflag [#allocation6], 1
    %3715 = vsyncpa %s3714, 1
    %3716 = vsyncpa [#allocation11], 1
    %s3717 = scalar_lea.sflag [#allocation11], 1
    %3718 = vsyncpa %s3717, 1
    %3719 = vsyncpa [#allocation7], 1
    %s3720 = scalar_lea.sflag [#allocation7], 1
    %3721 = vsyncpa %s3720, 1
    %3722 = vsyncpa [#allocation8], 1
    %s3723 = scalar_lea.sflag [#allocation8], 1
    %3724 = vsyncpa %s3723, 1

</llo_original>
